<compile_context>
chip_gen: v7x
topology: tpu7x:2x2x1
jax: 0.10.0
libtpu: 0.0.40
codegen_flags: <defaults>
</compile_context>

<pallas_src>
import math
from functools import partial

import jax
import jax.numpy as jnp
import numpy as np
from jax.experimental import pallas as pl
from jax.experimental.pallas import tpu as pltpu

LN_EPS = 1e-5


def _layernorm(x, gamma, beta):
    mu = jnp.mean(x, axis=-1, keepdims=True)
    var = jnp.mean(jnp.square(x - mu), axis=-1, keepdims=True)
    return (x - mu) * jax.lax.rsqrt(var + LN_EPS) * gamma + beta


# --------------------------------------------------------------------------- #
# Fused model kernel: [LN1 -> MHA -> +res -> LN2 -> MLP -> +res] x n_layers
#                     -> max over seq -> Linear(D, 1)
# Single invocation (no grid); everything lives in VMEM.
# --------------------------------------------------------------------------- #
def model_kernel(x_ref,
                 ln1_g_ref, ln1_b_ref, wq_ref, wk_ref, wv_ref, wo_ref,
                 ln2_g_ref, ln2_b_ref, w1_ref, b1_ref, w2_ref, b2_ref,
                 wm_ref, bm_ref, out_ref,
                 *, n_layers, n_heads, head_dim, batch, seq):
    B, S = batch, seq
    D = x_ref.shape[-1]
    scale = 1.0 / math.sqrt(head_dim)

    x = x_ref[...].reshape(B * S, D)                        # (BS, D): batch folded into rows

    for l in range(n_layers):                               # static unroll (tiny n_layers)
        # --- layer_norm1 ---
        xn = _layernorm(x, ln1_g_ref[l], ln1_b_ref[l])

        # --- multi-head self-attention (mode='soft') ---
        # TODO(synk): mode='hard' (argmax one-hot attention) not implemented; only 'soft'.
        attn_out = jnp.zeros_like(xn)
        for h in range(n_heads):                            # static unroll (tiny n_heads)
            q = jnp.dot(xn, wq_ref[l, h], preferred_element_type=jnp.float32)   # (BS, hd)
            k = jnp.dot(xn, wk_ref[l, h], preferred_element_type=jnp.float32)
            v = jnp.dot(xn, wv_ref[l, h], preferred_element_type=jnp.float32)
            q3 = q.reshape(B, S, head_dim)                  # leading-dim split only
            k3 = k.reshape(B, S, head_dim)
            v3 = v.reshape(B, S, head_dim)
            logits = jnp.einsum('bqe,bke->bqk', q3, k3,
                                preferred_element_type=jnp.float32) * scale      # (B,S,S)
            m = jnp.max(logits, axis=-1, keepdims=True)
            p = jnp.exp(logits - m)
            denom = jnp.sum(p, axis=-1, keepdims=True)
            attn = p * pl.reciprocal(denom, approx=True)    # EUP slot, not VALU divide
            o3 = jnp.einsum('bqk,bke->bqe', attn, v3,
                            preferred_element_type=jnp.float32)                  # (B,S,hd)
            # per-head slice of o_proj: heads are summed -> no lane-concat / repack
            attn_out = attn_out + jnp.dot(o3.reshape(B * S, head_dim), wo_ref[l, h],
                                          preferred_element_type=jnp.float32)
        a = xn + attn_out                                   # residual on post-LN x (matches torch code)

        # --- layer_norm2 + feed-forward (dropout=0.0 -> identity) ---
        a = _layernorm(a, ln2_g_ref[l], ln2_b_ref[l])
        h1 = jnp.maximum(
            jnp.dot(a, w1_ref[l], preferred_element_type=jnp.float32) + b1_ref[l], 0.0)
        lin = jnp.dot(h1, w2_ref[l], preferred_element_type=jnp.float32) + b2_ref[l]
        x = a + lin

    # --- max over seq dim + linear head ---
    xm = jnp.max(x.reshape(B, S, D), axis=1)                # (B, D)
    out_ref[...] = (jnp.dot(xm, wm_ref[...], preferred_element_type=jnp.float32)
                    + bm_ref[...])


def self_attention_model(x, params, wm_t, bm):
    B, S, D = x.shape
    n_layers, n_heads, _, head_dim = params['wq'].shape
    args = (x,
            params['ln1_g'], params['ln1_b'],
            params['wq'], params['wk'], params['wv'], params['wo'],
            params['ln2_g'], params['ln2_b'],
            params['w1'], params['b1'], params['w2'], params['b2'],
            wm_t, bm)
    vmem = pl.BlockSpec(memory_space=pltpu.MemorySpace.VMEM)
    return pl.pallas_call(
        partial(model_kernel, n_layers=n_layers, n_heads=n_heads,
                head_dim=head_dim, batch=B, seq=S),
        out_shape=jax.ShapeDtypeStruct((B, 1), jnp.float32),
        in_specs=[vmem] * len(args),
        out_specs=vmem,
    )(*args)


# --------------------------------------------------------------------------- #
# Host-side weight repacking (torch layout -> kernel layout).  Free at runtime.
# --------------------------------------------------------------------------- #
def pack_params(layers_params, n_heads, head_dim):
    l_ln1g, l_ln1b, l_wq, l_wk, l_wv, l_wo = [], [], [], [], [], []
    l_ln2g, l_ln2b, l_w1, l_b1, l_w2, l_b2 = [], [], [], [], [], []
    for (g1, be1, wqkv, wo, g2, be2, w1, b1, w2, b2) in layers_params:
        D = g1.shape[0]
        l_ln1g.append(g1.reshape(1, D))
        l_ln1b.append(be1.reshape(1, D))
        # torch qkv_proj.weight is (3E, D) with rows grouped per head as [q_h|k_h|v_h]
        wr = wqkv.reshape(n_heads, 3, head_dim, D)
        l_wq.append(jnp.transpose(wr[:, 0], (0, 2, 1)))     # (H, D, hd)
        l_wk.append(jnp.transpose(wr[:, 1], (0, 2, 1)))
        l_wv.append(jnp.transpose(wr[:, 2], (0, 2, 1)))
        # torch o_proj.weight is (D, E) consuming head-major concatenated values
        l_wo.append(jnp.transpose(wo.reshape(wo.shape[0], n_heads, head_dim),
                                  (1, 2, 0)))               # (H, hd, D)
        l_ln2g.append(g2.reshape(1, D))
        l_ln2b.append(be2.reshape(1, D))
        l_w1.append(w1.T)                                    # (D, L)
        l_b1.append(b1.reshape(1, -1))                       # (1, L)
        l_w2.append(w2.T)                                    # (L, D)
        l_b2.append(b2.reshape(1, -1))                       # (1, D)
    st = lambda xs: jnp.stack(xs, axis=0)
    return dict(ln1_g=st(l_ln1g), ln1_b=st(l_ln1b),
                wq=st(l_wq), wk=st(l_wk), wv=st(l_wv), wo=st(l_wo),
                ln2_g=st(l_ln2g), ln2_b=st(l_ln2b),
                w1=st(l_w1), b1=st(l_b1), w2=st(l_w2), b2=st(l_b2))


# --------------------------------------------------------------------------- #
# Pure-JAX reference (mirrors the PyTorch module exactly) for verification.
# --------------------------------------------------------------------------- #
def ref_model(x, layers_params, wm, bm, n_heads, head_dim):
    B, S, D = x.shape
    for (ln1_g, ln1_b, wqkv, wo, ln2_g, ln2_b, w1, b1, w2, b2) in layers_params:
        xn = _layernorm(x, ln1_g, ln1_b)
        qkv = xn @ wqkv.T                                     # (B, S, 3E)
        qkv = qkv.reshape(B, S, n_heads, 3 * head_dim).transpose(0, 2, 1, 3)
        q = qkv[..., :head_dim]
        k = qkv[..., head_dim:2 * head_dim]
        v = qkv[..., 2 * head_dim:]
        logits = jnp.einsum('bhqd,bhkd->bhqk', q, k) / math.sqrt(head_dim)
        attn = jax.nn.softmax(logits, axis=-1)
        vals = jnp.einsum('bhqk,bhkd->bhqd', attn, v)
        vals = vals.transpose(0, 2, 1, 3).reshape(B, S, -1)
        a = xn + vals @ wo.T
        a = _layernorm(a, ln2_g, ln2_b)
        h1 = jax.nn.relu(a @ w1.T + b1)
        x = a + (h1 @ w2.T + b2)
    m = jnp.max(x, axis=1)
    return m @ wm.T + bm


# --------------------------------------------------------------------------- #
# Deterministic parameter init (mimics the torch module's init schemes).
# --------------------------------------------------------------------------- #
def xavier_normal(key, shape):      # shape = (out, in)
    fan_out, fan_in = shape
    std = math.sqrt(2.0 / (fan_in + fan_out))
    return std * jax.random.normal(key, shape, jnp.float32)


def xavier_uniform(key, shape):     # shape = (out, in)
    fan_out, fan_in = shape
    bound = math.sqrt(6.0 / (fan_in + fan_out))
    return jax.random.uniform(key, shape, jnp.float32, -bound, bound)


def linear_default(key, out_f, in_f):
    kw, kb = jax.random.split(key)
    bound = 1.0 / math.sqrt(in_f)
    w = jax.random.uniform(kw, (out_f, in_f), jnp.float32, -bound, bound)
    b = jax.random.uniform(kb, (out_f,), jnp.float32, -bound, bound)
    return w, b


if __name__ == "__main__":
    # Small config consistent with the module: embed_dim % n_heads == 0.
    B, S = 2, 8
    n_layers, input_dim, embed_dim, linear_dim, n_heads = 2, 16, 16, 32, 2
    head_dim = embed_dim // n_heads

    key = jax.random.PRNGKey(0)
    key, kx = jax.random.split(key)
    x = jax.random.normal(kx, (B, S, input_dim), jnp.float32)

    layers_params = []
    for _ in range(n_layers):
        key, k1, k2, k3, k4 = jax.random.split(key, 5)
        ln1_g = jnp.ones((input_dim,), jnp.float32)
        ln1_b = jnp.zeros((input_dim,), jnp.float32)
        ln2_g = jnp.ones((input_dim,), jnp.float32)
        ln2_b = jnp.zeros((input_dim,), jnp.float32)
        wqkv = xavier_normal(k1, (3 * embed_dim, input_dim))
        wo = xavier_uniform(k2, (input_dim, embed_dim))
        w1, b1 = linear_default(k3, linear_dim, input_dim)
        w2, b2 = linear_default(k4, input_dim, linear_dim)
        layers_params.append((ln1_g, ln1_b, wqkv, wo, ln2_g, ln2_b, w1, b1, w2, b2))

    key, km = jax.random.split(key)
    wm, bm = linear_default(km, 1, input_dim)        # (1, D), (1,)

    # Host-side repack for the kernel (layer-stacked, per-head blocks, (in,out) layouts).
    stacked = pack_params(layers_params, n_heads, head_dim)
    wm_t = wm.T                                       # (D, 1)
    bm2 = bm.reshape(1, 1)                            # (1, 1)

    run = jax.jit(self_attention_model)
    out = run(x, stacked, wm_t, bm2)
    out = jax.block_until_ready(out)

    ref = ref_model(x, layers_params, wm, bm, n_heads, head_dim)
    # Tolerance slightly looser than 1e-4 because the kernel uses the approximate
    # EUP reciprocal for the softmax normalization.
    np.testing.assert_allclose(np.asarray(out), np.asarray(ref), rtol=5e-3, atol=5e-3)
    assert out.shape == (B, 1)
    print("KERNEL_OK")
</pallas_src>

<mosaic_0001>
module attributes {stable_mosaic.version = 11 : i64} {
  func.func @model_kernel(%arg0: memref<2x8x16xf32, #tpu.memory_space<vmem>>, %arg1: memref<2x1x16xf32, #tpu.memory_space<vmem>>, %arg2: memref<2x1x16xf32, #tpu.memory_space<vmem>>, %arg3: memref<2x2x16x8xf32, #tpu.memory_space<vmem>>, %arg4: memref<2x2x16x8xf32, #tpu.memory_space<vmem>>, %arg5: memref<2x2x16x8xf32, #tpu.memory_space<vmem>>, %arg6: memref<2x2x8x16xf32, #tpu.memory_space<vmem>>, %arg7: memref<2x1x16xf32, #tpu.memory_space<vmem>>, %arg8: memref<2x1x16xf32, #tpu.memory_space<vmem>>, %arg9: memref<2x16x32xf32, #tpu.memory_space<vmem>>, %arg10: memref<2x1x32xf32, #tpu.memory_space<vmem>>, %arg11: memref<2x32x16xf32, #tpu.memory_space<vmem>>, %arg12: memref<2x1x16xf32, #tpu.memory_space<vmem>>, %arg13: memref<16x1xf32, #tpu.memory_space<vmem>>, %arg14: memref<1x1xf32, #tpu.memory_space<vmem>>, %arg15: memref<2x1xf32, #tpu.memory_space<vmem>>) attributes {dimension_semantics = [], scalar_prefetch = 0 : i64, scratch_operands = 0 : i64, tpu.core_type = #tpu.core_type<tc>} {
    %c0 = arith.constant 0 : index
    %c0_0 = arith.constant 0 : index
    %c0_1 = arith.constant 0 : index
    %0 = vector.load %arg0[%c0, %c0_0, %c0_1] : memref<2x8x16xf32, #tpu.memory_space<vmem>>, vector<2x8x16xf32>
    %1 = vector.shape_cast %0 : vector<2x8x16xf32> to vector<16x16xf32>
    %c0_2 = arith.constant 0 : index
    %c0_3 = arith.constant 0 : index
    %c0_4 = arith.constant 0 : index
    %2 = vector.load %arg1[%c0_2, %c0_3, %c0_4] : memref<2x1x16xf32, #tpu.memory_space<vmem>>, vector<1x1x16xf32>
    %3 = vector.shape_cast %2 : vector<1x1x16xf32> to vector<1x16xf32>
    %c0_5 = arith.constant 0 : index
    %c0_6 = arith.constant 0 : index
    %c0_7 = arith.constant 0 : index
    %4 = vector.load %arg2[%c0_5, %c0_6, %c0_7] : memref<2x1x16xf32, #tpu.memory_space<vmem>>, vector<1x1x16xf32>
    %5 = vector.shape_cast %4 : vector<1x1x16xf32> to vector<1x16xf32>
    %cst = arith.constant dense<0.000000e+00> : vector<16xf32>
    %6 = vector.multi_reduction <add>, %1, %cst [1] : vector<16x16xf32> to vector<16xf32>
    %7 = vector.shape_cast %6 : vector<16xf32> to vector<16x1xf32>
    %cst_8 = arith.constant 1.600000e+01 : f32
    %8 = vector.broadcast %cst_8 : f32 to vector<16x1xf32>
    %9 = arith.divf %7, %8 : vector<16x1xf32>
    %10 = vector.broadcast %9 : vector<16x1xf32> to vector<16x16xf32>
    %11 = arith.subf %1, %10 : vector<16x16xf32>
    %12 = arith.mulf %11, %11 : vector<16x16xf32>
    %cst_9 = arith.constant dense<0.000000e+00> : vector<16xf32>
    %13 = vector.multi_reduction <add>, %12, %cst_9 [1] : vector<16x16xf32> to vector<16xf32>
    %14 = vector.shape_cast %13 : vector<16xf32> to vector<16x1xf32>
    %cst_10 = arith.constant 1.600000e+01 : f32
    %15 = vector.broadcast %cst_10 : f32 to vector<16x1xf32>
    %16 = arith.divf %14, %15 : vector<16x1xf32>
    %17 = vector.broadcast %9 : vector<16x1xf32> to vector<16x16xf32>
    %18 = arith.subf %1, %17 : vector<16x16xf32>
    %cst_11 = arith.constant 9.99999974E-6 : f32
    %19 = vector.broadcast %cst_11 : f32 to vector<16x1xf32>
    %20 = arith.addf %16, %19 : vector<16x1xf32>
    %21 = math.rsqrt %20 : vector<16x1xf32>
    %22 = vector.broadcast %21 : vector<16x1xf32> to vector<16x16xf32>
    %23 = arith.mulf %18, %22 : vector<16x16xf32>
    %24 = vector.broadcast %3 : vector<1x16xf32> to vector<16x16xf32>
    %25 = arith.mulf %23, %24 : vector<16x16xf32>
    %26 = vector.broadcast %5 : vector<1x16xf32> to vector<16x16xf32>
    %27 = arith.addf %25, %26 : vector<16x16xf32>
    %cst_12 = arith.constant 0.000000e+00 : f32
    %28 = vector.broadcast %cst_12 : f32 to vector<16x16xf32>
    %c0_13 = arith.constant 0 : index
    %c0_14 = arith.constant 0 : index
    %c0_15 = arith.constant 0 : index
    %c0_16 = arith.constant 0 : index
    %29 = vector.load %arg3[%c0_13, %c0_14, %c0_15, %c0_16] : memref<2x2x16x8xf32, #tpu.memory_space<vmem>>, vector<1x1x16x8xf32>
    %30 = vector.shape_cast %29 : vector<1x1x16x8xf32> to vector<16x8xf32>
    %cst_17 = arith.constant dense<0.000000e+00> : vector<16x8xf32>
    %31 = tpu.matmul %27, %30, %cst_17 {dimension_numbers = #tpu.dot_dimension_numbers<[1], [0], [0], [1], [0, 0, 1, 1], [], []>} : vector<16x16xf32>, vector<16x8xf32>, vector<16x8xf32> -> vector<16x8xf32>
    %c0_18 = arith.constant 0 : index
    %c0_19 = arith.constant 0 : index
    %c0_20 = arith.constant 0 : index
    %c0_21 = arith.constant 0 : index
    %32 = vector.load %arg4[%c0_18, %c0_19, %c0_20, %c0_21] : memref<2x2x16x8xf32, #tpu.memory_space<vmem>>, vector<1x1x16x8xf32>
    %33 = vector.shape_cast %32 : vector<1x1x16x8xf32> to vector<16x8xf32>
    %cst_22 = arith.constant dense<0.000000e+00> : vector<16x8xf32>
    %34 = tpu.matmul %27, %33, %cst_22 {dimension_numbers = #tpu.dot_dimension_numbers<[1], [0], [0], [1], [0, 0, 1, 1], [], []>} : vector<16x16xf32>, vector<16x8xf32>, vector<16x8xf32> -> vector<16x8xf32>
    %c0_23 = arith.constant 0 : index
    %c0_24 = arith.constant 0 : index
    %c0_25 = arith.constant 0 : index
    %c0_26 = arith.constant 0 : index
    %35 = vector.load %arg5[%c0_23, %c0_24, %c0_25, %c0_26] : memref<2x2x16x8xf32, #tpu.memory_space<vmem>>, vector<1x1x16x8xf32>
    %36 = vector.shape_cast %35 : vector<1x1x16x8xf32> to vector<16x8xf32>
    %cst_27 = arith.constant dense<0.000000e+00> : vector<16x8xf32>
    %37 = tpu.matmul %27, %36, %cst_27 {dimension_numbers = #tpu.dot_dimension_numbers<[1], [0], [0], [1], [0, 0, 1, 1], [], []>} : vector<16x16xf32>, vector<16x8xf32>, vector<16x8xf32> -> vector<16x8xf32>
    %38 = vector.shape_cast %31 : vector<16x8xf32> to vector<2x8x8xf32>
    %39 = vector.shape_cast %34 : vector<16x8xf32> to vector<2x8x8xf32>
    %40 = vector.shape_cast %37 : vector<16x8xf32> to vector<2x8x8xf32>
    "tpu.trace_start"() <{level = 10 : i32, message = "bqe,bke->bqk"}> : () -> ()
    %cst_28 = arith.constant dense<0.000000e+00> : vector<2x8x8xf32>
    %41 = tpu.matmul %38, %39, %cst_28 {dimension_numbers = #tpu.dot_dimension_numbers<[2], [2], [1], [1], [0, 0, 0, 1, 1, 1], [0], [0]>} : vector<2x8x8xf32>, vector<2x8x8xf32>, vector<2x8x8xf32> -> vector<2x8x8xf32>
    "tpu.trace_stop"() : () -> ()
    %cst_29 = arith.constant 0.353553385 : f32
    %42 = vector.broadcast %cst_29 : f32 to vector<2x8x8xf32>
    %43 = arith.mulf %41, %42 : vector<2x8x8xf32>
    %cst_30 = arith.constant dense<0xFF800000> : vector<2x8xf32>
    %44 = vector.multi_reduction <maximumf>, %43, %cst_30 [2] : vector<2x8x8xf32> to vector<2x8xf32>
    %45 = vector.shape_cast %44 : vector<2x8xf32> to vector<2x8x1xf32>
    %46 = vector.broadcast %45 : vector<2x8x1xf32> to vector<2x8x8xf32>
    %47 = arith.subf %43, %46 : vector<2x8x8xf32>
    %48 = math.exp %47 : vector<2x8x8xf32>
    %cst_31 = arith.constant dense<0.000000e+00> : vector<2x8xf32>
    %49 = vector.multi_reduction <add>, %48, %cst_31 [2] : vector<2x8x8xf32> to vector<2x8xf32>
    %50 = vector.shape_cast %49 : vector<2x8xf32> to vector<2x8x1xf32>
    %51 = tpu.reciprocal %50 {approx = true} : vector<2x8x1xf32> -> vector<2x8x1xf32>
    %52 = vector.broadcast %51 : vector<2x8x1xf32> to vector<2x8x8xf32>
    %53 = arith.mulf %48, %52 : vector<2x8x8xf32>
    "tpu.trace_start"() <{level = 10 : i32, message = "bqk,bke->bqe"}> : () -> ()
    %cst_32 = arith.constant dense<0.000000e+00> : vector<2x8x8xf32>
    %54 = tpu.matmul %53, %40, %cst_32 {dimension_numbers = #tpu.dot_dimension_numbers<[2], [1], [1], [2], [0, 0, 0, 1, 1, 2], [0], [0]>} : vector<2x8x8xf32>, vector<2x8x8xf32>, vector<2x8x8xf32> -> vector<2x8x8xf32>
    "tpu.trace_stop"() : () -> ()
    %55 = vector.shape_cast %54 : vector<2x8x8xf32> to vector<16x8xf32>
    %c0_33 = arith.constant 0 : index
    %c0_34 = arith.constant 0 : index
    %c0_35 = arith.constant 0 : index
    %c0_36 = arith.constant 0 : index
    %56 = vector.load %arg6[%c0_33, %c0_34, %c0_35, %c0_36] : memref<2x2x8x16xf32, #tpu.memory_space<vmem>>, vector<1x1x8x16xf32>
    %57 = vector.shape_cast %56 : vector<1x1x8x16xf32> to vector<8x16xf32>
    %cst_37 = arith.constant dense<0.000000e+00> : vector<16x16xf32>
    %58 = tpu.matmul %55, %57, %cst_37 {dimension_numbers = #tpu.dot_dimension_numbers<[1], [0], [0], [1], [0, 0, 1, 1], [], []>} : vector<16x8xf32>, vector<8x16xf32>, vector<16x16xf32> -> vector<16x16xf32>
    %59 = arith.addf %28, %58 : vector<16x16xf32>
    %c0_38 = arith.constant 0 : index
    %c1 = arith.constant 1 : index
    %c0_39 = arith.constant 0 : index
    %c0_40 = arith.constant 0 : index
    %60 = vector.load %arg3[%c0_38, %c1, %c0_39, %c0_40] : memref<2x2x16x8xf32, #tpu.memory_space<vmem>>, vector<1x1x16x8xf32>
    %61 = vector.shape_cast %60 : vector<1x1x16x8xf32> to vector<16x8xf32>
    %cst_41 = arith.constant dense<0.000000e+00> : vector<16x8xf32>
    %62 = tpu.matmul %27, %61, %cst_41 {dimension_numbers = #tpu.dot_dimension_numbers<[1], [0], [0], [1], [0, 0, 1, 1], [], []>} : vector<16x16xf32>, vector<16x8xf32>, vector<16x8xf32> -> vector<16x8xf32>
    %c0_42 = arith.constant 0 : index
    %c1_43 = arith.constant 1 : index
    %c0_44 = arith.constant 0 : index
    %c0_45 = arith.constant 0 : index
    %63 = vector.load %arg4[%c0_42, %c1_43, %c0_44, %c0_45] : memref<2x2x16x8xf32, #tpu.memory_space<vmem>>, vector<1x1x16x8xf32>
    %64 = vector.shape_cast %63 : vector<1x1x16x8xf32> to vector<16x8xf32>
    %cst_46 = arith.constant dense<0.000000e+00> : vector<16x8xf32>
    %65 = tpu.matmul %27, %64, %cst_46 {dimension_numbers = #tpu.dot_dimension_numbers<[1], [0], [0], [1], [0, 0, 1, 1], [], []>} : vector<16x16xf32>, vector<16x8xf32>, vector<16x8xf32> -> vector<16x8xf32>
    %c0_47 = arith.constant 0 : index
    %c1_48 = arith.constant 1 : index
    %c0_49 = arith.constant 0 : index
    %c0_50 = arith.constant 0 : index
    %66 = vector.load %arg5[%c0_47, %c1_48, %c0_49, %c0_50] : memref<2x2x16x8xf32, #tpu.memory_space<vmem>>, vector<1x1x16x8xf32>
    %67 = vector.shape_cast %66 : vector<1x1x16x8xf32> to vector<16x8xf32>
    %cst_51 = arith.constant dense<0.000000e+00> : vector<16x8xf32>
    %68 = tpu.matmul %27, %67, %cst_51 {dimension_numbers = #tpu.dot_dimension_numbers<[1], [0], [0], [1], [0, 0, 1, 1], [], []>} : vector<16x16xf32>, vector<16x8xf32>, vector<16x8xf32> -> vector<16x8xf32>
    %69 = vector.shape_cast %62 : vector<16x8xf32> to vector<2x8x8xf32>
    %70 = vector.shape_cast %65 : vector<16x8xf32> to vector<2x8x8xf32>
    %71 = vector.shape_cast %68 : vector<16x8xf32> to vector<2x8x8xf32>
    "tpu.trace_start"() <{level = 10 : i32, message = "bqe,bke->bqk"}> : () -> ()
    %cst_52 = arith.constant dense<0.000000e+00> : vector<2x8x8xf32>
    %72 = tpu.matmul %69, %70, %cst_52 {dimension_numbers = #tpu.dot_dimension_numbers<[2], [2], [1], [1], [0, 0, 0, 1, 1, 1], [0], [0]>} : vector<2x8x8xf32>, vector<2x8x8xf32>, vector<2x8x8xf32> -> vector<2x8x8xf32>
    "tpu.trace_stop"() : () -> ()
    %cst_53 = arith.constant 0.353553385 : f32
    %73 = vector.broadcast %cst_53 : f32 to vector<2x8x8xf32>
    %74 = arith.mulf %72, %73 : vector<2x8x8xf32>
    %cst_54 = arith.constant dense<0xFF800000> : vector<2x8xf32>
    %75 = vector.multi_reduction <maximumf>, %74, %cst_54 [2] : vector<2x8x8xf32> to vector<2x8xf32>
    %76 = vector.shape_cast %75 : vector<2x8xf32> to vector<2x8x1xf32>
    %77 = vector.broadcast %76 : vector<2x8x1xf32> to vector<2x8x8xf32>
    %78 = arith.subf %74, %77 : vector<2x8x8xf32>
    %79 = math.exp %78 : vector<2x8x8xf32>
    %cst_55 = arith.constant dense<0.000000e+00> : vector<2x8xf32>
    %80 = vector.multi_reduction <add>, %79, %cst_55 [2] : vector<2x8x8xf32> to vector<2x8xf32>
    %81 = vector.shape_cast %80 : vector<2x8xf32> to vector<2x8x1xf32>
    %82 = tpu.reciprocal %81 {approx = true} : vector<2x8x1xf32> -> vector<2x8x1xf32>
    %83 = vector.broadcast %82 : vector<2x8x1xf32> to vector<2x8x8xf32>
    %84 = arith.mulf %79, %83 : vector<2x8x8xf32>
    "tpu.trace_start"() <{level = 10 : i32, message = "bqk,bke->bqe"}> : () -> ()
    %cst_56 = arith.constant dense<0.000000e+00> : vector<2x8x8xf32>
    %85 = tpu.matmul %84, %71, %cst_56 {dimension_numbers = #tpu.dot_dimension_numbers<[2], [1], [1], [2], [0, 0, 0, 1, 1, 2], [0], [0]>} : vector<2x8x8xf32>, vector<2x8x8xf32>, vector<2x8x8xf32> -> vector<2x8x8xf32>
    "tpu.trace_stop"() : () -> ()
    %86 = vector.shape_cast %85 : vector<2x8x8xf32> to vector<16x8xf32>
    %c0_57 = arith.constant 0 : index
    %c1_58 = arith.constant 1 : index
    %c0_59 = arith.constant 0 : index
    %c0_60 = arith.constant 0 : index
    %87 = vector.load %arg6[%c0_57, %c1_58, %c0_59, %c0_60] : memref<2x2x8x16xf32, #tpu.memory_space<vmem>>, vector<1x1x8x16xf32>
    %88 = vector.shape_cast %87 : vector<1x1x8x16xf32> to vector<8x16xf32>
    %cst_61 = arith.constant dense<0.000000e+00> : vector<16x16xf32>
    %89 = tpu.matmul %86, %88, %cst_61 {dimension_numbers = #tpu.dot_dimension_numbers<[1], [0], [0], [1], [0, 0, 1, 1], [], []>} : vector<16x8xf32>, vector<8x16xf32>, vector<16x16xf32> -> vector<16x16xf32>
    %90 = arith.addf %59, %89 : vector<16x16xf32>
    %91 = arith.addf %27, %90 : vector<16x16xf32>
    %c0_62 = arith.constant 0 : index
    %c0_63 = arith.constant 0 : index
    %c0_64 = arith.constant 0 : index
    %92 = vector.load %arg7[%c0_62, %c0_63, %c0_64] : memref<2x1x16xf32, #tpu.memory_space<vmem>>, vector<1x1x16xf32>
    %93 = vector.shape_cast %92 : vector<1x1x16xf32> to vector<1x16xf32>
    %c0_65 = arith.constant 0 : index
    %c0_66 = arith.constant 0 : index
    %c0_67 = arith.constant 0 : index
    %94 = vector.load %arg8[%c0_65, %c0_66, %c0_67] : memref<2x1x16xf32, #tpu.memory_space<vmem>>, vector<1x1x16xf32>
    %95 = vector.shape_cast %94 : vector<1x1x16xf32> to vector<1x16xf32>
    %cst_68 = arith.constant dense<0.000000e+00> : vector<16xf32>
    %96 = vector.multi_reduction <add>, %91, %cst_68 [1] : vector<16x16xf32> to vector<16xf32>
    %97 = vector.shape_cast %96 : vector<16xf32> to vector<16x1xf32>
    %cst_69 = arith.constant 1.600000e+01 : f32
    %98 = vector.broadcast %cst_69 : f32 to vector<16x1xf32>
    %99 = arith.divf %97, %98 : vector<16x1xf32>
    %100 = vector.broadcast %99 : vector<16x1xf32> to vector<16x16xf32>
    %101 = arith.subf %91, %100 : vector<16x16xf32>
    %102 = arith.mulf %101, %101 : vector<16x16xf32>
    %cst_70 = arith.constant dense<0.000000e+00> : vector<16xf32>
    %103 = vector.multi_reduction <add>, %102, %cst_70 [1] : vector<16x16xf32> to vector<16xf32>
    %104 = vector.shape_cast %103 : vector<16xf32> to vector<16x1xf32>
    %cst_71 = arith.constant 1.600000e+01 : f32
    %105 = vector.broadcast %cst_71 : f32 to vector<16x1xf32>
    %106 = arith.divf %104, %105 : vector<16x1xf32>
    %107 = vector.broadcast %99 : vector<16x1xf32> to vector<16x16xf32>
    %108 = arith.subf %91, %107 : vector<16x16xf32>
    %cst_72 = arith.constant 9.99999974E-6 : f32
    %109 = vector.broadcast %cst_72 : f32 to vector<16x1xf32>
    %110 = arith.addf %106, %109 : vector<16x1xf32>
    %111 = math.rsqrt %110 : vector<16x1xf32>
    %112 = vector.broadcast %111 : vector<16x1xf32> to vector<16x16xf32>
    %113 = arith.mulf %108, %112 : vector<16x16xf32>
    %114 = vector.broadcast %93 : vector<1x16xf32> to vector<16x16xf32>
    %115 = arith.mulf %113, %114 : vector<16x16xf32>
    %116 = vector.broadcast %95 : vector<1x16xf32> to vector<16x16xf32>
    %117 = arith.addf %115, %116 : vector<16x16xf32>
    %c0_73 = arith.constant 0 : index
    %c0_74 = arith.constant 0 : index
    %c0_75 = arith.constant 0 : index
    %118 = vector.load %arg9[%c0_73, %c0_74, %c0_75] : memref<2x16x32xf32, #tpu.memory_space<vmem>>, vector<1x16x32xf32>
    %119 = vector.shape_cast %118 : vector<1x16x32xf32> to vector<16x32xf32>
    %cst_76 = arith.constant dense<0.000000e+00> : vector<16x32xf32>
    %120 = tpu.matmul %117, %119, %cst_76 {dimension_numbers = #tpu.dot_dimension_numbers<[1], [0], [0], [1], [0, 0, 1, 1], [], []>} : vector<16x16xf32>, vector<16x32xf32>, vector<16x32xf32> -> vector<16x32xf32>
    %c0_77 = arith.constant 0 : index
    %c0_78 = arith.constant 0 : index
    %c0_79 = arith.constant 0 : index
    %121 = vector.load %arg10[%c0_77, %c0_78, %c0_79] : memref<2x1x32xf32, #tpu.memory_space<vmem>>, vector<1x1x32xf32>
    %122 = vector.shape_cast %121 : vector<1x1x32xf32> to vector<1x32xf32>
    %123 = vector.broadcast %122 : vector<1x32xf32> to vector<16x32xf32>
    %124 = arith.addf %120, %123 : vector<16x32xf32>
    %cst_80 = arith.constant 0.000000e+00 : f32
    %125 = vector.broadcast %cst_80 : f32 to vector<16x32xf32>
    %126 = arith.maximumf %124, %125 : vector<16x32xf32>
    %c0_81 = arith.constant 0 : index
    %c0_82 = arith.constant 0 : index
    %c0_83 = arith.constant 0 : index
    %127 = vector.load %arg11[%c0_81, %c0_82, %c0_83] : memref<2x32x16xf32, #tpu.memory_space<vmem>>, vector<1x32x16xf32>
    %128 = vector.shape_cast %127 : vector<1x32x16xf32> to vector<32x16xf32>
    %cst_84 = arith.constant dense<0.000000e+00> : vector<16x16xf32>
    %129 = tpu.matmul %126, %128, %cst_84 {dimension_numbers = #tpu.dot_dimension_numbers<[1], [0], [0], [1], [0, 0, 1, 1], [], []>} : vector<16x32xf32>, vector<32x16xf32>, vector<16x16xf32> -> vector<16x16xf32>
    %c0_85 = arith.constant 0 : index
    %c0_86 = arith.constant 0 : index
    %c0_87 = arith.constant 0 : index
    %130 = vector.load %arg12[%c0_85, %c0_86, %c0_87] : memref<2x1x16xf32, #tpu.memory_space<vmem>>, vector<1x1x16xf32>
    %131 = vector.shape_cast %130 : vector<1x1x16xf32> to vector<1x16xf32>
    %132 = vector.broadcast %131 : vector<1x16xf32> to vector<16x16xf32>
    %133 = arith.addf %129, %132 : vector<16x16xf32>
    %134 = arith.addf %117, %133 : vector<16x16xf32>
    %c1_88 = arith.constant 1 : index
    %c0_89 = arith.constant 0 : index
    %c0_90 = arith.constant 0 : index
    %135 = vector.load %arg1[%c1_88, %c0_89, %c0_90] : memref<2x1x16xf32, #tpu.memory_space<vmem>>, vector<1x1x16xf32>
    %136 = vector.shape_cast %135 : vector<1x1x16xf32> to vector<1x16xf32>
    %c1_91 = arith.constant 1 : index
    %c0_92 = arith.constant 0 : index
    %c0_93 = arith.constant 0 : index
    %137 = vector.load %arg2[%c1_91, %c0_92, %c0_93] : memref<2x1x16xf32, #tpu.memory_space<vmem>>, vector<1x1x16xf32>
    %138 = vector.shape_cast %137 : vector<1x1x16xf32> to vector<1x16xf32>
    %cst_94 = arith.constant dense<0.000000e+00> : vector<16xf32>
    %139 = vector.multi_reduction <add>, %134, %cst_94 [1] : vector<16x16xf32> to vector<16xf32>
    %140 = vector.shape_cast %139 : vector<16xf32> to vector<16x1xf32>
    %cst_95 = arith.constant 1.600000e+01 : f32
    %141 = vector.broadcast %cst_95 : f32 to vector<16x1xf32>
    %142 = arith.divf %140, %141 : vector<16x1xf32>
    %143 = vector.broadcast %142 : vector<16x1xf32> to vector<16x16xf32>
    %144 = arith.subf %134, %143 : vector<16x16xf32>
    %145 = arith.mulf %144, %144 : vector<16x16xf32>
    %cst_96 = arith.constant dense<0.000000e+00> : vector<16xf32>
    %146 = vector.multi_reduction <add>, %145, %cst_96 [1] : vector<16x16xf32> to vector<16xf32>
    %147 = vector.shape_cast %146 : vector<16xf32> to vector<16x1xf32>
    %cst_97 = arith.constant 1.600000e+01 : f32
    %148 = vector.broadcast %cst_97 : f32 to vector<16x1xf32>
    %149 = arith.divf %147, %148 : vector<16x1xf32>
    %150 = vector.broadcast %142 : vector<16x1xf32> to vector<16x16xf32>
    %151 = arith.subf %134, %150 : vector<16x16xf32>
    %cst_98 = arith.constant 9.99999974E-6 : f32
    %152 = vector.broadcast %cst_98 : f32 to vector<16x1xf32>
    %153 = arith.addf %149, %152 : vector<16x1xf32>
    %154 = math.rsqrt %153 : vector<16x1xf32>
    %155 = vector.broadcast %154 : vector<16x1xf32> to vector<16x16xf32>
    %156 = arith.mulf %151, %155 : vector<16x16xf32>
    %157 = vector.broadcast %136 : vector<1x16xf32> to vector<16x16xf32>
    %158 = arith.mulf %156, %157 : vector<16x16xf32>
    %159 = vector.broadcast %138 : vector<1x16xf32> to vector<16x16xf32>
    %160 = arith.addf %158, %159 : vector<16x16xf32>
    %cst_99 = arith.constant 0.000000e+00 : f32
    %161 = vector.broadcast %cst_99 : f32 to vector<16x16xf32>
    %c1_100 = arith.constant 1 : index
    %c0_101 = arith.constant 0 : index
    %c0_102 = arith.constant 0 : index
    %c0_103 = arith.constant 0 : index
    %162 = vector.load %arg3[%c1_100, %c0_101, %c0_102, %c0_103] : memref<2x2x16x8xf32, #tpu.memory_space<vmem>>, vector<1x1x16x8xf32>
    %163 = vector.shape_cast %162 : vector<1x1x16x8xf32> to vector<16x8xf32>
    %cst_104 = arith.constant dense<0.000000e+00> : vector<16x8xf32>
    %164 = tpu.matmul %160, %163, %cst_104 {dimension_numbers = #tpu.dot_dimension_numbers<[1], [0], [0], [1], [0, 0, 1, 1], [], []>} : vector<16x16xf32>, vector<16x8xf32>, vector<16x8xf32> -> vector<16x8xf32>
    %c1_105 = arith.constant 1 : index
    %c0_106 = arith.constant 0 : index
    %c0_107 = arith.constant 0 : index
    %c0_108 = arith.constant 0 : index
    %165 = vector.load %arg4[%c1_105, %c0_106, %c0_107, %c0_108] : memref<2x2x16x8xf32, #tpu.memory_space<vmem>>, vector<1x1x16x8xf32>
    %166 = vector.shape_cast %165 : vector<1x1x16x8xf32> to vector<16x8xf32>
    %cst_109 = arith.constant dense<0.000000e+00> : vector<16x8xf32>
    %167 = tpu.matmul %160, %166, %cst_109 {dimension_numbers = #tpu.dot_dimension_numbers<[1], [0], [0], [1], [0, 0, 1, 1], [], []>} : vector<16x16xf32>, vector<16x8xf32>, vector<16x8xf32> -> vector<16x8xf32>
    %c1_110 = arith.constant 1 : index
    %c0_111 = arith.constant 0 : index
    %c0_112 = arith.constant 0 : index
    %c0_113 = arith.constant 0 : index
    %168 = vector.load %arg5[%c1_110, %c0_111, %c0_112, %c0_113] : memref<2x2x16x8xf32, #tpu.memory_space<vmem>>, vector<1x1x16x8xf32>
    %169 = vector.shape_cast %168 : vector<1x1x16x8xf32> to vector<16x8xf32>
    %cst_114 = arith.constant dense<0.000000e+00> : vector<16x8xf32>
    %170 = tpu.matmul %160, %169, %cst_114 {dimension_numbers = #tpu.dot_dimension_numbers<[1], [0], [0], [1], [0, 0, 1, 1], [], []>} : vector<16x16xf32>, vector<16x8xf32>, vector<16x8xf32> -> vector<16x8xf32>
    %171 = vector.shape_cast %164 : vector<16x8xf32> to vector<2x8x8xf32>
    %172 = vector.shape_cast %167 : vector<16x8xf32> to vector<2x8x8xf32>
    %173 = vector.shape_cast %170 : vector<16x8xf32> to vector<2x8x8xf32>
    "tpu.trace_start"() <{level = 10 : i32, message = "bqe,bke->bqk"}> : () -> ()
    %cst_115 = arith.constant dense<0.000000e+00> : vector<2x8x8xf32>
    %174 = tpu.matmul %171, %172, %cst_115 {dimension_numbers = #tpu.dot_dimension_numbers<[2], [2], [1], [1], [0, 0, 0, 1, 1, 1], [0], [0]>} : vector<2x8x8xf32>, vector<2x8x8xf32>, vector<2x8x8xf32> -> vector<2x8x8xf32>
    "tpu.trace_stop"() : () -> ()
    %cst_116 = arith.constant 0.353553385 : f32
    %175 = vector.broadcast %cst_116 : f32 to vector<2x8x8xf32>
    %176 = arith.mulf %174, %175 : vector<2x8x8xf32>
    %cst_117 = arith.constant dense<0xFF800000> : vector<2x8xf32>
    %177 = vector.multi_reduction <maximumf>, %176, %cst_117 [2] : vector<2x8x8xf32> to vector<2x8xf32>
    %178 = vector.shape_cast %177 : vector<2x8xf32> to vector<2x8x1xf32>
    %179 = vector.broadcast %178 : vector<2x8x1xf32> to vector<2x8x8xf32>
    %180 = arith.subf %176, %179 : vector<2x8x8xf32>
    %181 = math.exp %180 : vector<2x8x8xf32>
    %cst_118 = arith.constant dense<0.000000e+00> : vector<2x8xf32>
    %182 = vector.multi_reduction <add>, %181, %cst_118 [2] : vector<2x8x8xf32> to vector<2x8xf32>
    %183 = vector.shape_cast %182 : vector<2x8xf32> to vector<2x8x1xf32>
    %184 = tpu.reciprocal %183 {approx = true} : vector<2x8x1xf32> -> vector<2x8x1xf32>
    %185 = vector.broadcast %184 : vector<2x8x1xf32> to vector<2x8x8xf32>
    %186 = arith.mulf %181, %185 : vector<2x8x8xf32>
    "tpu.trace_start"() <{level = 10 : i32, message = "bqk,bke->bqe"}> : () -> ()
    %cst_119 = arith.constant dense<0.000000e+00> : vector<2x8x8xf32>
    %187 = tpu.matmul %186, %173, %cst_119 {dimension_numbers = #tpu.dot_dimension_numbers<[2], [1], [1], [2], [0, 0, 0, 1, 1, 2], [0], [0]>} : vector<2x8x8xf32>, vector<2x8x8xf32>, vector<2x8x8xf32> -> vector<2x8x8xf32>
    "tpu.trace_stop"() : () -> ()
    %188 = vector.shape_cast %187 : vector<2x8x8xf32> to vector<16x8xf32>
    %c1_120 = arith.constant 1 : index
    %c0_121 = arith.constant 0 : index
    %c0_122 = arith.constant 0 : index
    %c0_123 = arith.constant 0 : index
    %189 = vector.load %arg6[%c1_120, %c0_121, %c0_122, %c0_123] : memref<2x2x8x16xf32, #tpu.memory_space<vmem>>, vector<1x1x8x16xf32>
    %190 = vector.shape_cast %189 : vector<1x1x8x16xf32> to vector<8x16xf32>
    %cst_124 = arith.constant dense<0.000000e+00> : vector<16x16xf32>
    %191 = tpu.matmul %188, %190, %cst_124 {dimension_numbers = #tpu.dot_dimension_numbers<[1], [0], [0], [1], [0, 0, 1, 1], [], []>} : vector<16x8xf32>, vector<8x16xf32>, vector<16x16xf32> -> vector<16x16xf32>
    %192 = arith.addf %161, %191 : vector<16x16xf32>
    %c1_125 = arith.constant 1 : index
    %c1_126 = arith.constant 1 : index
    %c0_127 = arith.constant 0 : index
    %c0_128 = arith.constant 0 : index
    %193 = vector.load %arg3[%c1_125, %c1_126, %c0_127, %c0_128] : memref<2x2x16x8xf32, #tpu.memory_space<vmem>>, vector<1x1x16x8xf32>
    %194 = vector.shape_cast %193 : vector<1x1x16x8xf32> to vector<16x8xf32>
    %cst_129 = arith.constant dense<0.000000e+00> : vector<16x8xf32>
    %195 = tpu.matmul %160, %194, %cst_129 {dimension_numbers = #tpu.dot_dimension_numbers<[1], [0], [0], [1], [0, 0, 1, 1], [], []>} : vector<16x16xf32>, vector<16x8xf32>, vector<16x8xf32> -> vector<16x8xf32>
    %c1_130 = arith.constant 1 : index
    %c1_131 = arith.constant 1 : index
    %c0_132 = arith.constant 0 : index
    %c0_133 = arith.constant 0 : index
    %196 = vector.load %arg4[%c1_130, %c1_131, %c0_132, %c0_133] : memref<2x2x16x8xf32, #tpu.memory_space<vmem>>, vector<1x1x16x8xf32>
    %197 = vector.shape_cast %196 : vector<1x1x16x8xf32> to vector<16x8xf32>
    %cst_134 = arith.constant dense<0.000000e+00> : vector<16x8xf32>
    %198 = tpu.matmul %160, %197, %cst_134 {dimension_numbers = #tpu.dot_dimension_numbers<[1], [0], [0], [1], [0, 0, 1, 1], [], []>} : vector<16x16xf32>, vector<16x8xf32>, vector<16x8xf32> -> vector<16x8xf32>
    %c1_135 = arith.constant 1 : index
    %c1_136 = arith.constant 1 : index
    %c0_137 = arith.constant 0 : index
    %c0_138 = arith.constant 0 : index
    %199 = vector.load %arg5[%c1_135, %c1_136, %c0_137, %c0_138] : memref<2x2x16x8xf32, #tpu.memory_space<vmem>>, vector<1x1x16x8xf32>
    %200 = vector.shape_cast %199 : vector<1x1x16x8xf32> to vector<16x8xf32>
    %cst_139 = arith.constant dense<0.000000e+00> : vector<16x8xf32>
    %201 = tpu.matmul %160, %200, %cst_139 {dimension_numbers = #tpu.dot_dimension_numbers<[1], [0], [0], [1], [0, 0, 1, 1], [], []>} : vector<16x16xf32>, vector<16x8xf32>, vector<16x8xf32> -> vector<16x8xf32>
    %202 = vector.shape_cast %195 : vector<16x8xf32> to vector<2x8x8xf32>
    %203 = vector.shape_cast %198 : vector<16x8xf32> to vector<2x8x8xf32>
    %204 = vector.shape_cast %201 : vector<16x8xf32> to vector<2x8x8xf32>
    "tpu.trace_start"() <{level = 10 : i32, message = "bqe,bke->bqk"}> : () -> ()
    %cst_140 = arith.constant dense<0.000000e+00> : vector<2x8x8xf32>
    %205 = tpu.matmul %202, %203, %cst_140 {dimension_numbers = #tpu.dot_dimension_numbers<[2], [2], [1], [1], [0, 0, 0, 1, 1, 1], [0], [0]>} : vector<2x8x8xf32>, vector<2x8x8xf32>, vector<2x8x8xf32> -> vector<2x8x8xf32>
    "tpu.trace_stop"() : () -> ()
    %cst_141 = arith.constant 0.353553385 : f32
    %206 = vector.broadcast %cst_141 : f32 to vector<2x8x8xf32>
    %207 = arith.mulf %205, %206 : vector<2x8x8xf32>
    %cst_142 = arith.constant dense<0xFF800000> : vector<2x8xf32>
    %208 = vector.multi_reduction <maximumf>, %207, %cst_142 [2] : vector<2x8x8xf32> to vector<2x8xf32>
    %209 = vector.shape_cast %208 : vector<2x8xf32> to vector<2x8x1xf32>
    %210 = vector.broadcast %209 : vector<2x8x1xf32> to vector<2x8x8xf32>
    %211 = arith.subf %207, %210 : vector<2x8x8xf32>
    %212 = math.exp %211 : vector<2x8x8xf32>
    %cst_143 = arith.constant dense<0.000000e+00> : vector<2x8xf32>
    %213 = vector.multi_reduction <add>, %212, %cst_143 [2] : vector<2x8x8xf32> to vector<2x8xf32>
    %214 = vector.shape_cast %213 : vector<2x8xf32> to vector<2x8x1xf32>
    %215 = tpu.reciprocal %214 {approx = true} : vector<2x8x1xf32> -> vector<2x8x1xf32>
    %216 = vector.broadcast %215 : vector<2x8x1xf32> to vector<2x8x8xf32>
    %217 = arith.mulf %212, %216 : vector<2x8x8xf32>
    "tpu.trace_start"() <{level = 10 : i32, message = "bqk,bke->bqe"}> : () -> ()
    %cst_144 = arith.constant dense<0.000000e+00> : vector<2x8x8xf32>
    %218 = tpu.matmul %217, %204, %cst_144 {dimension_numbers = #tpu.dot_dimension_numbers<[2], [1], [1], [2], [0, 0, 0, 1, 1, 2], [0], [0]>} : vector<2x8x8xf32>, vector<2x8x8xf32>, vector<2x8x8xf32> -> vector<2x8x8xf32>
    "tpu.trace_stop"() : () -> ()
    %219 = vector.shape_cast %218 : vector<2x8x8xf32> to vector<16x8xf32>
    %c1_145 = arith.constant 1 : index
    %c1_146 = arith.constant 1 : index
    %c0_147 = arith.constant 0 : index
    %c0_148 = arith.constant 0 : index
    %220 = vector.load %arg6[%c1_145, %c1_146, %c0_147, %c0_148] : memref<2x2x8x16xf32, #tpu.memory_space<vmem>>, vector<1x1x8x16xf32>
    %221 = vector.shape_cast %220 : vector<1x1x8x16xf32> to vector<8x16xf32>
    %cst_149 = arith.constant dense<0.000000e+00> : vector<16x16xf32>
    %222 = tpu.matmul %219, %221, %cst_149 {dimension_numbers = #tpu.dot_dimension_numbers<[1], [0], [0], [1], [0, 0, 1, 1], [], []>} : vector<16x8xf32>, vector<8x16xf32>, vector<16x16xf32> -> vector<16x16xf32>
    %223 = arith.addf %192, %222 : vector<16x16xf32>
    %224 = arith.addf %160, %223 : vector<16x16xf32>
    %c1_150 = arith.constant 1 : index
    %c0_151 = arith.constant 0 : index
    %c0_152 = arith.constant 0 : index
    %225 = vector.load %arg7[%c1_150, %c0_151, %c0_152] : memref<2x1x16xf32, #tpu.memory_space<vmem>>, vector<1x1x16xf32>
    %226 = vector.shape_cast %225 : vector<1x1x16xf32> to vector<1x16xf32>
    %c1_153 = arith.constant 1 : index
    %c0_154 = arith.constant 0 : index
    %c0_155 = arith.constant 0 : index
    %227 = vector.load %arg8[%c1_153, %c0_154, %c0_155] : memref<2x1x16xf32, #tpu.memory_space<vmem>>, vector<1x1x16xf32>
    %228 = vector.shape_cast %227 : vector<1x1x16xf32> to vector<1x16xf32>
    %cst_156 = arith.constant dense<0.000000e+00> : vector<16xf32>
    %229 = vector.multi_reduction <add>, %224, %cst_156 [1] : vector<16x16xf32> to vector<16xf32>
    %230 = vector.shape_cast %229 : vector<16xf32> to vector<16x1xf32>
    %cst_157 = arith.constant 1.600000e+01 : f32
    %231 = vector.broadcast %cst_157 : f32 to vector<16x1xf32>
    %232 = arith.divf %230, %231 : vector<16x1xf32>
    %233 = vector.broadcast %232 : vector<16x1xf32> to vector<16x16xf32>
    %234 = arith.subf %224, %233 : vector<16x16xf32>
    %235 = arith.mulf %234, %234 : vector<16x16xf32>
    %cst_158 = arith.constant dense<0.000000e+00> : vector<16xf32>
    %236 = vector.multi_reduction <add>, %235, %cst_158 [1] : vector<16x16xf32> to vector<16xf32>
    %237 = vector.shape_cast %236 : vector<16xf32> to vector<16x1xf32>
    %cst_159 = arith.constant 1.600000e+01 : f32
    %238 = vector.broadcast %cst_159 : f32 to vector<16x1xf32>
    %239 = arith.divf %237, %238 : vector<16x1xf32>
    %240 = vector.broadcast %232 : vector<16x1xf32> to vector<16x16xf32>
    %241 = arith.subf %224, %240 : vector<16x16xf32>
    %cst_160 = arith.constant 9.99999974E-6 : f32
    %242 = vector.broadcast %cst_160 : f32 to vector<16x1xf32>
    %243 = arith.addf %239, %242 : vector<16x1xf32>
    %244 = math.rsqrt %243 : vector<16x1xf32>
    %245 = vector.broadcast %244 : vector<16x1xf32> to vector<16x16xf32>
    %246 = arith.mulf %241, %245 : vector<16x16xf32>
    %247 = vector.broadcast %226 : vector<1x16xf32> to vector<16x16xf32>
    %248 = arith.mulf %246, %247 : vector<16x16xf32>
    %249 = vector.broadcast %228 : vector<1x16xf32> to vector<16x16xf32>
    %250 = arith.addf %248, %249 : vector<16x16xf32>
    %c1_161 = arith.constant 1 : index
    %c0_162 = arith.constant 0 : index
    %c0_163 = arith.constant 0 : index
    %251 = vector.load %arg9[%c1_161, %c0_162, %c0_163] : memref<2x16x32xf32, #tpu.memory_space<vmem>>, vector<1x16x32xf32>
    %252 = vector.shape_cast %251 : vector<1x16x32xf32> to vector<16x32xf32>
    %cst_164 = arith.constant dense<0.000000e+00> : vector<16x32xf32>
    %253 = tpu.matmul %250, %252, %cst_164 {dimension_numbers = #tpu.dot_dimension_numbers<[1], [0], [0], [1], [0, 0, 1, 1], [], []>} : vector<16x16xf32>, vector<16x32xf32>, vector<16x32xf32> -> vector<16x32xf32>
    %c1_165 = arith.constant 1 : index
    %c0_166 = arith.constant 0 : index
    %c0_167 = arith.constant 0 : index
    %254 = vector.load %arg10[%c1_165, %c0_166, %c0_167] : memref<2x1x32xf32, #tpu.memory_space<vmem>>, vector<1x1x32xf32>
    %255 = vector.shape_cast %254 : vector<1x1x32xf32> to vector<1x32xf32>
    %256 = vector.broadcast %255 : vector<1x32xf32> to vector<16x32xf32>
    %257 = arith.addf %253, %256 : vector<16x32xf32>
    %cst_168 = arith.constant 0.000000e+00 : f32
    %258 = vector.broadcast %cst_168 : f32 to vector<16x32xf32>
    %259 = arith.maximumf %257, %258 : vector<16x32xf32>
    %c1_169 = arith.constant 1 : index
    %c0_170 = arith.constant 0 : index
    %c0_171 = arith.constant 0 : index
    %260 = vector.load %arg11[%c1_169, %c0_170, %c0_171] : memref<2x32x16xf32, #tpu.memory_space<vmem>>, vector<1x32x16xf32>
    %261 = vector.shape_cast %260 : vector<1x32x16xf32> to vector<32x16xf32>
    %cst_172 = arith.constant dense<0.000000e+00> : vector<16x16xf32>
    %262 = tpu.matmul %259, %261, %cst_172 {dimension_numbers = #tpu.dot_dimension_numbers<[1], [0], [0], [1], [0, 0, 1, 1], [], []>} : vector<16x32xf32>, vector<32x16xf32>, vector<16x16xf32> -> vector<16x16xf32>
    %c1_173 = arith.constant 1 : index
    %c0_174 = arith.constant 0 : index
    %c0_175 = arith.constant 0 : index
    %263 = vector.load %arg12[%c1_173, %c0_174, %c0_175] : memref<2x1x16xf32, #tpu.memory_space<vmem>>, vector<1x1x16xf32>
    %264 = vector.shape_cast %263 : vector<1x1x16xf32> to vector<1x16xf32>
    %265 = vector.broadcast %264 : vector<1x16xf32> to vector<16x16xf32>
    %266 = arith.addf %262, %265 : vector<16x16xf32>
    %267 = arith.addf %250, %266 : vector<16x16xf32>
    %268 = vector.shape_cast %267 : vector<16x16xf32> to vector<2x8x16xf32>
    %cst_176 = arith.constant dense<0xFF800000> : vector<2x16xf32>
    %269 = vector.multi_reduction <maximumf>, %268, %cst_176 [1] : vector<2x8x16xf32> to vector<2x16xf32>
    %c0_177 = arith.constant 0 : index
    %c0_178 = arith.constant 0 : index
    %270 = vector.load %arg13[%c0_177, %c0_178] : memref<16x1xf32, #tpu.memory_space<vmem>>, vector<16x1xf32>
    %cst_179 = arith.constant dense<0.000000e+00> : vector<2x1xf32>
    %271 = tpu.matmul %269, %270, %cst_179 {dimension_numbers = #tpu.dot_dimension_numbers<[1], [0], [0], [1], [0, 0, 1, 1], [], []>} : vector<2x16xf32>, vector<16x1xf32>, vector<2x1xf32> -> vector<2x1xf32>
    %c0_180 = arith.constant 0 : index
    %c0_181 = arith.constant 0 : index
    %272 = vector.load %arg14[%c0_180, %c0_181] : memref<1x1xf32, #tpu.memory_space<vmem>>, vector<1x1xf32>
    %273 = vector.broadcast %272 : vector<1x1xf32> to vector<2x1xf32>
    %274 = arith.addf %271, %273 : vector<2x1xf32>
    %c0_182 = arith.constant 0 : index
    %c0_183 = arith.constant 0 : index
    %275 = vector.load %arg15[%c0_182, %c0_183] : memref<2x1xf32, #tpu.memory_space<vmem>>, vector<2x1xf32>
    tpu.vector_store %arg15[%c0_182, %c0_183], %274 {strides = array<i32>} : memref<2x1xf32, #tpu.memory_space<vmem>>, vector<2x1xf32>,
    return
  }
}

</mosaic_0001>

<llo_original>
// kernel: self_attention_model.1
$region0: #{self_attention_model.1}
  #allocation0 [shape = 'u32[]', space=smem, size = 0x4, offset = 0x4, fixed_abs, tag = 'smem constant byte address 0x4 - core index']
  #allocation1 [shape = 'u32[144,128]{1,0:T(1,128)}', space=vmem, size = 0x12000, scoped, tag = 'internal scratch']
  #allocation2 [shape = 'f32[1,1]{1,0:T(1,128)S(1)}', space=vmem, size = 0x200, scoped, tag = 'scoped memory for self_attention_model.1']
  %s0 = inlined_call_operand.vmem [shape: f32[2,8,16], index: 0, kind: input, shape index: {}]
  %s1 = inlined_call_operand.vmem [shape: f32[2,1,16], index: 1, kind: input, shape index: {}]
  %s2 = inlined_call_operand.vmem [shape: f32[2,1,16], index: 2, kind: input, shape index: {}]
  %s3 = inlined_call_operand.vmem [shape: f32[2,2,16,8], index: 3, kind: input, shape index: {}]
  %s4 = inlined_call_operand.vmem [shape: f32[2,2,16,8], index: 4, kind: input, shape index: {}]
  %s5 = inlined_call_operand.vmem [shape: f32[2,2,16,8], index: 5, kind: input, shape index: {}]
  %s6 = inlined_call_operand.vmem [shape: f32[2,2,8,16], index: 6, kind: input, shape index: {}]
  %s7 = inlined_call_operand.vmem [shape: f32[2,1,16], index: 7, kind: input, shape index: {}]
  %s8 = inlined_call_operand.vmem [shape: f32[2,1,16], index: 8, kind: input, shape index: {}]
  %s9 = inlined_call_operand.vmem [shape: f32[2,16,32], index: 9, kind: input, shape index: {}]
  %s10 = inlined_call_operand.vmem [shape: f32[2,1,32], index: 10, kind: input, shape index: {}]
  %s11 = inlined_call_operand.vmem [shape: f32[2,32,16], index: 11, kind: input, shape index: {}]
  %s12 = inlined_call_operand.vmem [shape: f32[2,1,16], index: 12, kind: input, shape index: {}]
  %s13 = inlined_call_operand.vmem [shape: f32[16,1], index: 13, kind: input, shape index: {}]
  %s14 = inlined_call_operand.<no memory space> [shape: f32[1,1], index: 14, kind: input, shape index: {}]
  %s15 = inlined_call_operand.vmem [shape: f32[2,1], index: 15, kind: output, shape index: {}]
  %s16 = sld [smem:[#allocation0]]
  $region70: #{self_attention_model.1} parent=0
    _
  %s18 = ssub.s32 1, %s16
  %s19 = scalar_select 0, %s18, %s16
  %v20 = vstv %s14
  %21 = vst [vmem:[#allocation2] sm:$0x1] %v20
  // Predicated region
  $region2: #{self_attention_model.1} parent=0 // pred_check
    _
  $region3: #{self_attention_model.1} parent=0 // pred_check_branch
    %23 = sbr.rel (0) target = $region5
  $region4: #{self_attention_model.1} parent=0 // pred_region
    _
  $region5: #{self_attention_model.1} parent=0 // pred_fallthru
    _
  // Predicated region
  $region6: #{self_attention_model.1} parent=0 // pred_check
    _
  $region7: #{self_attention_model.1} parent=0 // pred_check_branch
    %25 = sbr.rel (0) target = $region9
  $region8: #{self_attention_model.1} parent=0 // pred_region
    _
  $region9: #{self_attention_model.1} parent=0 // pred_fallthru
    _
  // Predicated region
  $region10: #{self_attention_model.1} parent=0 // pred_check
    _
  $region11: #{self_attention_model.1} parent=0 // pred_check_branch
    %27 = sbr.rel (0) target = $region13
  $region12: #{self_attention_model.1} parent=0 // pred_region
    _
  $region13: #{self_attention_model.1} parent=0 // pred_fallthru
    _
  // Predicated region
  $region14: #{self_attention_model.1} parent=0 // pred_check
    _
  $region15: #{self_attention_model.1} parent=0 // pred_check_branch
    %29 = sbr.rel (0) target = $region17
  $region16: #{self_attention_model.1} parent=0 // pred_region
    _
  $region17: #{self_attention_model.1} parent=0 // pred_fallthru
    _
  // Predicated region
  $region18: #{self_attention_model.1} parent=0 // pred_check
    _
  $region19: #{self_attention_model.1} parent=0 // pred_check_branch
    %31 = sbr.rel (0) target = $region21
  $region20: #{self_attention_model.1} parent=0 // pred_region
    _
  $region21: #{self_attention_model.1} parent=0 // pred_fallthru
    _
  // Predicated region
  $region22: #{self_attention_model.1} parent=0 // pred_check
    _
  $region23: #{self_attention_model.1} parent=0 // pred_check_branch
    %33 = sbr.rel (0) target = $region25
  $region24: #{self_attention_model.1} parent=0 // pred_region
    _
  $region25: #{self_attention_model.1} parent=0 // pred_fallthru
    _
  // Predicated region
  $region26: #{self_attention_model.1} parent=0 // pred_check
    _
  $region27: #{self_attention_model.1} parent=0 // pred_check_branch
    %35 = sbr.rel (0) target = $region29
  $region28: #{self_attention_model.1} parent=0 // pred_region
    _
  $region29: #{self_attention_model.1} parent=0 // pred_fallthru
    _
  // Predicated region
  $region30: #{self_attention_model.1} parent=0 // pred_check
    _
  $region31: #{self_attention_model.1} parent=0 // pred_check_branch
    %37 = sbr.rel (0) target = $region33
  $region32: #{self_attention_model.1} parent=0 // pred_region
    _
  $region33: #{self_attention_model.1} parent=0 // pred_fallthru
    _
  // Predicated region
  $region34: #{self_attention_model.1} parent=0 // pred_check
    _
  $region35: #{self_attention_model.1} parent=0 // pred_check_branch
    %39 = sbr.rel (0) target = $region37
  $region36: #{self_attention_model.1} parent=0 // pred_region
    _
  $region37: #{self_attention_model.1} parent=0 // pred_fallthru
    _
  // Predicated region
  $region38: #{self_attention_model.1} parent=0 // pred_check
    _
  $region39: #{self_attention_model.1} parent=0 // pred_check_branch
    %41 = sbr.rel (0) target = $region41
  $region40: #{self_attention_model.1} parent=0 // pred_region
    _
  $region41: #{self_attention_model.1} parent=0 // pred_fallthru
    _
  // Predicated region
  $region42: #{self_attention_model.1} parent=0 // pred_check
    _
  $region43: #{self_attention_model.1} parent=0 // pred_check_branch
    %43 = sbr.rel (0) target = $region45
  $region44: #{self_attention_model.1} parent=0 // pred_region
    _
  $region45: #{self_attention_model.1} parent=0 // pred_fallthru
    _
  // Predicated region
  $region46: #{self_attention_model.1} parent=0 // pred_check
    _
  $region47: #{self_attention_model.1} parent=0 // pred_check_branch
    %45 = sbr.rel (0) target = $region49
  $region48: #{self_attention_model.1} parent=0 // pred_region
    _
  $region49: #{self_attention_model.1} parent=0 // pred_fallthru
    _
  // Predicated region
  $region50: #{self_attention_model.1} parent=0 // pred_check
    _
  $region51: #{self_attention_model.1} parent=0 // pred_check_branch
    %47 = sbr.rel (0) target = $region53
  $region52: #{self_attention_model.1} parent=0 // pred_region
    _
  $region53: #{self_attention_model.1} parent=0 // pred_fallthru
    _
  // Predicated region
  $region54: #{self_attention_model.1} parent=0 // pred_check
    _
  $region55: #{self_attention_model.1} parent=0 // pred_check_branch
    %49 = sbr.rel (0) target = $region57
  $region56: #{self_attention_model.1} parent=0 // pred_region
    _
  $region57: #{self_attention_model.1} parent=0 // pred_fallthru
    _
  // Predicated region
  $region58: #{self_attention_model.1} parent=0 // pred_check
    _
  $region59: #{self_attention_model.1} parent=0 // pred_check_branch
    %51 = sbr.rel (0) target = $region61
  $region60: #{self_attention_model.1} parent=0 // pred_region
    _
  $region61: #{self_attention_model.1} parent=0 // pred_fallthru
    _
  %v52 = vld [vmem:[%s0] sm:$0xff]
  %v53 = vld [vmem:[%s0 + $0x8] sm:$0xff]
  %v54 = vld [vmem:[%s1] sm:$0x1]
  %v55 = vld [vmem:[%s2] sm:$0x1]
  %vm56 = vcmask 130048
  %v57 = vsel %vm56, %v52, 0.0
  %58 = vadd.xlane.f32.xlu0 %v57
  %v59 = vpop.xlane.xlu0 %58
  %v60 = vsel %vm56, %v53, 0.0
  %61 = vadd.xlane.f32.xlu0 %v60
  %v62 = vpop.xlane.xlu0 %61
  %v63 = vrcp.pop 16.0
  %v64 = vmul.f32 %v59, %v63
  %v65 = vmul.f32 %v62, %v63
  %v66 = vsub.f32 %v52, %v64
  %v67 = vsub.f32 %v53, %v65
  %v68 = vmul.f32 %v66, %v66
  %v69 = vmul.f32 %v67, %v67
  %v70 = vsel %vm56, %v68, 0.0
  %71 = vadd.xlane.f32.xlu0 %v70
  %v72 = vpop.xlane.xlu0 %71
  %v73 = vsel %vm56, %v69, 0.0
  %74 = vadd.xlane.f32.xlu0 %v73
  %v75 = vpop.xlane.xlu0 %74
  %v76 = vmul.f32 %v72, %v63
  %v77 = vmul.f32 %v75, %v63
  %v78 = vadd.f32 %v76, 1e-05
  %v79 = vadd.f32 %v77, 1e-05
  %v80 = vrsqrt.pop %v78
  %v81 = vrsqrt.pop %v79
  %v82 = vmul.f32 %v66, %v80
  %v83 = vmul.f32 %v67, %v81
  %v85 = vlaneseq
  %v86 = vshrl.u32 %v85, 7
  %v87 = vsub.s32 0, %v86
  %v88 = vrot.slane %v54, %v87
  %v90 = vmul.f32 %v82, %v88
  %v91 = vmul.f32 %v83, %v88
  %v93 = vlaneseq
  %v94 = vshrl.u32 %v93, 7
  %v95 = vsub.s32 0, %v94
  %v96 = vrot.slane %v55, %v95
  %v98 = vadd.f32 %v90, %v96
  %v99 = vadd.f32 %v91, %v96
  %v100 = vld [vmem:[%s3] sm:$0xff]
  %v101 = vld [vmem:[%s3 + $0x8] sm:$0xff]
  %v103 = vsel %vm56, %v98, 0
  %v106 = vsel %vm56, %v99, 0
  %108 = vmatprep.subr.mxu0 0.0
  %109 = vmatpush1.msra.mxu0 %v100
  %110 = vmatprep.subr.mxu0 0.0
  %111 = vmatpush1.msra.mxu0 %v101
  %112 = vmatprep.subr.mxu0 0.0
  %113 = vmatpush1.msra.mxu0 0.0
  %114 = vmatprep.subr.mxu0 0.0
  %115 = vmatpush1.msra.mxu0 0.0
  %116 = vmatprep.subr.mxu0 0.0
  %117 = vmatpush1.msra.mxu0 0.0
  %118 = vmatprep.subr.mxu0 0.0
  %119 = vmatpush1.msra.mxu0 0.0
  %120 = vmatprep.subr.mxu0 0.0
  %121 = vmatpush1.msra.mxu0 0.0
  %122 = vmatprep.subr.mxu0 0.0
  %123 = vmatpush1.msra.mxu0 0.0
  %124 = vmatprep.subr.mxu0 0.0
  %125 = vmatpush1.msra.mxu0 0.0
  %126 = vmatprep.subr.mxu0 0.0
  %127 = vmatpush1.msra.mxu0 0.0
  %128 = vmatprep.subr.mxu0 0.0
  %129 = vmatpush1.msra.mxu0 0.0
  %130 = vmatprep.subr.mxu0 0.0
  %131 = vmatpush1.msra.mxu0 0.0
  %132 = vmatprep.subr.mxu0 0.0
  %133 = vmatpush1.msra.mxu0 0.0
  %134 = vmatprep.subr.mxu0 0.0
  %135 = vmatpush1.msra.mxu0 0.0
  %136 = vmatprep.subr.mxu0 0.0
  %137 = vmatpush1.msra.mxu0 0.0
  %138 = vmatprep.subr.mxu0 0.0
  %139 = vmatpush1.msra.mxu0 0.0
  %140 = vmatprep.subr.mxu0 0.0
  %141 = vmatpush1.msra.mxu0 0.0
  %142 = vmatprep.subr.mxu0 0.0
  %143 = vmatpush1.msra.mxu0 0.0
  %144 = vmatprep.subr.mxu0 0.0
  %145 = vmatpush1.msra.mxu0 0.0
  %146 = vmatprep.subr.mxu0 0.0
  %147 = vmatpush1.msra.mxu0 0.0
  %148 = vmatprep.subr.mxu0 0.0
  %149 = vmatpush1.msra.mxu0 0.0
  %150 = vmatprep.subr.mxu0 0.0
  %151 = vmatpush1.msra.mxu0 0.0
  %152 = vmatprep.subr.mxu0 0.0
  %153 = vmatpush1.msra.mxu0 0.0
  %154 = vmatprep.subr.mxu0 0.0
  %155 = vmatpush1.msra.mxu0 0.0
  %156 = vmatprep.subr.mxu0 0.0
  %157 = vmatpush1.msra.mxu0 0.0
  %158 = vmatprep.subr.mxu0 0.0
  %159 = vmatpush1.msra.mxu0 0.0
  %160 = vmatprep.subr.mxu0 0.0
  %161 = vmatpush1.msra.mxu0 0.0
  %162 = vmatprep.subr.mxu0 0.0
  %163 = vmatpush1.msra.mxu0 0.0
  %164 = vmatprep.subr.mxu0 0.0
  %165 = vmatpush1.msra.mxu0 0.0
  %166 = vmatprep.subr.mxu0 0.0
  %167 = vmatpush1.msra.mxu0 0.0
  %168 = vmatprep.subr.mxu0 0.0
  %169 = vmatpush1.msra.mxu0 0.0
  %170 = vmatprep.subr.mxu0 0.0
  %171 = vmatpush1.msra.mxu0 0.0
  %172 = vmatprep.mubr.f32.mxu0 0.0
  %173 = vmatmul.mubr.f32.gmra.mrb[0].mxu0 %v103
  %v174 = vpop.f32.mrb[0].mxu0
  %v175 = vadd.f32 0.0, %v174
  %v176 = vpop.f32.mrb[0].mxu0
  %177 = vmatprep.mubr.f32.mxu0 0.0
  %178 = vmatmul.mubr.f32.gmra.mrb[0].mxu0 %v106
  %v179 = vpop.f32.mrb[0].mxu0
  %v180 = vadd.f32 0.0, %v179
  %v181 = vpop.f32.mrb[0].mxu0
  %182 = vdwg.mxu0
  %v183 = vld [vmem:[%s4] sm:$0xff]
  %v184 = vld [vmem:[%s4 + $0x8] sm:$0xff]
  %185 = vmatprep.subr.mxu0 0.0
  %186 = vmatpush1.msra.mxu0 %v183
  %187 = vmatprep.subr.mxu0 0.0
  %188 = vmatpush1.msra.mxu0 %v184
  %189 = vmatprep.subr.mxu0 0.0
  %190 = vmatpush1.msra.mxu0 0.0
  %191 = vmatprep.subr.mxu0 0.0
  %192 = vmatpush1.msra.mxu0 0.0
  %193 = vmatprep.subr.mxu0 0.0
  %194 = vmatpush1.msra.mxu0 0.0
  %195 = vmatprep.subr.mxu0 0.0
  %196 = vmatpush1.msra.mxu0 0.0
  %197 = vmatprep.subr.mxu0 0.0
  %198 = vmatpush1.msra.mxu0 0.0
  %199 = vmatprep.subr.mxu0 0.0
  %200 = vmatpush1.msra.mxu0 0.0
  %201 = vmatprep.subr.mxu0 0.0
  %202 = vmatpush1.msra.mxu0 0.0
  %203 = vmatprep.subr.mxu0 0.0
  %204 = vmatpush1.msra.mxu0 0.0
  %205 = vmatprep.subr.mxu0 0.0
  %206 = vmatpush1.msra.mxu0 0.0
  %207 = vmatprep.subr.mxu0 0.0
  %208 = vmatpush1.msra.mxu0 0.0
  %209 = vmatprep.subr.mxu0 0.0
  %210 = vmatpush1.msra.mxu0 0.0
  %211 = vmatprep.subr.mxu0 0.0
  %212 = vmatpush1.msra.mxu0 0.0
  %213 = vmatprep.subr.mxu0 0.0
  %214 = vmatpush1.msra.mxu0 0.0
  %215 = vmatprep.subr.mxu0 0.0
  %216 = vmatpush1.msra.mxu0 0.0
  %217 = vmatprep.subr.mxu0 0.0
  %218 = vmatpush1.msra.mxu0 0.0
  %219 = vmatprep.subr.mxu0 0.0
  %220 = vmatpush1.msra.mxu0 0.0
  %221 = vmatprep.subr.mxu0 0.0
  %222 = vmatpush1.msra.mxu0 0.0
  %223 = vmatprep.subr.mxu0 0.0
  %224 = vmatpush1.msra.mxu0 0.0
  %225 = vmatprep.subr.mxu0 0.0
  %226 = vmatpush1.msra.mxu0 0.0
  %227 = vmatprep.subr.mxu0 0.0
  %228 = vmatpush1.msra.mxu0 0.0
  %229 = vmatprep.subr.mxu0 0.0
  %230 = vmatpush1.msra.mxu0 0.0
  %231 = vmatprep.subr.mxu0 0.0
  %232 = vmatpush1.msra.mxu0 0.0
  %233 = vmatprep.subr.mxu0 0.0
  %234 = vmatpush1.msra.mxu0 0.0
  %235 = vmatprep.subr.mxu0 0.0
  %236 = vmatpush1.msra.mxu0 0.0
  %237 = vmatprep.subr.mxu0 0.0
  %238 = vmatpush1.msra.mxu0 0.0
  %239 = vmatprep.subr.mxu0 0.0
  %240 = vmatpush1.msra.mxu0 0.0
  %241 = vmatprep.subr.mxu0 0.0
  %242 = vmatpush1.msra.mxu0 0.0
  %243 = vmatprep.subr.mxu0 0.0
  %244 = vmatpush1.msra.mxu0 0.0
  %245 = vmatprep.subr.mxu0 0.0
  %246 = vmatpush1.msra.mxu0 0.0
  %247 = vmatprep.subr.mxu0 0.0
  %248 = vmatpush1.msra.mxu0 0.0
  %249 = vmatprep.mubr.f32.mxu0 0.0
  %250 = vmatmul.mubr.f32.gmra.mrb[0].mxu0 %v103
  %v251 = vpop.f32.mrb[0].mxu0
  %v252 = vadd.f32 0.0, %v251
  %v253 = vpop.f32.mrb[0].mxu0
  %254 = vmatprep.mubr.f32.mxu0 0.0
  %255 = vmatmul.mubr.f32.gmra.mrb[0].mxu0 %v106
  %v256 = vpop.f32.mrb[0].mxu0
  %v257 = vadd.f32 0.0, %v256
  %v258 = vpop.f32.mrb[0].mxu0
  %259 = vdwg.mxu0
  %v260 = vld [vmem:[%s5] sm:$0xff]
  %v261 = vld [vmem:[%s5 + $0x8] sm:$0xff]
  %262 = vmatprep.subr.mxu0 0.0
  %263 = vmatpush1.msra.mxu0 %v260
  %264 = vmatprep.subr.mxu0 0.0
  %265 = vmatpush1.msra.mxu0 %v261
  %266 = vmatprep.subr.mxu0 0.0
  %267 = vmatpush1.msra.mxu0 0.0
  %268 = vmatprep.subr.mxu0 0.0
  %269 = vmatpush1.msra.mxu0 0.0
  %270 = vmatprep.subr.mxu0 0.0
  %271 = vmatpush1.msra.mxu0 0.0
  %272 = vmatprep.subr.mxu0 0.0
  %273 = vmatpush1.msra.mxu0 0.0
  %274 = vmatprep.subr.mxu0 0.0
  %275 = vmatpush1.msra.mxu0 0.0
  %276 = vmatprep.subr.mxu0 0.0
  %277 = vmatpush1.msra.mxu0 0.0
  %278 = vmatprep.subr.mxu0 0.0
  %279 = vmatpush1.msra.mxu0 0.0
  %280 = vmatprep.subr.mxu0 0.0
  %281 = vmatpush1.msra.mxu0 0.0
  %282 = vmatprep.subr.mxu0 0.0
  %283 = vmatpush1.msra.mxu0 0.0
  %284 = vmatprep.subr.mxu0 0.0
  %285 = vmatpush1.msra.mxu0 0.0
  %286 = vmatprep.subr.mxu0 0.0
  %287 = vmatpush1.msra.mxu0 0.0
  %288 = vmatprep.subr.mxu0 0.0
  %289 = vmatpush1.msra.mxu0 0.0
  %290 = vmatprep.subr.mxu0 0.0
  %291 = vmatpush1.msra.mxu0 0.0
  %292 = vmatprep.subr.mxu0 0.0
  %293 = vmatpush1.msra.mxu0 0.0
  %294 = vmatprep.subr.mxu0 0.0
  %295 = vmatpush1.msra.mxu0 0.0
  %296 = vmatprep.subr.mxu0 0.0
  %297 = vmatpush1.msra.mxu0 0.0
  %298 = vmatprep.subr.mxu0 0.0
  %299 = vmatpush1.msra.mxu0 0.0
  %300 = vmatprep.subr.mxu0 0.0
  %301 = vmatpush1.msra.mxu0 0.0
  %302 = vmatprep.subr.mxu0 0.0
  %303 = vmatpush1.msra.mxu0 0.0
  %304 = vmatprep.subr.mxu0 0.0
  %305 = vmatpush1.msra.mxu0 0.0
  %306 = vmatprep.subr.mxu0 0.0
  %307 = vmatpush1.msra.mxu0 0.0
  %308 = vmatprep.subr.mxu0 0.0
  %309 = vmatpush1.msra.mxu0 0.0
  %310 = vmatprep.subr.mxu0 0.0
  %311 = vmatpush1.msra.mxu0 0.0
  %312 = vmatprep.subr.mxu0 0.0
  %313 = vmatpush1.msra.mxu0 0.0
  %314 = vmatprep.subr.mxu0 0.0
  %315 = vmatpush1.msra.mxu0 0.0
  %316 = vmatprep.subr.mxu0 0.0
  %317 = vmatpush1.msra.mxu0 0.0
  %318 = vmatprep.subr.mxu0 0.0
  %319 = vmatpush1.msra.mxu0 0.0
  %320 = vmatprep.subr.mxu0 0.0
  %321 = vmatpush1.msra.mxu0 0.0
  %322 = vmatprep.subr.mxu0 0.0
  %323 = vmatpush1.msra.mxu0 0.0
  %324 = vmatprep.subr.mxu0 0.0
  %325 = vmatpush1.msra.mxu0 0.0
  %326 = vmatprep.mubr.f32.mxu0 0.0
  %327 = vmatmul.mubr.f32.gmra.mrb[0].mxu0 %v103
  %v328 = vpop.f32.mrb[0].mxu0
  %v329 = vadd.f32 0.0, %v328
  %v330 = vpop.f32.mrb[0].mxu0
  %331 = vmatprep.mubr.f32.mxu0 0.0
  %332 = vmatmul.mubr.f32.gmra.mrb[0].mxu0 %v106
  %v333 = vpop.f32.mrb[0].mxu0
  %v334 = vadd.f32 0.0, %v333
  %v335 = vpop.f32.mrb[0].mxu0
  %336 = vdwg.mxu0
  %vm337 = vcmask 64512
  %v339 = vsel %vm337, %v175, 0
  %v342 = vsel %vm337, %v252, 0
  %344 = vmatprep.subr.mxu0 0.0
  %345 = vmatpush1.xpose.msra.mxu0 %v342
  %346 = vmatprep.subr.mxu0 0.0
  %347 = vmatpush1.xpose.msra.mxu0 0.0
  %348 = vmatprep.subr.mxu0 0.0
  %349 = vmatpush1.xpose.msra.mxu0 0.0
  %350 = vmatprep.subr.mxu0 0.0
  %351 = vmatpush1.xpose.msra.mxu0 0.0
  %352 = vmatprep.subr.mxu0 0.0
  %353 = vmatpush1.xpose.msra.mxu0 0.0
  %354 = vmatprep.subr.mxu0 0.0
  %355 = vmatpush1.xpose.msra.mxu0 0.0
  %356 = vmatprep.subr.mxu0 0.0
  %357 = vmatpush1.xpose.msra.mxu0 0.0
  %358 = vmatprep.subr.mxu0 0.0
  %359 = vmatpush1.xpose.msra.mxu0 0.0
  %360 = vmatprep.subr.mxu0 0.0
  %361 = vmatpush1.xpose.msra.mxu0 0.0
  %362 = vmatprep.subr.mxu0 0.0
  %363 = vmatpush1.xpose.msra.mxu0 0.0
  %364 = vmatprep.subr.mxu0 0.0
  %365 = vmatpush1.xpose.msra.mxu0 0.0
  %366 = vmatprep.subr.mxu0 0.0
  %367 = vmatpush1.xpose.msra.mxu0 0.0
  %368 = vmatprep.subr.mxu0 0.0
  %369 = vmatpush1.xpose.msra.mxu0 0.0
  %370 = vmatprep.subr.mxu0 0.0
  %371 = vmatpush1.xpose.msra.mxu0 0.0
  %372 = vmatprep.subr.mxu0 0.0
  %373 = vmatpush1.xpose.msra.mxu0 0.0
  %374 = vmatprep.subr.mxu0 0.0
  %375 = vmatpush1.xpose.msra.mxu0 0.0
  %376 = vmatprep.subr.mxu0 0.0
  %377 = vmatpush1.xpose.msra.mxu0 0.0
  %378 = vmatprep.subr.mxu0 0.0
  %379 = vmatpush1.xpose.msra.mxu0 0.0
  %380 = vmatprep.subr.mxu0 0.0
  %381 = vmatpush1.xpose.msra.mxu0 0.0
  %382 = vmatprep.subr.mxu0 0.0
  %383 = vmatpush1.xpose.msra.mxu0 0.0
  %384 = vmatprep.subr.mxu0 0.0
  %385 = vmatpush1.xpose.msra.mxu0 0.0
  %386 = vmatprep.subr.mxu0 0.0
  %387 = vmatpush1.xpose.msra.mxu0 0.0
  %388 = vmatprep.subr.mxu0 0.0
  %389 = vmatpush1.xpose.msra.mxu0 0.0
  %390 = vmatprep.subr.mxu0 0.0
  %391 = vmatpush1.xpose.msra.mxu0 0.0
  %392 = vmatprep.subr.mxu0 0.0
  %393 = vmatpush1.xpose.msra.mxu0 0.0
  %394 = vmatprep.subr.mxu0 0.0
  %395 = vmatpush1.xpose.msra.mxu0 0.0
  %396 = vmatprep.subr.mxu0 0.0
  %397 = vmatpush1.xpose.msra.mxu0 0.0
  %398 = vmatprep.subr.mxu0 0.0
  %399 = vmatpush1.xpose.msra.mxu0 0.0
  %400 = vmatprep.subr.mxu0 0.0
  %401 = vmatpush1.xpose.msra.mxu0 0.0
  %402 = vmatprep.subr.mxu0 0.0
  %403 = vmatpush1.xpose.msra.mxu0 0.0
  %404 = vmatprep.subr.mxu0 0.0
  %405 = vmatpush1.xpose.msra.mxu0 0.0
  %406 = vmatprep.subr.mxu0 0.0
  %407 = vmatpush1.xpose.msra.mxu0 0.0
  %408 = vmatprep.mubr.f32.mxu0 0.0
  %409 = vmatmul.mubr.f32.gmra.mrb[0].mxu0 %v339
  %v410 = vpop.f32.mrb[0].mxu0
  %v411 = vadd.f32 0.0, %v410
  %v412 = vpop.f32.mrb[0].mxu0
  %413 = vdwg.mxu0
  %v415 = vsel %vm337, %v180, 0
  %v418 = vsel %vm337, %v257, 0
  %420 = vmatprep.subr.mxu0 0.0
  %421 = vmatpush1.xpose.msra.mxu0 %v418
  %422 = vmatprep.subr.mxu0 0.0
  %423 = vmatpush1.xpose.msra.mxu0 0.0
  %424 = vmatprep.subr.mxu0 0.0
  %425 = vmatpush1.xpose.msra.mxu0 0.0
  %426 = vmatprep.subr.mxu0 0.0
  %427 = vmatpush1.xpose.msra.mxu0 0.0
  %428 = vmatprep.subr.mxu0 0.0
  %429 = vmatpush1.xpose.msra.mxu0 0.0
  %430 = vmatprep.subr.mxu0 0.0
  %431 = vmatpush1.xpose.msra.mxu0 0.0
  %432 = vmatprep.subr.mxu0 0.0
  %433 = vmatpush1.xpose.msra.mxu0 0.0
  %434 = vmatprep.subr.mxu0 0.0
  %435 = vmatpush1.xpose.msra.mxu0 0.0
  %436 = vmatprep.subr.mxu0 0.0
  %437 = vmatpush1.xpose.msra.mxu0 0.0
  %438 = vmatprep.subr.mxu0 0.0
  %439 = vmatpush1.xpose.msra.mxu0 0.0
  %440 = vmatprep.subr.mxu0 0.0
  %441 = vmatpush1.xpose.msra.mxu0 0.0
  %442 = vmatprep.subr.mxu0 0.0
  %443 = vmatpush1.xpose.msra.mxu0 0.0
  %444 = vmatprep.subr.mxu0 0.0
  %445 = vmatpush1.xpose.msra.mxu0 0.0
  %446 = vmatprep.subr.mxu0 0.0
  %447 = vmatpush1.xpose.msra.mxu0 0.0
  %448 = vmatprep.subr.mxu0 0.0
  %449 = vmatpush1.xpose.msra.mxu0 0.0
  %450 = vmatprep.subr.mxu0 0.0
  %451 = vmatpush1.xpose.msra.mxu0 0.0
  %452 = vmatprep.subr.mxu0 0.0
  %453 = vmatpush1.xpose.msra.mxu0 0.0
  %454 = vmatprep.subr.mxu0 0.0
  %455 = vmatpush1.xpose.msra.mxu0 0.0
  %456 = vmatprep.subr.mxu0 0.0
  %457 = vmatpush1.xpose.msra.mxu0 0.0
  %458 = vmatprep.subr.mxu0 0.0
  %459 = vmatpush1.xpose.msra.mxu0 0.0
  %460 = vmatprep.subr.mxu0 0.0
  %461 = vmatpush1.xpose.msra.mxu0 0.0
  %462 = vmatprep.subr.mxu0 0.0
  %463 = vmatpush1.xpose.msra.mxu0 0.0
  %464 = vmatprep.subr.mxu0 0.0
  %465 = vmatpush1.xpose.msra.mxu0 0.0
  %466 = vmatprep.subr.mxu0 0.0
  %467 = vmatpush1.xpose.msra.mxu0 0.0
  %468 = vmatprep.subr.mxu0 0.0
  %469 = vmatpush1.xpose.msra.mxu0 0.0
  %470 = vmatprep.subr.mxu0 0.0
  %471 = vmatpush1.xpose.msra.mxu0 0.0
  %472 = vmatprep.subr.mxu0 0.0
  %473 = vmatpush1.xpose.msra.mxu0 0.0
  %474 = vmatprep.subr.mxu0 0.0
  %475 = vmatpush1.xpose.msra.mxu0 0.0
  %476 = vmatprep.subr.mxu0 0.0
  %477 = vmatpush1.xpose.msra.mxu0 0.0
  %478 = vmatprep.subr.mxu0 0.0
  %479 = vmatpush1.xpose.msra.mxu0 0.0
  %480 = vmatprep.subr.mxu0 0.0
  %481 = vmatpush1.xpose.msra.mxu0 0.0
  %482 = vmatprep.subr.mxu0 0.0
  %483 = vmatpush1.xpose.msra.mxu0 0.0
  %484 = vmatprep.mubr.f32.mxu0 0.0
  %485 = vmatmul.mubr.f32.gmra.mrb[0].mxu0 %v415
  %v486 = vpop.f32.mrb[0].mxu0
  %v487 = vadd.f32 0.0, %v486
  %v488 = vpop.f32.mrb[0].mxu0
  %489 = vdwg.mxu0
  %v490 = vmul.f32 %v411, 0.35355338
  %v491 = vmul.f32 %v487, 0.35355338
  %v492 = vsel %vm337, %v490, -inf
  %493 = vmax.xlane.f32.xlu0 %v492
  %v494 = vpop.xlane.xlu0 %493
  %v495 = vsel %vm337, %v491, -inf
  %496 = vmax.xlane.f32.xlu0 %v495
  %v497 = vpop.xlane.xlu0 %496
  %v498 = vsub.f32 %v490, %v494
  %v499 = vsub.f32 %v491, %v497
  %v500 = vmul.f32 %v498, 1.442695
  %v501 = vpow.pop %v500
  %v502 = vmul.f32 %v499, 1.442695
  %v503 = vpow.pop %v502
  %v504 = vsel %vm337, %v501, 0.0
  %505 = vadd.xlane.f32.xlu0 %v504
  %v506 = vpop.xlane.xlu0 %505
  %v507 = vsel %vm337, %v503, 0.0
  %508 = vadd.xlane.f32.xlu0 %v507
  %v509 = vpop.xlane.xlu0 %508
  %v510 = vrcp.pop %v506
  %v511 = vrcp.pop %v509
  %v512 = vmul.f32 %v501, %v510
  %v513 = vmul.f32 %v503, %v511
  %v515 = vsel %vm337, %v512, 0
  %517 = vmatprep.subr.mxu0 0.0
  %518 = vmatpush1.msra.mxu0 %v329
  %519 = vmatprep.subr.mxu0 0.0
  %520 = vmatpush1.msra.mxu0 0.0
  %521 = vmatprep.subr.mxu0 0.0
  %522 = vmatpush1.msra.mxu0 0.0
  %523 = vmatprep.subr.mxu0 0.0
  %524 = vmatpush1.msra.mxu0 0.0
  %525 = vmatprep.subr.mxu0 0.0
  %526 = vmatpush1.msra.mxu0 0.0
  %527 = vmatprep.subr.mxu0 0.0
  %528 = vmatpush1.msra.mxu0 0.0
  %529 = vmatprep.subr.mxu0 0.0
  %530 = vmatpush1.msra.mxu0 0.0
  %531 = vmatprep.subr.mxu0 0.0
  %532 = vmatpush1.msra.mxu0 0.0
  %533 = vmatprep.subr.mxu0 0.0
  %534 = vmatpush1.msra.mxu0 0.0
  %535 = vmatprep.subr.mxu0 0.0
  %536 = vmatpush1.msra.mxu0 0.0
  %537 = vmatprep.subr.mxu0 0.0
  %538 = vmatpush1.msra.mxu0 0.0
  %539 = vmatprep.subr.mxu0 0.0
  %540 = vmatpush1.msra.mxu0 0.0
  %541 = vmatprep.subr.mxu0 0.0
  %542 = vmatpush1.msra.mxu0 0.0
  %543 = vmatprep.subr.mxu0 0.0
  %544 = vmatpush1.msra.mxu0 0.0
  %545 = vmatprep.subr.mxu0 0.0
  %546 = vmatpush1.msra.mxu0 0.0
  %547 = vmatprep.subr.mxu0 0.0
  %548 = vmatpush1.msra.mxu0 0.0
  %549 = vmatprep.subr.mxu0 0.0
  %550 = vmatpush1.msra.mxu0 0.0
  %551 = vmatprep.subr.mxu0 0.0
  %552 = vmatpush1.msra.mxu0 0.0
  %553 = vmatprep.subr.mxu0 0.0
  %554 = vmatpush1.msra.mxu0 0.0
  %555 = vmatprep.subr.mxu0 0.0
  %556 = vmatpush1.msra.mxu0 0.0
  %557 = vmatprep.subr.mxu0 0.0
  %558 = vmatpush1.msra.mxu0 0.0
  %559 = vmatprep.subr.mxu0 0.0
  %560 = vmatpush1.msra.mxu0 0.0
  %561 = vmatprep.subr.mxu0 0.0
  %562 = vmatpush1.msra.mxu0 0.0
  %563 = vmatprep.subr.mxu0 0.0
  %564 = vmatpush1.msra.mxu0 0.0
  %565 = vmatprep.subr.mxu0 0.0
  %566 = vmatpush1.msra.mxu0 0.0
  %567 = vmatprep.subr.mxu0 0.0
  %568 = vmatpush1.msra.mxu0 0.0
  %569 = vmatprep.subr.mxu0 0.0
  %570 = vmatpush1.msra.mxu0 0.0
  %571 = vmatprep.subr.mxu0 0.0
  %572 = vmatpush1.msra.mxu0 0.0
  %573 = vmatprep.subr.mxu0 0.0
  %574 = vmatpush1.msra.mxu0 0.0
  %575 = vmatprep.subr.mxu0 0.0
  %576 = vmatpush1.msra.mxu0 0.0
  %577 = vmatprep.subr.mxu0 0.0
  %578 = vmatpush1.msra.mxu0 0.0
  %579 = vmatprep.subr.mxu0 0.0
  %580 = vmatpush1.msra.mxu0 0.0
  %581 = vmatprep.mubr.f32.mxu0 0.0
  %582 = vmatmul.mubr.f32.gmra.mrb[0].mxu0 %v515
  %v583 = vpop.f32.mrb[0].mxu0
  %v584 = vadd.f32 0.0, %v583
  %v585 = vpop.f32.mrb[0].mxu0
  %586 = vdwg.mxu0
  %v588 = vsel %vm337, %v513, 0
  %590 = vmatprep.subr.mxu0 0.0
  %591 = vmatpush1.msra.mxu0 %v334
  %592 = vmatprep.subr.mxu0 0.0
  %593 = vmatpush1.msra.mxu0 0.0
  %594 = vmatprep.subr.mxu0 0.0
  %595 = vmatpush1.msra.mxu0 0.0
  %596 = vmatprep.subr.mxu0 0.0
  %597 = vmatpush1.msra.mxu0 0.0
  %598 = vmatprep.subr.mxu0 0.0
  %599 = vmatpush1.msra.mxu0 0.0
  %600 = vmatprep.subr.mxu0 0.0
  %601 = vmatpush1.msra.mxu0 0.0
  %602 = vmatprep.subr.mxu0 0.0
  %603 = vmatpush1.msra.mxu0 0.0
  %604 = vmatprep.subr.mxu0 0.0
  %605 = vmatpush1.msra.mxu0 0.0
  %606 = vmatprep.subr.mxu0 0.0
  %607 = vmatpush1.msra.mxu0 0.0
  %608 = vmatprep.subr.mxu0 0.0
  %609 = vmatpush1.msra.mxu0 0.0
  %610 = vmatprep.subr.mxu0 0.0
  %611 = vmatpush1.msra.mxu0 0.0
  %612 = vmatprep.subr.mxu0 0.0
  %613 = vmatpush1.msra.mxu0 0.0
  %614 = vmatprep.subr.mxu0 0.0
  %615 = vmatpush1.msra.mxu0 0.0
  %616 = vmatprep.subr.mxu0 0.0
  %617 = vmatpush1.msra.mxu0 0.0
  %618 = vmatprep.subr.mxu0 0.0
  %619 = vmatpush1.msra.mxu0 0.0
  %620 = vmatprep.subr.mxu0 0.0
  %621 = vmatpush1.msra.mxu0 0.0
  %622 = vmatprep.subr.mxu0 0.0
  %623 = vmatpush1.msra.mxu0 0.0
  %624 = vmatprep.subr.mxu0 0.0
  %625 = vmatpush1.msra.mxu0 0.0
  %626 = vmatprep.subr.mxu0 0.0
  %627 = vmatpush1.msra.mxu0 0.0
  %628 = vmatprep.subr.mxu0 0.0
  %629 = vmatpush1.msra.mxu0 0.0
  %630 = vmatprep.subr.mxu0 0.0
  %631 = vmatpush1.msra.mxu0 0.0
  %632 = vmatprep.subr.mxu0 0.0
  %633 = vmatpush1.msra.mxu0 0.0
  %634 = vmatprep.subr.mxu0 0.0
  %635 = vmatpush1.msra.mxu0 0.0
  %636 = vmatprep.subr.mxu0 0.0
  %637 = vmatpush1.msra.mxu0 0.0
  %638 = vmatprep.subr.mxu0 0.0
  %639 = vmatpush1.msra.mxu0 0.0
  %640 = vmatprep.subr.mxu0 0.0
  %641 = vmatpush1.msra.mxu0 0.0
  %642 = vmatprep.subr.mxu0 0.0
  %643 = vmatpush1.msra.mxu0 0.0
  %644 = vmatprep.subr.mxu0 0.0
  %645 = vmatpush1.msra.mxu0 0.0
  %646 = vmatprep.subr.mxu0 0.0
  %647 = vmatpush1.msra.mxu0 0.0
  %648 = vmatprep.subr.mxu0 0.0
  %649 = vmatpush1.msra.mxu0 0.0
  %650 = vmatprep.subr.mxu0 0.0
  %651 = vmatpush1.msra.mxu0 0.0
  %652 = vmatprep.subr.mxu0 0.0
  %653 = vmatpush1.msra.mxu0 0.0
  %654 = vmatprep.mubr.f32.mxu0 0.0
  %655 = vmatmul.mubr.f32.gmra.mrb[0].mxu0 %v588
  %v656 = vpop.f32.mrb[0].mxu0
  %v657 = vadd.f32 0.0, %v656
  %v658 = vpop.f32.mrb[0].mxu0
  %659 = vdwg.mxu0
  %v660 = vld [vmem:[%s6] sm:$0xff]
  %s661 = scalar_lea.vmem %s3, 16
  %v662 = vld [vmem:[%s661] sm:$0xff]
  %v663 = vld [vmem:[%s661 + $0x8] sm:$0xff]
  %664 = vmatprep.subr.mxu0 0.0
  %665 = vmatpush1.msra.mxu0 %v662
  %666 = vmatprep.subr.mxu0 0.0
  %667 = vmatpush1.msra.mxu0 %v663
  %668 = vmatprep.subr.mxu0 0.0
  %669 = vmatpush1.msra.mxu0 0.0
  %670 = vmatprep.subr.mxu0 0.0
  %671 = vmatpush1.msra.mxu0 0.0
  %672 = vmatprep.subr.mxu0 0.0
  %673 = vmatpush1.msra.mxu0 0.0
  %674 = vmatprep.subr.mxu0 0.0
  %675 = vmatpush1.msra.mxu0 0.0
  %676 = vmatprep.subr.mxu0 0.0
  %677 = vmatpush1.msra.mxu0 0.0
  %678 = vmatprep.subr.mxu0 0.0
  %679 = vmatpush1.msra.mxu0 0.0
  %680 = vmatprep.subr.mxu0 0.0
  %681 = vmatpush1.msra.mxu0 0.0
  %682 = vmatprep.subr.mxu0 0.0
  %683 = vmatpush1.msra.mxu0 0.0
  %684 = vmatprep.subr.mxu0 0.0
  %685 = vmatpush1.msra.mxu0 0.0
  %686 = vmatprep.subr.mxu0 0.0
  %687 = vmatpush1.msra.mxu0 0.0
  %688 = vmatprep.subr.mxu0 0.0
  %689 = vmatpush1.msra.mxu0 0.0
  %690 = vmatprep.subr.mxu0 0.0
  %691 = vmatpush1.msra.mxu0 0.0
  %692 = vmatprep.subr.mxu0 0.0
  %693 = vmatpush1.msra.mxu0 0.0
  %694 = vmatprep.subr.mxu0 0.0
  %695 = vmatpush1.msra.mxu0 0.0
  %696 = vmatprep.subr.mxu0 0.0
  %697 = vmatpush1.msra.mxu0 0.0
  %698 = vmatprep.subr.mxu0 0.0
  %699 = vmatpush1.msra.mxu0 0.0
  %700 = vmatprep.subr.mxu0 0.0
  %701 = vmatpush1.msra.mxu0 0.0
  %702 = vmatprep.subr.mxu0 0.0
  %703 = vmatpush1.msra.mxu0 0.0
  %704 = vmatprep.subr.mxu0 0.0
  %705 = vmatpush1.msra.mxu0 0.0
  %706 = vmatprep.subr.mxu0 0.0
  %707 = vmatpush1.msra.mxu0 0.0
  %708 = vmatprep.subr.mxu0 0.0
  %709 = vmatpush1.msra.mxu0 0.0
  %710 = vmatprep.subr.mxu0 0.0
  %711 = vmatpush1.msra.mxu0 0.0
  %712 = vmatprep.subr.mxu0 0.0
  %713 = vmatpush1.msra.mxu0 0.0
  %714 = vmatprep.subr.mxu0 0.0
  %715 = vmatpush1.msra.mxu0 0.0
  %716 = vmatprep.subr.mxu0 0.0
  %717 = vmatpush1.msra.mxu0 0.0
  %718 = vmatprep.subr.mxu0 0.0
  %719 = vmatpush1.msra.mxu0 0.0
  %720 = vmatprep.subr.mxu0 0.0
  %721 = vmatpush1.msra.mxu0 0.0
  %722 = vmatprep.subr.mxu0 0.0
  %723 = vmatpush1.msra.mxu0 0.0
  %724 = vmatprep.subr.mxu0 0.0
  %725 = vmatpush1.msra.mxu0 0.0
  %726 = vmatprep.subr.mxu0 0.0
  %727 = vmatpush1.msra.mxu0 0.0
  %728 = vmatprep.mubr.f32.mxu0 0.0
  %729 = vmatmul.mubr.f32.gmra.mrb[0].mxu0 %v103
  %v730 = vpop.f32.mrb[0].mxu0
  %v731 = vadd.f32 0.0, %v730
  %v732 = vpop.f32.mrb[0].mxu0
  %733 = vmatprep.mubr.f32.mxu0 0.0
  %734 = vmatmul.mubr.f32.gmra.mrb[0].mxu0 %v106
  %v735 = vpop.f32.mrb[0].mxu0
  %v736 = vadd.f32 0.0, %v735
  %v737 = vpop.f32.mrb[0].mxu0
  %738 = vdwg.mxu0
  %s739 = scalar_lea.vmem %s4, 16
  %v740 = vld [vmem:[%s739] sm:$0xff]
  %v741 = vld [vmem:[%s739 + $0x8] sm:$0xff]
  %742 = vmatprep.subr.mxu0 0.0
  %743 = vmatpush1.msra.mxu0 %v740
  %744 = vmatprep.subr.mxu0 0.0
  %745 = vmatpush1.msra.mxu0 %v741
  %746 = vmatprep.subr.mxu0 0.0
  %747 = vmatpush1.msra.mxu0 0.0
  %748 = vmatprep.subr.mxu0 0.0
  %749 = vmatpush1.msra.mxu0 0.0
  %750 = vmatprep.subr.mxu0 0.0
  %751 = vmatpush1.msra.mxu0 0.0
  %752 = vmatprep.subr.mxu0 0.0
  %753 = vmatpush1.msra.mxu0 0.0
  %754 = vmatprep.subr.mxu0 0.0
  %755 = vmatpush1.msra.mxu0 0.0
  %756 = vmatprep.subr.mxu0 0.0
  %757 = vmatpush1.msra.mxu0 0.0
  %758 = vmatprep.subr.mxu0 0.0
  %759 = vmatpush1.msra.mxu0 0.0
  %760 = vmatprep.subr.mxu0 0.0
  %761 = vmatpush1.msra.mxu0 0.0
  %762 = vmatprep.subr.mxu0 0.0
  %763 = vmatpush1.msra.mxu0 0.0
  %764 = vmatprep.subr.mxu0 0.0
  %765 = vmatpush1.msra.mxu0 0.0
  %766 = vmatprep.subr.mxu0 0.0
  %767 = vmatpush1.msra.mxu0 0.0
  %768 = vmatprep.subr.mxu0 0.0
  %769 = vmatpush1.msra.mxu0 0.0
  %770 = vmatprep.subr.mxu0 0.0
  %771 = vmatpush1.msra.mxu0 0.0
  %772 = vmatprep.subr.mxu0 0.0
  %773 = vmatpush1.msra.mxu0 0.0
  %774 = vmatprep.subr.mxu0 0.0
  %775 = vmatpush1.msra.mxu0 0.0
  %776 = vmatprep.subr.mxu0 0.0
  %777 = vmatpush1.msra.mxu0 0.0
  %778 = vmatprep.subr.mxu0 0.0
  %779 = vmatpush1.msra.mxu0 0.0
  %780 = vmatprep.subr.mxu0 0.0
  %781 = vmatpush1.msra.mxu0 0.0
  %782 = vmatprep.subr.mxu0 0.0
  %783 = vmatpush1.msra.mxu0 0.0
  %784 = vmatprep.subr.mxu0 0.0
  %785 = vmatpush1.msra.mxu0 0.0
  %786 = vmatprep.subr.mxu0 0.0
  %787 = vmatpush1.msra.mxu0 0.0
  %788 = vmatprep.subr.mxu0 0.0
  %789 = vmatpush1.msra.mxu0 0.0
  %790 = vmatprep.subr.mxu0 0.0
  %791 = vmatpush1.msra.mxu0 0.0
  %792 = vmatprep.subr.mxu0 0.0
  %793 = vmatpush1.msra.mxu0 0.0
  %794 = vmatprep.subr.mxu0 0.0
  %795 = vmatpush1.msra.mxu0 0.0
  %796 = vmatprep.subr.mxu0 0.0
  %797 = vmatpush1.msra.mxu0 0.0
  %798 = vmatprep.subr.mxu0 0.0
  %799 = vmatpush1.msra.mxu0 0.0
  %800 = vmatprep.subr.mxu0 0.0
  %801 = vmatpush1.msra.mxu0 0.0
  %802 = vmatprep.subr.mxu0 0.0
  %803 = vmatpush1.msra.mxu0 0.0
  %804 = vmatprep.subr.mxu0 0.0
  %805 = vmatpush1.msra.mxu0 0.0
  %806 = vmatprep.mubr.f32.mxu0 0.0
  %807 = vmatmul.mubr.f32.gmra.mrb[0].mxu0 %v103
  %v808 = vpop.f32.mrb[0].mxu0
  %v809 = vadd.f32 0.0, %v808
  %v810 = vpop.f32.mrb[0].mxu0
  %811 = vmatprep.mubr.f32.mxu0 0.0
  %812 = vmatmul.mubr.f32.gmra.mrb[0].mxu0 %v106
  %v813 = vpop.f32.mrb[0].mxu0
  %v814 = vadd.f32 0.0, %v813
  %v815 = vpop.f32.mrb[0].mxu0
  %816 = vdwg.mxu0
  %s817 = scalar_lea.vmem %s5, 16
  %v818 = vld [vmem:[%s817] sm:$0xff]
  %v819 = vld [vmem:[%s817 + $0x8] sm:$0xff]
  %820 = vmatprep.subr.mxu0 0.0
  %821 = vmatpush1.msra.mxu0 %v818
  %822 = vmatprep.subr.mxu0 0.0
  %823 = vmatpush1.msra.mxu0 %v819
  %824 = vmatprep.subr.mxu0 0.0
  %825 = vmatpush1.msra.mxu0 0.0
  %826 = vmatprep.subr.mxu0 0.0
  %827 = vmatpush1.msra.mxu0 0.0
  %828 = vmatprep.subr.mxu0 0.0
  %829 = vmatpush1.msra.mxu0 0.0
  %830 = vmatprep.subr.mxu0 0.0
  %831 = vmatpush1.msra.mxu0 0.0
  %832 = vmatprep.subr.mxu0 0.0
  %833 = vmatpush1.msra.mxu0 0.0
  %834 = vmatprep.subr.mxu0 0.0
  %835 = vmatpush1.msra.mxu0 0.0
  %836 = vmatprep.subr.mxu0 0.0
  %837 = vmatpush1.msra.mxu0 0.0
  %838 = vmatprep.subr.mxu0 0.0
  %839 = vmatpush1.msra.mxu0 0.0
  %840 = vmatprep.subr.mxu0 0.0
  %841 = vmatpush1.msra.mxu0 0.0
  %842 = vmatprep.subr.mxu0 0.0
  %843 = vmatpush1.msra.mxu0 0.0
  %844 = vmatprep.subr.mxu0 0.0
  %845 = vmatpush1.msra.mxu0 0.0
  %846 = vmatprep.subr.mxu0 0.0
  %847 = vmatpush1.msra.mxu0 0.0
  %848 = vmatprep.subr.mxu0 0.0
  %849 = vmatpush1.msra.mxu0 0.0
  %850 = vmatprep.subr.mxu0 0.0
  %851 = vmatpush1.msra.mxu0 0.0
  %852 = vmatprep.subr.mxu0 0.0
  %853 = vmatpush1.msra.mxu0 0.0
  %854 = vmatprep.subr.mxu0 0.0
  %855 = vmatpush1.msra.mxu0 0.0
  %856 = vmatprep.subr.mxu0 0.0
  %857 = vmatpush1.msra.mxu0 0.0
  %858 = vmatprep.subr.mxu0 0.0
  %859 = vmatpush1.msra.mxu0 0.0
  %860 = vmatprep.subr.mxu0 0.0
  %861 = vmatpush1.msra.mxu0 0.0
  %862 = vmatprep.subr.mxu0 0.0
  %863 = vmatpush1.msra.mxu0 0.0
  %864 = vmatprep.subr.mxu0 0.0
  %865 = vmatpush1.msra.mxu0 0.0
  %866 = vmatprep.subr.mxu0 0.0
  %867 = vmatpush1.msra.mxu0 0.0
  %868 = vmatprep.subr.mxu0 0.0
  %869 = vmatpush1.msra.mxu0 0.0
  %870 = vmatprep.subr.mxu0 0.0
  %871 = vmatpush1.msra.mxu0 0.0
  %872 = vmatprep.subr.mxu0 0.0
  %873 = vmatpush1.msra.mxu0 0.0
  %874 = vmatprep.subr.mxu0 0.0
  %875 = vmatpush1.msra.mxu0 0.0
  %876 = vmatprep.subr.mxu0 0.0
  %877 = vmatpush1.msra.mxu0 0.0
  %878 = vmatprep.subr.mxu0 0.0
  %879 = vmatpush1.msra.mxu0 0.0
  %880 = vmatprep.subr.mxu0 0.0
  %881 = vmatpush1.msra.mxu0 0.0
  %882 = vmatprep.subr.mxu0 0.0
  %883 = vmatpush1.msra.mxu0 0.0
  %884 = vmatprep.mubr.f32.mxu0 0.0
  %885 = vmatmul.mubr.f32.gmra.mrb[0].mxu0 %v103
  %v886 = vpop.f32.mrb[0].mxu0
  %v887 = vadd.f32 0.0, %v886
  %v888 = vpop.f32.mrb[0].mxu0
  %889 = vmatprep.mubr.f32.mxu0 0.0
  %890 = vmatmul.mubr.f32.gmra.mrb[0].mxu0 %v106
  %v891 = vpop.f32.mrb[0].mxu0
  %v892 = vadd.f32 0.0, %v891
  %v893 = vpop.f32.mrb[0].mxu0
  %894 = vdwg.mxu0
  %v896 = vsel %vm337, %v731, 0
  %v899 = vsel %vm337, %v809, 0
  %901 = vmatprep.subr.mxu0 0.0
  %902 = vmatpush1.xpose.msra.mxu0 %v899
  %903 = vmatprep.subr.mxu0 0.0
  %904 = vmatpush1.xpose.msra.mxu0 0.0
  %905 = vmatprep.subr.mxu0 0.0
  %906 = vmatpush1.xpose.msra.mxu0 0.0
  %907 = vmatprep.subr.mxu0 0.0
  %908 = vmatpush1.xpose.msra.mxu0 0.0
  %909 = vmatprep.subr.mxu0 0.0
  %910 = vmatpush1.xpose.msra.mxu0 0.0
  %911 = vmatprep.subr.mxu0 0.0
  %912 = vmatpush1.xpose.msra.mxu0 0.0
  %913 = vmatprep.subr.mxu0 0.0
  %914 = vmatpush1.xpose.msra.mxu0 0.0
  %915 = vmatprep.subr.mxu0 0.0
  %916 = vmatpush1.xpose.msra.mxu0 0.0
  %917 = vmatprep.subr.mxu0 0.0
  %918 = vmatpush1.xpose.msra.mxu0 0.0
  %919 = vmatprep.subr.mxu0 0.0
  %920 = vmatpush1.xpose.msra.mxu0 0.0
  %921 = vmatprep.subr.mxu0 0.0
  %922 = vmatpush1.xpose.msra.mxu0 0.0
  %923 = vmatprep.subr.mxu0 0.0
  %924 = vmatpush1.xpose.msra.mxu0 0.0
  %925 = vmatprep.subr.mxu0 0.0
  %926 = vmatpush1.xpose.msra.mxu0 0.0
  %927 = vmatprep.subr.mxu0 0.0
  %928 = vmatpush1.xpose.msra.mxu0 0.0
  %929 = vmatprep.subr.mxu0 0.0
  %930 = vmatpush1.xpose.msra.mxu0 0.0
  %931 = vmatprep.subr.mxu0 0.0
  %932 = vmatpush1.xpose.msra.mxu0 0.0
  %933 = vmatprep.subr.mxu0 0.0
  %934 = vmatpush1.xpose.msra.mxu0 0.0
  %935 = vmatprep.subr.mxu0 0.0
  %936 = vmatpush1.xpose.msra.mxu0 0.0
  %937 = vmatprep.subr.mxu0 0.0
  %938 = vmatpush1.xpose.msra.mxu0 0.0
  %939 = vmatprep.subr.mxu0 0.0
  %940 = vmatpush1.xpose.msra.mxu0 0.0
  %941 = vmatprep.subr.mxu0 0.0
  %942 = vmatpush1.xpose.msra.mxu0 0.0
  %943 = vmatprep.subr.mxu0 0.0
  %944 = vmatpush1.xpose.msra.mxu0 0.0
  %945 = vmatprep.subr.mxu0 0.0
  %946 = vmatpush1.xpose.msra.mxu0 0.0
  %947 = vmatprep.subr.mxu0 0.0
  %948 = vmatpush1.xpose.msra.mxu0 0.0
  %949 = vmatprep.subr.mxu0 0.0
  %950 = vmatpush1.xpose.msra.mxu0 0.0
  %951 = vmatprep.subr.mxu0 0.0
  %952 = vmatpush1.xpose.msra.mxu0 0.0
  %953 = vmatprep.subr.mxu0 0.0
  %954 = vmatpush1.xpose.msra.mxu0 0.0
  %955 = vmatprep.subr.mxu0 0.0
  %956 = vmatpush1.xpose.msra.mxu0 0.0
  %957 = vmatprep.subr.mxu0 0.0
  %958 = vmatpush1.xpose.msra.mxu0 0.0
  %959 = vmatprep.subr.mxu0 0.0
  %960 = vmatpush1.xpose.msra.mxu0 0.0
  %961 = vmatprep.subr.mxu0 0.0
  %962 = vmatpush1.xpose.msra.mxu0 0.0
  %963 = vmatprep.subr.mxu0 0.0
  %964 = vmatpush1.xpose.msra.mxu0 0.0
  %965 = vmatprep.mubr.f32.mxu0 0.0
  %966 = vmatmul.mubr.f32.gmra.mrb[0].mxu0 %v896
  %v967 = vpop.f32.mrb[0].mxu0
  %v968 = vadd.f32 0.0, %v967
  %v969 = vpop.f32.mrb[0].mxu0
  %970 = vdwg.mxu0
  %v972 = vsel %vm337, %v736, 0
  %v975 = vsel %vm337, %v814, 0
  %977 = vmatprep.subr.mxu0 0.0
  %978 = vmatpush1.xpose.msra.mxu0 %v975
  %979 = vmatprep.subr.mxu0 0.0
  %980 = vmatpush1.xpose.msra.mxu0 0.0
  %981 = vmatprep.subr.mxu0 0.0
  %982 = vmatpush1.xpose.msra.mxu0 0.0
  %983 = vmatprep.subr.mxu0 0.0
  %984 = vmatpush1.xpose.msra.mxu0 0.0
  %985 = vmatprep.subr.mxu0 0.0
  %986 = vmatpush1.xpose.msra.mxu0 0.0
  %987 = vmatprep.subr.mxu0 0.0
  %988 = vmatpush1.xpose.msra.mxu0 0.0
  %989 = vmatprep.subr.mxu0 0.0
  %990 = vmatpush1.xpose.msra.mxu0 0.0
  %991 = vmatprep.subr.mxu0 0.0
  %992 = vmatpush1.xpose.msra.mxu0 0.0
  %993 = vmatprep.subr.mxu0 0.0
  %994 = vmatpush1.xpose.msra.mxu0 0.0
  %995 = vmatprep.subr.mxu0 0.0
  %996 = vmatpush1.xpose.msra.mxu0 0.0
  %997 = vmatprep.subr.mxu0 0.0
  %998 = vmatpush1.xpose.msra.mxu0 0.0
  %999 = vmatprep.subr.mxu0 0.0
  %1000 = vmatpush1.xpose.msra.mxu0 0.0
  %1001 = vmatprep.subr.mxu0 0.0
  %1002 = vmatpush1.xpose.msra.mxu0 0.0
  %1003 = vmatprep.subr.mxu0 0.0
  %1004 = vmatpush1.xpose.msra.mxu0 0.0
  %1005 = vmatprep.subr.mxu0 0.0
  %1006 = vmatpush1.xpose.msra.mxu0 0.0
  %1007 = vmatprep.subr.mxu0 0.0
  %1008 = vmatpush1.xpose.msra.mxu0 0.0
  %1009 = vmatprep.subr.mxu0 0.0
  %1010 = vmatpush1.xpose.msra.mxu0 0.0
  %1011 = vmatprep.subr.mxu0 0.0
  %1012 = vmatpush1.xpose.msra.mxu0 0.0
  %1013 = vmatprep.subr.mxu0 0.0
  %1014 = vmatpush1.xpose.msra.mxu0 0.0
  %1015 = vmatprep.subr.mxu0 0.0
  %1016 = vmatpush1.xpose.msra.mxu0 0.0
  %1017 = vmatprep.subr.mxu0 0.0
  %1018 = vmatpush1.xpose.msra.mxu0 0.0
  %1019 = vmatprep.subr.mxu0 0.0
  %1020 = vmatpush1.xpose.msra.mxu0 0.0
  %1021 = vmatprep.subr.mxu0 0.0
  %1022 = vmatpush1.xpose.msra.mxu0 0.0
  %1023 = vmatprep.subr.mxu0 0.0
  %1024 = vmatpush1.xpose.msra.mxu0 0.0
  %1025 = vmatprep.subr.mxu0 0.0
  %1026 = vmatpush1.xpose.msra.mxu0 0.0
  %1027 = vmatprep.subr.mxu0 0.0
  %1028 = vmatpush1.xpose.msra.mxu0 0.0
  %1029 = vmatprep.subr.mxu0 0.0
  %1030 = vmatpush1.xpose.msra.mxu0 0.0
  %1031 = vmatprep.subr.mxu0 0.0
  %1032 = vmatpush1.xpose.msra.mxu0 0.0
  %1033 = vmatprep.subr.mxu0 0.0
  %1034 = vmatpush1.xpose.msra.mxu0 0.0
  %1035 = vmatprep.subr.mxu0 0.0
  %1036 = vmatpush1.xpose.msra.mxu0 0.0
  %1037 = vmatprep.subr.mxu0 0.0
  %1038 = vmatpush1.xpose.msra.mxu0 0.0
  %1039 = vmatprep.subr.mxu0 0.0
  %1040 = vmatpush1.xpose.msra.mxu0 0.0
  %1041 = vmatprep.mubr.f32.mxu0 0.0
  %1042 = vmatmul.mubr.f32.gmra.mrb[0].mxu0 %v972
  %v1043 = vpop.f32.mrb[0].mxu0
  %v1044 = vadd.f32 0.0, %v1043
  %v1045 = vpop.f32.mrb[0].mxu0
  %1046 = vdwg.mxu0
  %v1047 = vmul.f32 %v968, 0.35355338
  %v1048 = vmul.f32 %v1044, 0.35355338
  %v1049 = vsel %vm337, %v1047, -inf
  %1050 = vmax.xlane.f32.xlu0 %v1049
  %v1051 = vpop.xlane.xlu0 %1050
  %v1052 = vsel %vm337, %v1048, -inf
  %1053 = vmax.xlane.f32.xlu0 %v1052
  %v1054 = vpop.xlane.xlu0 %1053
  %v1055 = vsub.f32 %v1047, %v1051
  %v1056 = vsub.f32 %v1048, %v1054
  %v1057 = vmul.f32 %v1055, 1.442695
  %v1058 = vpow.pop %v1057
  %v1059 = vmul.f32 %v1056, 1.442695
  %v1060 = vpow.pop %v1059
  %v1061 = vsel %vm337, %v1058, 0.0
  %1062 = vadd.xlane.f32.xlu0 %v1061
  %v1063 = vpop.xlane.xlu0 %1062
  %v1064 = vsel %vm337, %v1060, 0.0
  %1065 = vadd.xlane.f32.xlu0 %v1064
  %v1066 = vpop.xlane.xlu0 %1065
  %v1067 = vrcp.pop %v1063
  %v1068 = vrcp.pop %v1066
  %v1069 = vmul.f32 %v1058, %v1067
  %v1070 = vmul.f32 %v1060, %v1068
  %v1072 = vsel %vm337, %v1069, 0
  %1074 = vmatprep.subr.mxu0 0.0
  %1075 = vmatpush1.msra.mxu0 %v887
  %1076 = vmatprep.subr.mxu0 0.0
  %1077 = vmatpush1.msra.mxu0 0.0
  %1078 = vmatprep.subr.mxu0 0.0
  %1079 = vmatpush1.msra.mxu0 0.0
  %1080 = vmatprep.subr.mxu0 0.0
  %1081 = vmatpush1.msra.mxu0 0.0
  %1082 = vmatprep.subr.mxu0 0.0
  %1083 = vmatpush1.msra.mxu0 0.0
  %1084 = vmatprep.subr.mxu0 0.0
  %1085 = vmatpush1.msra.mxu0 0.0
  %1086 = vmatprep.subr.mxu0 0.0
  %1087 = vmatpush1.msra.mxu0 0.0
  %1088 = vmatprep.subr.mxu0 0.0
  %1089 = vmatpush1.msra.mxu0 0.0
  %1090 = vmatprep.subr.mxu0 0.0
  %1091 = vmatpush1.msra.mxu0 0.0
  %1092 = vmatprep.subr.mxu0 0.0
  %1093 = vmatpush1.msra.mxu0 0.0
  %1094 = vmatprep.subr.mxu0 0.0
  %1095 = vmatpush1.msra.mxu0 0.0
  %1096 = vmatprep.subr.mxu0 0.0
  %1097 = vmatpush1.msra.mxu0 0.0
  %1098 = vmatprep.subr.mxu0 0.0
  %1099 = vmatpush1.msra.mxu0 0.0
  %1100 = vmatprep.subr.mxu0 0.0
  %1101 = vmatpush1.msra.mxu0 0.0
  %1102 = vmatprep.subr.mxu0 0.0
  %1103 = vmatpush1.msra.mxu0 0.0
  %1104 = vmatprep.subr.mxu0 0.0
  %1105 = vmatpush1.msra.mxu0 0.0
  %1106 = vmatprep.subr.mxu0 0.0
  %1107 = vmatpush1.msra.mxu0 0.0
  %1108 = vmatprep.subr.mxu0 0.0
  %1109 = vmatpush1.msra.mxu0 0.0
  %1110 = vmatprep.subr.mxu0 0.0
  %1111 = vmatpush1.msra.mxu0 0.0
  %1112 = vmatprep.subr.mxu0 0.0
  %1113 = vmatpush1.msra.mxu0 0.0
  %1114 = vmatprep.subr.mxu0 0.0
  %1115 = vmatpush1.msra.mxu0 0.0
  %1116 = vmatprep.subr.mxu0 0.0
  %1117 = vmatpush1.msra.mxu0 0.0
  %1118 = vmatprep.subr.mxu0 0.0
  %1119 = vmatpush1.msra.mxu0 0.0
  %1120 = vmatprep.subr.mxu0 0.0
  %1121 = vmatpush1.msra.mxu0 0.0
  %1122 = vmatprep.subr.mxu0 0.0
  %1123 = vmatpush1.msra.mxu0 0.0
  %1124 = vmatprep.subr.mxu0 0.0
  %1125 = vmatpush1.msra.mxu0 0.0
  %1126 = vmatprep.subr.mxu0 0.0
  %1127 = vmatpush1.msra.mxu0 0.0
  %1128 = vmatprep.subr.mxu0 0.0
  %1129 = vmatpush1.msra.mxu0 0.0
  %1130 = vmatprep.subr.mxu0 0.0
  %1131 = vmatpush1.msra.mxu0 0.0
  %1132 = vmatprep.subr.mxu0 0.0
  %1133 = vmatpush1.msra.mxu0 0.0
  %1134 = vmatprep.subr.mxu0 0.0
  %1135 = vmatpush1.msra.mxu0 0.0
  %1136 = vmatprep.subr.mxu0 0.0
  %1137 = vmatpush1.msra.mxu0 0.0
  %1138 = vmatprep.mubr.f32.mxu0 0.0
  %1139 = vmatmul.mubr.f32.gmra.mrb[0].mxu0 %v1072
  %v1140 = vpop.f32.mrb[0].mxu0
  %v1141 = vadd.f32 0.0, %v1140
  %v1142 = vpop.f32.mrb[0].mxu0
  %1143 = vdwg.mxu0
  %v1145 = vsel %vm337, %v1070, 0
  %1147 = vmatprep.subr.mxu0 0.0
  %1148 = vmatpush1.msra.mxu0 %v892
  %1149 = vmatprep.subr.mxu0 0.0
  %1150 = vmatpush1.msra.mxu0 0.0
  %1151 = vmatprep.subr.mxu0 0.0
  %1152 = vmatpush1.msra.mxu0 0.0
  %1153 = vmatprep.subr.mxu0 0.0
  %1154 = vmatpush1.msra.mxu0 0.0
  %1155 = vmatprep.subr.mxu0 0.0
  %1156 = vmatpush1.msra.mxu0 0.0
  %1157 = vmatprep.subr.mxu0 0.0
  %1158 = vmatpush1.msra.mxu0 0.0
  %1159 = vmatprep.subr.mxu0 0.0
  %1160 = vmatpush1.msra.mxu0 0.0
  %1161 = vmatprep.subr.mxu0 0.0
  %1162 = vmatpush1.msra.mxu0 0.0
  %1163 = vmatprep.subr.mxu0 0.0
  %1164 = vmatpush1.msra.mxu0 0.0
  %1165 = vmatprep.subr.mxu0 0.0
  %1166 = vmatpush1.msra.mxu0 0.0
  %1167 = vmatprep.subr.mxu0 0.0
  %1168 = vmatpush1.msra.mxu0 0.0
  %1169 = vmatprep.subr.mxu0 0.0
  %1170 = vmatpush1.msra.mxu0 0.0
  %1171 = vmatprep.subr.mxu0 0.0
  %1172 = vmatpush1.msra.mxu0 0.0
  %1173 = vmatprep.subr.mxu0 0.0
  %1174 = vmatpush1.msra.mxu0 0.0
  %1175 = vmatprep.subr.mxu0 0.0
  %1176 = vmatpush1.msra.mxu0 0.0
  %1177 = vmatprep.subr.mxu0 0.0
  %1178 = vmatpush1.msra.mxu0 0.0
  %1179 = vmatprep.subr.mxu0 0.0
  %1180 = vmatpush1.msra.mxu0 0.0
  %1181 = vmatprep.subr.mxu0 0.0
  %1182 = vmatpush1.msra.mxu0 0.0
  %1183 = vmatprep.subr.mxu0 0.0
  %1184 = vmatpush1.msra.mxu0 0.0
  %1185 = vmatprep.subr.mxu0 0.0
  %1186 = vmatpush1.msra.mxu0 0.0
  %1187 = vmatprep.subr.mxu0 0.0
  %1188 = vmatpush1.msra.mxu0 0.0
  %1189 = vmatprep.subr.mxu0 0.0
  %1190 = vmatpush1.msra.mxu0 0.0
  %1191 = vmatprep.subr.mxu0 0.0
  %1192 = vmatpush1.msra.mxu0 0.0
  %1193 = vmatprep.subr.mxu0 0.0
  %1194 = vmatpush1.msra.mxu0 0.0
  %1195 = vmatprep.subr.mxu0 0.0
  %1196 = vmatpush1.msra.mxu0 0.0
  %1197 = vmatprep.subr.mxu0 0.0
  %1198 = vmatpush1.msra.mxu0 0.0
  %1199 = vmatprep.subr.mxu0 0.0
  %1200 = vmatpush1.msra.mxu0 0.0
  %1201 = vmatprep.subr.mxu0 0.0
  %1202 = vmatpush1.msra.mxu0 0.0
  %1203 = vmatprep.subr.mxu0 0.0
  %1204 = vmatpush1.msra.mxu0 0.0
  %1205 = vmatprep.subr.mxu0 0.0
  %1206 = vmatpush1.msra.mxu0 0.0
  %1207 = vmatprep.subr.mxu0 0.0
  %1208 = vmatpush1.msra.mxu0 0.0
  %1209 = vmatprep.subr.mxu0 0.0
  %1210 = vmatpush1.msra.mxu0 0.0
  %1211 = vmatprep.mubr.f32.mxu0 0.0
  %1212 = vmatmul.mubr.f32.gmra.mrb[0].mxu0 %v1145
  %v1213 = vpop.f32.mrb[0].mxu0
  %v1214 = vadd.f32 0.0, %v1213
  %v1215 = vpop.f32.mrb[0].mxu0
  %1216 = vdwg.mxu0
  %s1217 = scalar_lea.vmem %s6, 8
  %v1218 = vld [vmem:[%s1217] sm:$0xff]
  %v1220 = vsel %vm337, %v1141, 0
  %v1223 = vsel %vm337, %v1214, 0
  %1225 = vmatprep.subr.mxu0 0.0
  %1226 = vmatpush1.msra.mxu0 %v1218
  %1227 = vmatprep.subr.mxu0 0.0
  %1228 = vmatpush1.msra.mxu0 0.0
  %1229 = vmatprep.subr.mxu0 0.0
  %1230 = vmatpush1.msra.mxu0 0.0
  %1231 = vmatprep.subr.mxu0 0.0
  %1232 = vmatpush1.msra.mxu0 0.0
  %1233 = vmatprep.subr.mxu0 0.0
  %1234 = vmatpush1.msra.mxu0 0.0
  %1235 = vmatprep.subr.mxu0 0.0
  %1236 = vmatpush1.msra.mxu0 0.0
  %1237 = vmatprep.subr.mxu0 0.0
  %1238 = vmatpush1.msra.mxu0 0.0
  %1239 = vmatprep.subr.mxu0 0.0
  %1240 = vmatpush1.msra.mxu0 0.0
  %1241 = vmatprep.subr.mxu0 0.0
  %1242 = vmatpush1.msra.mxu0 0.0
  %1243 = vmatprep.subr.mxu0 0.0
  %1244 = vmatpush1.msra.mxu0 0.0
  %1245 = vmatprep.subr.mxu0 0.0
  %1246 = vmatpush1.msra.mxu0 0.0
  %1247 = vmatprep.subr.mxu0 0.0
  %1248 = vmatpush1.msra.mxu0 0.0
  %1249 = vmatprep.subr.mxu0 0.0
  %1250 = vmatpush1.msra.mxu0 0.0
  %1251 = vmatprep.subr.mxu0 0.0
  %1252 = vmatpush1.msra.mxu0 0.0
  %1253 = vmatprep.subr.mxu0 0.0
  %1254 = vmatpush1.msra.mxu0 0.0
  %1255 = vmatprep.subr.mxu0 0.0
  %1256 = vmatpush1.msra.mxu0 0.0
  %1257 = vmatprep.subr.mxu0 0.0
  %1258 = vmatpush1.msra.mxu0 0.0
  %1259 = vmatprep.subr.mxu0 0.0
  %1260 = vmatpush1.msra.mxu0 0.0
  %1261 = vmatprep.subr.mxu0 0.0
  %1262 = vmatpush1.msra.mxu0 0.0
  %1263 = vmatprep.subr.mxu0 0.0
  %1264 = vmatpush1.msra.mxu0 0.0
  %1265 = vmatprep.subr.mxu0 0.0
  %1266 = vmatpush1.msra.mxu0 0.0
  %1267 = vmatprep.subr.mxu0 0.0
  %1268 = vmatpush1.msra.mxu0 0.0
  %1269 = vmatprep.subr.mxu0 0.0
  %1270 = vmatpush1.msra.mxu0 0.0
  %1271 = vmatprep.subr.mxu0 0.0
  %1272 = vmatpush1.msra.mxu0 0.0
  %1273 = vmatprep.subr.mxu0 0.0
  %1274 = vmatpush1.msra.mxu0 0.0
  %1275 = vmatprep.subr.mxu0 0.0
  %1276 = vmatpush1.msra.mxu0 0.0
  %1277 = vmatprep.subr.mxu0 0.0
  %1278 = vmatpush1.msra.mxu0 0.0
  %1279 = vmatprep.subr.mxu0 0.0
  %1280 = vmatpush1.msra.mxu0 0.0
  %1281 = vmatprep.subr.mxu0 0.0
  %1282 = vmatpush1.msra.mxu0 0.0
  %1283 = vmatprep.subr.mxu0 0.0
  %1284 = vmatpush1.msra.mxu0 0.0
  %1285 = vmatprep.subr.mxu0 0.0
  %1286 = vmatpush1.msra.mxu0 0.0
  %1287 = vmatprep.subr.mxu0 0.0
  %1288 = vmatpush1.msra.mxu0 0.0
  %1289 = vmatprep.mubr.f32.mxu0 0.0
  %1290 = vmatmul.mubr.f32.gmra.mrb[0].mxu0 %v1220
  %v1291 = vpop.f32.mrb[0].mxu0
  %v1292 = vadd.f32 0.0, %v1291
  %v1293 = vpop.f32.mrb[0].mxu0
  %1294 = vmatprep.mubr.f32.mxu0 0.0
  %1295 = vmatmul.mubr.f32.gmra.mrb[0].mxu0 %v1223
  %v1296 = vpop.f32.mrb[0].mxu0
  %v1297 = vadd.f32 0.0, %v1296
  %v1298 = vpop.f32.mrb[0].mxu0
  %1299 = vdwg.mxu0
  %v1301 = vsel %vm337, %v584, 0
  %v1304 = vsel %vm337, %v657, 0
  %1306 = vmatprep.subr.mxu0 0.0
  %1307 = vmatpush1.msra.mxu0 %v660
  %1308 = vmatprep.subr.mxu0 0.0
  %1309 = vmatpush1.msra.mxu0 0.0
  %1310 = vmatprep.subr.mxu0 0.0
  %1311 = vmatpush1.msra.mxu0 0.0
  %1312 = vmatprep.subr.mxu0 0.0
  %1313 = vmatpush1.msra.mxu0 0.0
  %1314 = vmatprep.subr.mxu0 0.0
  %1315 = vmatpush1.msra.mxu0 0.0
  %1316 = vmatprep.subr.mxu0 0.0
  %1317 = vmatpush1.msra.mxu0 0.0
  %1318 = vmatprep.subr.mxu0 0.0
  %1319 = vmatpush1.msra.mxu0 0.0
  %1320 = vmatprep.subr.mxu0 0.0
  %1321 = vmatpush1.msra.mxu0 0.0
  %1322 = vmatprep.subr.mxu0 0.0
  %1323 = vmatpush1.msra.mxu0 0.0
  %1324 = vmatprep.subr.mxu0 0.0
  %1325 = vmatpush1.msra.mxu0 0.0
  %1326 = vmatprep.subr.mxu0 0.0
  %1327 = vmatpush1.msra.mxu0 0.0
  %1328 = vmatprep.subr.mxu0 0.0
  %1329 = vmatpush1.msra.mxu0 0.0
  %1330 = vmatprep.subr.mxu0 0.0
  %1331 = vmatpush1.msra.mxu0 0.0
  %1332 = vmatprep.subr.mxu0 0.0
  %1333 = vmatpush1.msra.mxu0 0.0
  %1334 = vmatprep.subr.mxu0 0.0
  %1335 = vmatpush1.msra.mxu0 0.0
  %1336 = vmatprep.subr.mxu0 0.0
  %1337 = vmatpush1.msra.mxu0 0.0
  %1338 = vmatprep.subr.mxu0 0.0
  %1339 = vmatpush1.msra.mxu0 0.0
  %1340 = vmatprep.subr.mxu0 0.0
  %1341 = vmatpush1.msra.mxu0 0.0
  %1342 = vmatprep.subr.mxu0 0.0
  %1343 = vmatpush1.msra.mxu0 0.0
  %1344 = vmatprep.subr.mxu0 0.0
  %1345 = vmatpush1.msra.mxu0 0.0
  %1346 = vmatprep.subr.mxu0 0.0
  %1347 = vmatpush1.msra.mxu0 0.0
  %1348 = vmatprep.subr.mxu0 0.0
  %1349 = vmatpush1.msra.mxu0 0.0
  %1350 = vmatprep.subr.mxu0 0.0
  %1351 = vmatpush1.msra.mxu0 0.0
  %1352 = vmatprep.subr.mxu0 0.0
  %1353 = vmatpush1.msra.mxu0 0.0
  %1354 = vmatprep.subr.mxu0 0.0
  %1355 = vmatpush1.msra.mxu0 0.0
  %1356 = vmatprep.subr.mxu0 0.0
  %1357 = vmatpush1.msra.mxu0 0.0
  %1358 = vmatprep.subr.mxu0 0.0
  %1359 = vmatpush1.msra.mxu0 0.0
  %1360 = vmatprep.subr.mxu0 0.0
  %1361 = vmatpush1.msra.mxu0 0.0
  %1362 = vmatprep.subr.mxu0 0.0
  %1363 = vmatpush1.msra.mxu0 0.0
  %1364 = vmatprep.subr.mxu0 0.0
  %1365 = vmatpush1.msra.mxu0 0.0
  %1366 = vmatprep.subr.mxu0 0.0
  %1367 = vmatpush1.msra.mxu0 0.0
  %1368 = vmatprep.subr.mxu0 0.0
  %1369 = vmatpush1.msra.mxu0 0.0
  %1370 = vmatprep.mubr.f32.mxu0 0.0
  %1371 = vmatmul.mubr.f32.gmra.mrb[0].mxu0 %v1301
  %v1372 = vpop.f32.mrb[0].mxu0
  %v1373 = vadd.f32 %v1292, %v1372
  %v1374 = vpop.f32.mrb[0].mxu0
  %1375 = vmatprep.mubr.f32.mxu0 0.0
  %1376 = vmatmul.mubr.f32.gmra.mrb[0].mxu0 %v1304
  %v1377 = vpop.f32.mrb[0].mxu0
  %v1378 = vadd.f32 %v1297, %v1377
  %v1379 = vpop.f32.mrb[0].mxu0
  %1380 = vdwg.mxu0
  %v1381 = vadd.f32 %v98, %v1373
  %v1382 = vadd.f32 %v99, %v1378
  %v1383 = vld [vmem:[%s7] sm:$0x1]
  %v1384 = vld [vmem:[%s8] sm:$0x1]
  %v1385 = vsel %vm56, %v1381, 0.0
  %1386 = vadd.xlane.f32.xlu0 %v1385
  %v1387 = vpop.xlane.xlu0 %1386
  %v1388 = vsel %vm56, %v1382, 0.0
  %1389 = vadd.xlane.f32.xlu0 %v1388
  %v1390 = vpop.xlane.xlu0 %1389
  %v1391 = vmul.f32 %v1387, %v63
  %v1392 = vmul.f32 %v1390, %v63
  %v1393 = vsub.f32 %v1381, %v1391
  %v1394 = vsub.f32 %v1382, %v1392
  %v1395 = vmul.f32 %v1393, %v1393
  %v1396 = vmul.f32 %v1394, %v1394
  %v1397 = vsel %vm56, %v1395, 0.0
  %1398 = vadd.xlane.f32.xlu0 %v1397
  %v1399 = vpop.xlane.xlu0 %1398
  %v1400 = vsel %vm56, %v1396, 0.0
  %1401 = vadd.xlane.f32.xlu0 %v1400
  %v1402 = vpop.xlane.xlu0 %1401
  %v1403 = vmul.f32 %v1399, %v63
  %v1404 = vmul.f32 %v1402, %v63
  %v1405 = vadd.f32 %v1403, 1e-05
  %v1406 = vadd.f32 %v1404, 1e-05
  %v1407 = vrsqrt.pop %v1405
  %v1408 = vrsqrt.pop %v1406
  %v1409 = vmul.f32 %v1393, %v1407
  %v1410 = vmul.f32 %v1394, %v1408
  %v1412 = vlaneseq
  %v1413 = vshrl.u32 %v1412, 7
  %v1414 = vsub.s32 0, %v1413
  %v1415 = vrot.slane %v1383, %v1414
  %v1417 = vmul.f32 %v1409, %v1415
  %v1418 = vmul.f32 %v1410, %v1415
  %v1420 = vlaneseq
  %v1421 = vshrl.u32 %v1420, 7
  %v1422 = vsub.s32 0, %v1421
  %v1423 = vrot.slane %v1384, %v1422
  %v1425 = vadd.f32 %v1417, %v1423
  %v1426 = vadd.f32 %v1418, %v1423
  %v1427 = vld [vmem:[%s9] sm:$0xff]
  %v1428 = vld [vmem:[%s9 + $0x8] sm:$0xff]
  %v1429 = vld [vmem:[%s10] sm:$0x1]
  %v1431 = vlaneseq
  %v1432 = vshrl.u32 %v1431, 7
  %v1433 = vsub.s32 0, %v1432
  %v1434 = vrot.slane %v1429, %v1433
  %v1437 = vsel %vm56, %v1425, 0
  %v1440 = vsel %vm56, %v1426, 0
  %1442 = vmatprep.subr.mxu0 0.0
  %1443 = vmatpush1.msra.mxu0 %v1427
  %1444 = vmatprep.subr.mxu0 0.0
  %1445 = vmatpush1.msra.mxu0 %v1428
  %1446 = vmatprep.subr.mxu0 0.0
  %1447 = vmatpush1.msra.mxu0 0.0
  %1448 = vmatprep.subr.mxu0 0.0
  %1449 = vmatpush1.msra.mxu0 0.0
  %1450 = vmatprep.subr.mxu0 0.0
  %1451 = vmatpush1.msra.mxu0 0.0
  %1452 = vmatprep.subr.mxu0 0.0
  %1453 = vmatpush1.msra.mxu0 0.0
  %1454 = vmatprep.subr.mxu0 0.0
  %1455 = vmatpush1.msra.mxu0 0.0
  %1456 = vmatprep.subr.mxu0 0.0
  %1457 = vmatpush1.msra.mxu0 0.0
  %1458 = vmatprep.subr.mxu0 0.0
  %1459 = vmatpush1.msra.mxu0 0.0
  %1460 = vmatprep.subr.mxu0 0.0
  %1461 = vmatpush1.msra.mxu0 0.0
  %1462 = vmatprep.subr.mxu0 0.0
  %1463 = vmatpush1.msra.mxu0 0.0
  %1464 = vmatprep.subr.mxu0 0.0
  %1465 = vmatpush1.msra.mxu0 0.0
  %1466 = vmatprep.subr.mxu0 0.0
  %1467 = vmatpush1.msra.mxu0 0.0
  %1468 = vmatprep.subr.mxu0 0.0
  %1469 = vmatpush1.msra.mxu0 0.0
  %1470 = vmatprep.subr.mxu0 0.0
  %1471 = vmatpush1.msra.mxu0 0.0
  %1472 = vmatprep.subr.mxu0 0.0
  %1473 = vmatpush1.msra.mxu0 0.0
  %1474 = vmatprep.subr.mxu0 0.0
  %1475 = vmatpush1.msra.mxu0 0.0
  %1476 = vmatprep.subr.mxu0 0.0
  %1477 = vmatpush1.msra.mxu0 0.0
  %1478 = vmatprep.subr.mxu0 0.0
  %1479 = vmatpush1.msra.mxu0 0.0
  %1480 = vmatprep.subr.mxu0 0.0
  %1481 = vmatpush1.msra.mxu0 0.0
  %1482 = vmatprep.subr.mxu0 0.0
  %1483 = vmatpush1.msra.mxu0 0.0
  %1484 = vmatprep.subr.mxu0 0.0
  %1485 = vmatpush1.msra.mxu0 0.0
  %1486 = vmatprep.subr.mxu0 0.0
  %1487 = vmatpush1.msra.mxu0 0.0
  %1488 = vmatprep.subr.mxu0 0.0
  %1489 = vmatpush1.msra.mxu0 0.0
  %1490 = vmatprep.subr.mxu0 0.0
  %1491 = vmatpush1.msra.mxu0 0.0
  %1492 = vmatprep.subr.mxu0 0.0
  %1493 = vmatpush1.msra.mxu0 0.0
  %1494 = vmatprep.subr.mxu0 0.0
  %1495 = vmatpush1.msra.mxu0 0.0
  %1496 = vmatprep.subr.mxu0 0.0
  %1497 = vmatpush1.msra.mxu0 0.0
  %1498 = vmatprep.subr.mxu0 0.0
  %1499 = vmatpush1.msra.mxu0 0.0
  %1500 = vmatprep.subr.mxu0 0.0
  %1501 = vmatpush1.msra.mxu0 0.0
  %1502 = vmatprep.subr.mxu0 0.0
  %1503 = vmatpush1.msra.mxu0 0.0
  %1504 = vmatprep.subr.mxu0 0.0
  %1505 = vmatpush1.msra.mxu0 0.0
  %1506 = vmatprep.mubr.f32.mxu0 0.0
  %1507 = vmatmul.mubr.f32.gmra.mrb[0].mxu0 %v1437
  %v1508 = vpop.f32.mrb[0].mxu0
  %v1509 = vadd.f32 %v1434, %v1508
  %v1510 = vpop.f32.mrb[0].mxu0
  %1511 = vmatprep.mubr.f32.mxu0 0.0
  %1512 = vmatmul.mubr.f32.gmra.mrb[0].mxu0 %v1440
  %v1513 = vpop.f32.mrb[0].mxu0
  %v1514 = vadd.f32 %v1434, %v1513
  %v1515 = vpop.f32.mrb[0].mxu0
  %1516 = vdwg.mxu0
  %v1517 = vmax.f32 %v1509, 0.0
  %v1518 = vmax.f32 %v1514, 0.0
  %v1519 = vld [vmem:[%s11] sm:$0xff]
  %v1520 = vld [vmem:[%s11 + $0x8] sm:$0xff]
  %v1521 = vld [vmem:[%s11 + $0x10] sm:$0xff]
  %v1522 = vld [vmem:[%s11 + $0x18] sm:$0xff]
  %v1523 = vld [vmem:[%s12] sm:$0x1]
  %v1525 = vlaneseq
  %v1526 = vshrl.u32 %v1525, 7
  %v1527 = vsub.s32 0, %v1526
  %v1528 = vrot.slane %v1523, %v1527
  %vm1530 = vcmask 261120
  %v1532 = vsel %vm1530, %v1517, 0
  %v1535 = vsel %vm1530, %v1518, 0
  %1537 = vmatprep.subr.mxu0 0.0
  %1538 = vmatpush1.msra.mxu0 %v1519
  %1539 = vmatprep.subr.mxu0 0.0
  %1540 = vmatpush1.msra.mxu0 %v1520
  %1541 = vmatprep.subr.mxu0 0.0
  %1542 = vmatpush1.msra.mxu0 %v1521
  %1543 = vmatprep.subr.mxu0 0.0
  %1544 = vmatpush1.msra.mxu0 %v1522
  %1545 = vmatprep.subr.mxu0 0.0
  %1546 = vmatpush1.msra.mxu0 0.0
  %1547 = vmatprep.subr.mxu0 0.0
  %1548 = vmatpush1.msra.mxu0 0.0
  %1549 = vmatprep.subr.mxu0 0.0
  %1550 = vmatpush1.msra.mxu0 0.0
  %1551 = vmatprep.subr.mxu0 0.0
  %1552 = vmatpush1.msra.mxu0 0.0
  %1553 = vmatprep.subr.mxu0 0.0
  %1554 = vmatpush1.msra.mxu0 0.0
  %1555 = vmatprep.subr.mxu0 0.0
  %1556 = vmatpush1.msra.mxu0 0.0
  %1557 = vmatprep.subr.mxu0 0.0
  %1558 = vmatpush1.msra.mxu0 0.0
  %1559 = vmatprep.subr.mxu0 0.0
  %1560 = vmatpush1.msra.mxu0 0.0
  %1561 = vmatprep.subr.mxu0 0.0
  %1562 = vmatpush1.msra.mxu0 0.0
  %1563 = vmatprep.subr.mxu0 0.0
  %1564 = vmatpush1.msra.mxu0 0.0
  %1565 = vmatprep.subr.mxu0 0.0
  %1566 = vmatpush1.msra.mxu0 0.0
  %1567 = vmatprep.subr.mxu0 0.0
  %1568 = vmatpush1.msra.mxu0 0.0
  %1569 = vmatprep.subr.mxu0 0.0
  %1570 = vmatpush1.msra.mxu0 0.0
  %1571 = vmatprep.subr.mxu0 0.0
  %1572 = vmatpush1.msra.mxu0 0.0
  %1573 = vmatprep.subr.mxu0 0.0
  %1574 = vmatpush1.msra.mxu0 0.0
  %1575 = vmatprep.subr.mxu0 0.0
  %1576 = vmatpush1.msra.mxu0 0.0
  %1577 = vmatprep.subr.mxu0 0.0
  %1578 = vmatpush1.msra.mxu0 0.0
  %1579 = vmatprep.subr.mxu0 0.0
  %1580 = vmatpush1.msra.mxu0 0.0
  %1581 = vmatprep.subr.mxu0 0.0
  %1582 = vmatpush1.msra.mxu0 0.0
  %1583 = vmatprep.subr.mxu0 0.0
  %1584 = vmatpush1.msra.mxu0 0.0
  %1585 = vmatprep.subr.mxu0 0.0
  %1586 = vmatpush1.msra.mxu0 0.0
  %1587 = vmatprep.subr.mxu0 0.0
  %1588 = vmatpush1.msra.mxu0 0.0
  %1589 = vmatprep.subr.mxu0 0.0
  %1590 = vmatpush1.msra.mxu0 0.0
  %1591 = vmatprep.subr.mxu0 0.0
  %1592 = vmatpush1.msra.mxu0 0.0
  %1593 = vmatprep.subr.mxu0 0.0
  %1594 = vmatpush1.msra.mxu0 0.0
  %1595 = vmatprep.subr.mxu0 0.0
  %1596 = vmatpush1.msra.mxu0 0.0
  %1597 = vmatprep.subr.mxu0 0.0
  %1598 = vmatpush1.msra.mxu0 0.0
  %1599 = vmatprep.subr.mxu0 0.0
  %1600 = vmatpush1.msra.mxu0 0.0
  %1601 = vmatprep.mubr.f32.mxu0 0.0
  %1602 = vmatmul.mubr.f32.gmra.mrb[0].mxu0 %v1532
  %v1603 = vpop.f32.mrb[0].mxu0
  %v1604 = vadd.f32 %v1528, %v1603
  %v1605 = vpop.f32.mrb[0].mxu0
  %1606 = vmatprep.mubr.f32.mxu0 0.0
  %1607 = vmatmul.mubr.f32.gmra.mrb[0].mxu0 %v1535
  %v1608 = vpop.f32.mrb[0].mxu0
  %v1609 = vadd.f32 %v1528, %v1608
  %v1610 = vpop.f32.mrb[0].mxu0
  %1611 = vdwg.mxu0
  %v1612 = vadd.f32 %v1425, %v1604
  %v1613 = vadd.f32 %v1426, %v1609
  %s1614 = scalar_lea.vmem %s1, 1
  %v1615 = vld [vmem:[%s1614] sm:$0x1]
  %s1616 = scalar_lea.vmem %s2, 1
  %v1617 = vld [vmem:[%s1616] sm:$0x1]
  %v1618 = vsel %vm56, %v1612, 0.0
  %1619 = vadd.xlane.f32.xlu0 %v1618
  %v1620 = vpop.xlane.xlu0 %1619
  %v1621 = vsel %vm56, %v1613, 0.0
  %1622 = vadd.xlane.f32.xlu0 %v1621
  %v1623 = vpop.xlane.xlu0 %1622
  %v1624 = vmul.f32 %v1620, %v63
  %v1625 = vmul.f32 %v1623, %v63
  %v1626 = vsub.f32 %v1612, %v1624
  %v1627 = vsub.f32 %v1613, %v1625
  %v1628 = vmul.f32 %v1626, %v1626
  %v1629 = vmul.f32 %v1627, %v1627
  %v1630 = vsel %vm56, %v1628, 0.0
  %1631 = vadd.xlane.f32.xlu0 %v1630
  %v1632 = vpop.xlane.xlu0 %1631
  %v1633 = vsel %vm56, %v1629, 0.0
  %1634 = vadd.xlane.f32.xlu0 %v1633
  %v1635 = vpop.xlane.xlu0 %1634
  %v1636 = vmul.f32 %v1632, %v63
  %v1637 = vmul.f32 %v1635, %v63
  %v1638 = vadd.f32 %v1636, 1e-05
  %v1639 = vadd.f32 %v1637, 1e-05
  %v1640 = vrsqrt.pop %v1638
  %v1641 = vrsqrt.pop %v1639
  %v1642 = vmul.f32 %v1626, %v1640
  %v1643 = vmul.f32 %v1627, %v1641
  %v1645 = vlaneseq
  %v1646 = vshrl.u32 %v1645, 7
  %v1647 = vsub.s32 0, %v1646
  %v1648 = vrot.slane %v1615, %v1647
  %v1650 = vmul.f32 %v1642, %v1648
  %v1651 = vmul.f32 %v1643, %v1648
  %v1653 = vlaneseq
  %v1654 = vshrl.u32 %v1653, 7
  %v1655 = vsub.s32 0, %v1654
  %v1656 = vrot.slane %v1617, %v1655
  %v1658 = vadd.f32 %v1650, %v1656
  %v1659 = vadd.f32 %v1651, %v1656
  %s1660 = scalar_lea.vmem %s3, 32
  %v1661 = vld [vmem:[%s1660] sm:$0xff]
  %v1662 = vld [vmem:[%s1660 + $0x8] sm:$0xff]
  %v1664 = vsel %vm56, %v1658, 0
  %v1667 = vsel %vm56, %v1659, 0
  %1669 = vmatprep.subr.mxu0 0.0
  %1670 = vmatpush1.msra.mxu0 %v1661
  %1671 = vmatprep.subr.mxu0 0.0
  %1672 = vmatpush1.msra.mxu0 %v1662
  %1673 = vmatprep.subr.mxu0 0.0
  %1674 = vmatpush1.msra.mxu0 0.0
  %1675 = vmatprep.subr.mxu0 0.0
  %1676 = vmatpush1.msra.mxu0 0.0
  %1677 = vmatprep.subr.mxu0 0.0
  %1678 = vmatpush1.msra.mxu0 0.0
  %1679 = vmatprep.subr.mxu0 0.0
  %1680 = vmatpush1.msra.mxu0 0.0
  %1681 = vmatprep.subr.mxu0 0.0
  %1682 = vmatpush1.msra.mxu0 0.0
  %1683 = vmatprep.subr.mxu0 0.0
  %1684 = vmatpush1.msra.mxu0 0.0
  %1685 = vmatprep.subr.mxu0 0.0
  %1686 = vmatpush1.msra.mxu0 0.0
  %1687 = vmatprep.subr.mxu0 0.0
  %1688 = vmatpush1.msra.mxu0 0.0
  %1689 = vmatprep.subr.mxu0 0.0
  %1690 = vmatpush1.msra.mxu0 0.0
  %1691 = vmatprep.subr.mxu0 0.0
  %1692 = vmatpush1.msra.mxu0 0.0
  %1693 = vmatprep.subr.mxu0 0.0
  %1694 = vmatpush1.msra.mxu0 0.0
  %1695 = vmatprep.subr.mxu0 0.0
  %1696 = vmatpush1.msra.mxu0 0.0
  %1697 = vmatprep.subr.mxu0 0.0
  %1698 = vmatpush1.msra.mxu0 0.0
  %1699 = vmatprep.subr.mxu0 0.0
  %1700 = vmatpush1.msra.mxu0 0.0
  %1701 = vmatprep.subr.mxu0 0.0
  %1702 = vmatpush1.msra.mxu0 0.0
  %1703 = vmatprep.subr.mxu0 0.0
  %1704 = vmatpush1.msra.mxu0 0.0
  %1705 = vmatprep.subr.mxu0 0.0
  %1706 = vmatpush1.msra.mxu0 0.0
  %1707 = vmatprep.subr.mxu0 0.0
  %1708 = vmatpush1.msra.mxu0 0.0
  %1709 = vmatprep.subr.mxu0 0.0
  %1710 = vmatpush1.msra.mxu0 0.0
  %1711 = vmatprep.subr.mxu0 0.0
  %1712 = vmatpush1.msra.mxu0 0.0
  %1713 = vmatprep.subr.mxu0 0.0
  %1714 = vmatpush1.msra.mxu0 0.0
  %1715 = vmatprep.subr.mxu0 0.0
  %1716 = vmatpush1.msra.mxu0 0.0
  %1717 = vmatprep.subr.mxu0 0.0
  %1718 = vmatpush1.msra.mxu0 0.0
  %1719 = vmatprep.subr.mxu0 0.0
  %1720 = vmatpush1.msra.mxu0 0.0
  %1721 = vmatprep.subr.mxu0 0.0
  %1722 = vmatpush1.msra.mxu0 0.0
  %1723 = vmatprep.subr.mxu0 0.0
  %1724 = vmatpush1.msra.mxu0 0.0
  %1725 = vmatprep.subr.mxu0 0.0
  %1726 = vmatpush1.msra.mxu0 0.0
  %1727 = vmatprep.subr.mxu0 0.0
  %1728 = vmatpush1.msra.mxu0 0.0
  %1729 = vmatprep.subr.mxu0 0.0
  %1730 = vmatpush1.msra.mxu0 0.0
  %1731 = vmatprep.subr.mxu0 0.0
  %1732 = vmatpush1.msra.mxu0 0.0
  %1733 = vmatprep.mubr.f32.mxu0 0.0
  %1734 = vmatmul.mubr.f32.gmra.mrb[0].mxu0 %v1664
  %v1735 = vpop.f32.mrb[0].mxu0
  %v1736 = vadd.f32 0.0, %v1735
  %v1737 = vpop.f32.mrb[0].mxu0
  %1738 = vmatprep.mubr.f32.mxu0 0.0
  %1739 = vmatmul.mubr.f32.gmra.mrb[0].mxu0 %v1667
  %v1740 = vpop.f32.mrb[0].mxu0
  %v1741 = vadd.f32 0.0, %v1740
  %v1742 = vpop.f32.mrb[0].mxu0
  %1743 = vdwg.mxu0
  %s1744 = scalar_lea.vmem %s4, 32
  %v1745 = vld [vmem:[%s1744] sm:$0xff]
  %v1746 = vld [vmem:[%s1744 + $0x8] sm:$0xff]
  %1747 = vmatprep.subr.mxu0 0.0
  %1748 = vmatpush1.msra.mxu0 %v1745
  %1749 = vmatprep.subr.mxu0 0.0
  %1750 = vmatpush1.msra.mxu0 %v1746
  %1751 = vmatprep.subr.mxu0 0.0
  %1752 = vmatpush1.msra.mxu0 0.0
  %1753 = vmatprep.subr.mxu0 0.0
  %1754 = vmatpush1.msra.mxu0 0.0
  %1755 = vmatprep.subr.mxu0 0.0
  %1756 = vmatpush1.msra.mxu0 0.0
  %1757 = vmatprep.subr.mxu0 0.0
  %1758 = vmatpush1.msra.mxu0 0.0
  %1759 = vmatprep.subr.mxu0 0.0
  %1760 = vmatpush1.msra.mxu0 0.0
  %1761 = vmatprep.subr.mxu0 0.0
  %1762 = vmatpush1.msra.mxu0 0.0
  %1763 = vmatprep.subr.mxu0 0.0
  %1764 = vmatpush1.msra.mxu0 0.0
  %1765 = vmatprep.subr.mxu0 0.0
  %1766 = vmatpush1.msra.mxu0 0.0
  %1767 = vmatprep.subr.mxu0 0.0
  %1768 = vmatpush1.msra.mxu0 0.0
  %1769 = vmatprep.subr.mxu0 0.0
  %1770 = vmatpush1.msra.mxu0 0.0
  %1771 = vmatprep.subr.mxu0 0.0
  %1772 = vmatpush1.msra.mxu0 0.0
  %1773 = vmatprep.subr.mxu0 0.0
  %1774 = vmatpush1.msra.mxu0 0.0
  %1775 = vmatprep.subr.mxu0 0.0
  %1776 = vmatpush1.msra.mxu0 0.0
  %1777 = vmatprep.subr.mxu0 0.0
  %1778 = vmatpush1.msra.mxu0 0.0
  %1779 = vmatprep.subr.mxu0 0.0
  %1780 = vmatpush1.msra.mxu0 0.0
  %1781 = vmatprep.subr.mxu0 0.0
  %1782 = vmatpush1.msra.mxu0 0.0
  %1783 = vmatprep.subr.mxu0 0.0
  %1784 = vmatpush1.msra.mxu0 0.0
  %1785 = vmatprep.subr.mxu0 0.0
  %1786 = vmatpush1.msra.mxu0 0.0
  %1787 = vmatprep.subr.mxu0 0.0
  %1788 = vmatpush1.msra.mxu0 0.0
  %1789 = vmatprep.subr.mxu0 0.0
  %1790 = vmatpush1.msra.mxu0 0.0
  %1791 = vmatprep.subr.mxu0 0.0
  %1792 = vmatpush1.msra.mxu0 0.0
  %1793 = vmatprep.subr.mxu0 0.0
  %1794 = vmatpush1.msra.mxu0 0.0
  %1795 = vmatprep.subr.mxu0 0.0
  %1796 = vmatpush1.msra.mxu0 0.0
  %1797 = vmatprep.subr.mxu0 0.0
  %1798 = vmatpush1.msra.mxu0 0.0
  %1799 = vmatprep.subr.mxu0 0.0
  %1800 = vmatpush1.msra.mxu0 0.0
  %1801 = vmatprep.subr.mxu0 0.0
  %1802 = vmatpush1.msra.mxu0 0.0
  %1803 = vmatprep.subr.mxu0 0.0
  %1804 = vmatpush1.msra.mxu0 0.0
  %1805 = vmatprep.subr.mxu0 0.0
  %1806 = vmatpush1.msra.mxu0 0.0
  %1807 = vmatprep.subr.mxu0 0.0
  %1808 = vmatpush1.msra.mxu0 0.0
  %1809 = vmatprep.subr.mxu0 0.0
  %1810 = vmatpush1.msra.mxu0 0.0
  %1811 = vmatprep.mubr.f32.mxu0 0.0
  %1812 = vmatmul.mubr.f32.gmra.mrb[0].mxu0 %v1664
  %v1813 = vpop.f32.mrb[0].mxu0
  %v1814 = vadd.f32 0.0, %v1813
  %v1815 = vpop.f32.mrb[0].mxu0
  %1816 = vmatprep.mubr.f32.mxu0 0.0
  %1817 = vmatmul.mubr.f32.gmra.mrb[0].mxu0 %v1667
  %v1818 = vpop.f32.mrb[0].mxu0
  %v1819 = vadd.f32 0.0, %v1818
  %v1820 = vpop.f32.mrb[0].mxu0
  %1821 = vdwg.mxu0
  %s1822 = scalar_lea.vmem %s5, 32
  %v1823 = vld [vmem:[%s1822] sm:$0xff]
  %v1824 = vld [vmem:[%s1822 + $0x8] sm:$0xff]
  %1825 = vmatprep.subr.mxu0 0.0
  %1826 = vmatpush1.msra.mxu0 %v1823
  %1827 = vmatprep.subr.mxu0 0.0
  %1828 = vmatpush1.msra.mxu0 %v1824
  %1829 = vmatprep.subr.mxu0 0.0
  %1830 = vmatpush1.msra.mxu0 0.0
  %1831 = vmatprep.subr.mxu0 0.0
  %1832 = vmatpush1.msra.mxu0 0.0
  %1833 = vmatprep.subr.mxu0 0.0
  %1834 = vmatpush1.msra.mxu0 0.0
  %1835 = vmatprep.subr.mxu0 0.0
  %1836 = vmatpush1.msra.mxu0 0.0
  %1837 = vmatprep.subr.mxu0 0.0
  %1838 = vmatpush1.msra.mxu0 0.0
  %1839 = vmatprep.subr.mxu0 0.0
  %1840 = vmatpush1.msra.mxu0 0.0
  %1841 = vmatprep.subr.mxu0 0.0
  %1842 = vmatpush1.msra.mxu0 0.0
  %1843 = vmatprep.subr.mxu0 0.0
  %1844 = vmatpush1.msra.mxu0 0.0
  %1845 = vmatprep.subr.mxu0 0.0
  %1846 = vmatpush1.msra.mxu0 0.0
  %1847 = vmatprep.subr.mxu0 0.0
  %1848 = vmatpush1.msra.mxu0 0.0
  %1849 = vmatprep.subr.mxu0 0.0
  %1850 = vmatpush1.msra.mxu0 0.0
  %1851 = vmatprep.subr.mxu0 0.0
  %1852 = vmatpush1.msra.mxu0 0.0
  %1853 = vmatprep.subr.mxu0 0.0
  %1854 = vmatpush1.msra.mxu0 0.0
  %1855 = vmatprep.subr.mxu0 0.0
  %1856 = vmatpush1.msra.mxu0 0.0
  %1857 = vmatprep.subr.mxu0 0.0
  %1858 = vmatpush1.msra.mxu0 0.0
  %1859 = vmatprep.subr.mxu0 0.0
  %1860 = vmatpush1.msra.mxu0 0.0
  %1861 = vmatprep.subr.mxu0 0.0
  %1862 = vmatpush1.msra.mxu0 0.0
  %1863 = vmatprep.subr.mxu0 0.0
  %1864 = vmatpush1.msra.mxu0 0.0
  %1865 = vmatprep.subr.mxu0 0.0
  %1866 = vmatpush1.msra.mxu0 0.0
  %1867 = vmatprep.subr.mxu0 0.0
  %1868 = vmatpush1.msra.mxu0 0.0
  %1869 = vmatprep.subr.mxu0 0.0
  %1870 = vmatpush1.msra.mxu0 0.0
  %1871 = vmatprep.subr.mxu0 0.0
  %1872 = vmatpush1.msra.mxu0 0.0
  %1873 = vmatprep.subr.mxu0 0.0
  %1874 = vmatpush1.msra.mxu0 0.0
  %1875 = vmatprep.subr.mxu0 0.0
  %1876 = vmatpush1.msra.mxu0 0.0
  %1877 = vmatprep.subr.mxu0 0.0
  %1878 = vmatpush1.msra.mxu0 0.0
  %1879 = vmatprep.subr.mxu0 0.0
  %1880 = vmatpush1.msra.mxu0 0.0
  %1881 = vmatprep.subr.mxu0 0.0
  %1882 = vmatpush1.msra.mxu0 0.0
  %1883 = vmatprep.subr.mxu0 0.0
  %1884 = vmatpush1.msra.mxu0 0.0
  %1885 = vmatprep.subr.mxu0 0.0
  %1886 = vmatpush1.msra.mxu0 0.0
  %1887 = vmatprep.subr.mxu0 0.0
  %1888 = vmatpush1.msra.mxu0 0.0
  %1889 = vmatprep.mubr.f32.mxu0 0.0
  %1890 = vmatmul.mubr.f32.gmra.mrb[0].mxu0 %v1664
  %v1891 = vpop.f32.mrb[0].mxu0
  %v1892 = vadd.f32 0.0, %v1891
  %v1893 = vpop.f32.mrb[0].mxu0
  %1894 = vmatprep.mubr.f32.mxu0 0.0
  %1895 = vmatmul.mubr.f32.gmra.mrb[0].mxu0 %v1667
  %v1896 = vpop.f32.mrb[0].mxu0
  %v1897 = vadd.f32 0.0, %v1896
  %v1898 = vpop.f32.mrb[0].mxu0
  %1899 = vdwg.mxu0
  %v1901 = vsel %vm337, %v1736, 0
  %v1904 = vsel %vm337, %v1814, 0
  %1906 = vmatprep.subr.mxu0 0.0
  %1907 = vmatpush1.xpose.msra.mxu0 %v1904
  %1908 = vmatprep.subr.mxu0 0.0
  %1909 = vmatpush1.xpose.msra.mxu0 0.0
  %1910 = vmatprep.subr.mxu0 0.0
  %1911 = vmatpush1.xpose.msra.mxu0 0.0
  %1912 = vmatprep.subr.mxu0 0.0
  %1913 = vmatpush1.xpose.msra.mxu0 0.0
  %1914 = vmatprep.subr.mxu0 0.0
  %1915 = vmatpush1.xpose.msra.mxu0 0.0
  %1916 = vmatprep.subr.mxu0 0.0
  %1917 = vmatpush1.xpose.msra.mxu0 0.0
  %1918 = vmatprep.subr.mxu0 0.0
  %1919 = vmatpush1.xpose.msra.mxu0 0.0
  %1920 = vmatprep.subr.mxu0 0.0
  %1921 = vmatpush1.xpose.msra.mxu0 0.0
  %1922 = vmatprep.subr.mxu0 0.0
  %1923 = vmatpush1.xpose.msra.mxu0 0.0
  %1924 = vmatprep.subr.mxu0 0.0
  %1925 = vmatpush1.xpose.msra.mxu0 0.0
  %1926 = vmatprep.subr.mxu0 0.0
  %1927 = vmatpush1.xpose.msra.mxu0 0.0
  %1928 = vmatprep.subr.mxu0 0.0
  %1929 = vmatpush1.xpose.msra.mxu0 0.0
  %1930 = vmatprep.subr.mxu0 0.0
  %1931 = vmatpush1.xpose.msra.mxu0 0.0
  %1932 = vmatprep.subr.mxu0 0.0
  %1933 = vmatpush1.xpose.msra.mxu0 0.0
  %1934 = vmatprep.subr.mxu0 0.0
  %1935 = vmatpush1.xpose.msra.mxu0 0.0
  %1936 = vmatprep.subr.mxu0 0.0
  %1937 = vmatpush1.xpose.msra.mxu0 0.0
  %1938 = vmatprep.subr.mxu0 0.0
  %1939 = vmatpush1.xpose.msra.mxu0 0.0
  %1940 = vmatprep.subr.mxu0 0.0
  %1941 = vmatpush1.xpose.msra.mxu0 0.0
  %1942 = vmatprep.subr.mxu0 0.0
  %1943 = vmatpush1.xpose.msra.mxu0 0.0
  %1944 = vmatprep.subr.mxu0 0.0
  %1945 = vmatpush1.xpose.msra.mxu0 0.0
  %1946 = vmatprep.subr.mxu0 0.0
  %1947 = vmatpush1.xpose.msra.mxu0 0.0
  %1948 = vmatprep.subr.mxu0 0.0
  %1949 = vmatpush1.xpose.msra.mxu0 0.0
  %1950 = vmatprep.subr.mxu0 0.0
  %1951 = vmatpush1.xpose.msra.mxu0 0.0
  %1952 = vmatprep.subr.mxu0 0.0
  %1953 = vmatpush1.xpose.msra.mxu0 0.0
  %1954 = vmatprep.subr.mxu0 0.0
  %1955 = vmatpush1.xpose.msra.mxu0 0.0
  %1956 = vmatprep.subr.mxu0 0.0
  %1957 = vmatpush1.xpose.msra.mxu0 0.0
  %1958 = vmatprep.subr.mxu0 0.0
  %1959 = vmatpush1.xpose.msra.mxu0 0.0
  %1960 = vmatprep.subr.mxu0 0.0
  %1961 = vmatpush1.xpose.msra.mxu0 0.0
  %1962 = vmatprep.subr.mxu0 0.0
  %1963 = vmatpush1.xpose.msra.mxu0 0.0
  %1964 = vmatprep.subr.mxu0 0.0
  %1965 = vmatpush1.xpose.msra.mxu0 0.0
  %1966 = vmatprep.subr.mxu0 0.0
  %1967 = vmatpush1.xpose.msra.mxu0 0.0
  %1968 = vmatprep.subr.mxu0 0.0
  %1969 = vmatpush1.xpose.msra.mxu0 0.0
  %1970 = vmatprep.mubr.f32.mxu0 0.0
  %1971 = vmatmul.mubr.f32.gmra.mrb[0].mxu0 %v1901
  %v1972 = vpop.f32.mrb[0].mxu0
  %v1973 = vadd.f32 0.0, %v1972
  %v1974 = vpop.f32.mrb[0].mxu0
  %1975 = vdwg.mxu0
  %v1977 = vsel %vm337, %v1741, 0
  %v1980 = vsel %vm337, %v1819, 0
  %1982 = vmatprep.subr.mxu0 0.0
  %1983 = vmatpush1.xpose.msra.mxu0 %v1980
  %1984 = vmatprep.subr.mxu0 0.0
  %1985 = vmatpush1.xpose.msra.mxu0 0.0
  %1986 = vmatprep.subr.mxu0 0.0
  %1987 = vmatpush1.xpose.msra.mxu0 0.0
  %1988 = vmatprep.subr.mxu0 0.0
  %1989 = vmatpush1.xpose.msra.mxu0 0.0
  %1990 = vmatprep.subr.mxu0 0.0
  %1991 = vmatpush1.xpose.msra.mxu0 0.0
  %1992 = vmatprep.subr.mxu0 0.0
  %1993 = vmatpush1.xpose.msra.mxu0 0.0
  %1994 = vmatprep.subr.mxu0 0.0
  %1995 = vmatpush1.xpose.msra.mxu0 0.0
  %1996 = vmatprep.subr.mxu0 0.0
  %1997 = vmatpush1.xpose.msra.mxu0 0.0
  %1998 = vmatprep.subr.mxu0 0.0
  %1999 = vmatpush1.xpose.msra.mxu0 0.0
  %2000 = vmatprep.subr.mxu0 0.0
  %2001 = vmatpush1.xpose.msra.mxu0 0.0
  %2002 = vmatprep.subr.mxu0 0.0
  %2003 = vmatpush1.xpose.msra.mxu0 0.0
  %2004 = vmatprep.subr.mxu0 0.0
  %2005 = vmatpush1.xpose.msra.mxu0 0.0
  %2006 = vmatprep.subr.mxu0 0.0
  %2007 = vmatpush1.xpose.msra.mxu0 0.0
  %2008 = vmatprep.subr.mxu0 0.0
  %2009 = vmatpush1.xpose.msra.mxu0 0.0
  %2010 = vmatprep.subr.mxu0 0.0
  %2011 = vmatpush1.xpose.msra.mxu0 0.0
  %2012 = vmatprep.subr.mxu0 0.0
  %2013 = vmatpush1.xpose.msra.mxu0 0.0
  %2014 = vmatprep.subr.mxu0 0.0
  %2015 = vmatpush1.xpose.msra.mxu0 0.0
  %2016 = vmatprep.subr.mxu0 0.0
  %2017 = vmatpush1.xpose.msra.mxu0 0.0
  %2018 = vmatprep.subr.mxu0 0.0
  %2019 = vmatpush1.xpose.msra.mxu0 0.0
  %2020 = vmatprep.subr.mxu0 0.0
  %2021 = vmatpush1.xpose.msra.mxu0 0.0
  %2022 = vmatprep.subr.mxu0 0.0
  %2023 = vmatpush1.xpose.msra.mxu0 0.0
  %2024 = vmatprep.subr.mxu0 0.0
  %2025 = vmatpush1.xpose.msra.mxu0 0.0
  %2026 = vmatprep.subr.mxu0 0.0
  %2027 = vmatpush1.xpose.msra.mxu0 0.0
  %2028 = vmatprep.subr.mxu0 0.0
  %2029 = vmatpush1.xpose.msra.mxu0 0.0
  %2030 = vmatprep.subr.mxu0 0.0
  %2031 = vmatpush1.xpose.msra.mxu0 0.0
  %2032 = vmatprep.subr.mxu0 0.0
  %2033 = vmatpush1.xpose.msra.mxu0 0.0
  %2034 = vmatprep.subr.mxu0 0.0
  %2035 = vmatpush1.xpose.msra.mxu0 0.0
  %2036 = vmatprep.subr.mxu0 0.0
  %2037 = vmatpush1.xpose.msra.mxu0 0.0
  %2038 = vmatprep.subr.mxu0 0.0
  %2039 = vmatpush1.xpose.msra.mxu0 0.0
  %2040 = vmatprep.subr.mxu0 0.0
  %2041 = vmatpush1.xpose.msra.mxu0 0.0
  %2042 = vmatprep.subr.mxu0 0.0
  %2043 = vmatpush1.xpose.msra.mxu0 0.0
  %2044 = vmatprep.subr.mxu0 0.0
  %2045 = vmatpush1.xpose.msra.mxu0 0.0
  %2046 = vmatprep.mubr.f32.mxu0 0.0
  %2047 = vmatmul.mubr.f32.gmra.mrb[0].mxu0 %v1977
  %v2048 = vpop.f32.mrb[0].mxu0
  %v2049 = vadd.f32 0.0, %v2048
  %v2050 = vpop.f32.mrb[0].mxu0
  %2051 = vdwg.mxu0
  %v2052 = vmul.f32 %v1973, 0.35355338
  %v2053 = vmul.f32 %v2049, 0.35355338
  %v2054 = vsel %vm337, %v2052, -inf
  %2055 = vmax.xlane.f32.xlu0 %v2054
  %v2056 = vpop.xlane.xlu0 %2055
  %v2057 = vsel %vm337, %v2053, -inf
  %2058 = vmax.xlane.f32.xlu0 %v2057
  %v2059 = vpop.xlane.xlu0 %2058
  %v2060 = vsub.f32 %v2052, %v2056
  %v2061 = vsub.f32 %v2053, %v2059
  %v2062 = vmul.f32 %v2060, 1.442695
  %v2063 = vpow.pop %v2062
  %v2064 = vmul.f32 %v2061, 1.442695
  %v2065 = vpow.pop %v2064
  %v2066 = vsel %vm337, %v2063, 0.0
  %2067 = vadd.xlane.f32.xlu0 %v2066
  %v2068 = vpop.xlane.xlu0 %2067
  %v2069 = vsel %vm337, %v2065, 0.0
  %2070 = vadd.xlane.f32.xlu0 %v2069
  %v2071 = vpop.xlane.xlu0 %2070
  %v2072 = vrcp.pop %v2068
  %v2073 = vrcp.pop %v2071
  %v2074 = vmul.f32 %v2063, %v2072
  %v2075 = vmul.f32 %v2065, %v2073
  %v2077 = vsel %vm337, %v2074, 0
  %2079 = vmatprep.subr.mxu0 0.0
  %2080 = vmatpush1.msra.mxu0 %v1892
  %2081 = vmatprep.subr.mxu0 0.0
  %2082 = vmatpush1.msra.mxu0 0.0
  %2083 = vmatprep.subr.mxu0 0.0
  %2084 = vmatpush1.msra.mxu0 0.0
  %2085 = vmatprep.subr.mxu0 0.0
  %2086 = vmatpush1.msra.mxu0 0.0
  %2087 = vmatprep.subr.mxu0 0.0
  %2088 = vmatpush1.msra.mxu0 0.0
  %2089 = vmatprep.subr.mxu0 0.0
  %2090 = vmatpush1.msra.mxu0 0.0
  %2091 = vmatprep.subr.mxu0 0.0
  %2092 = vmatpush1.msra.mxu0 0.0
  %2093 = vmatprep.subr.mxu0 0.0
  %2094 = vmatpush1.msra.mxu0 0.0
  %2095 = vmatprep.subr.mxu0 0.0
  %2096 = vmatpush1.msra.mxu0 0.0
  %2097 = vmatprep.subr.mxu0 0.0
  %2098 = vmatpush1.msra.mxu0 0.0
  %2099 = vmatprep.subr.mxu0 0.0
  %2100 = vmatpush1.msra.mxu0 0.0
  %2101 = vmatprep.subr.mxu0 0.0
  %2102 = vmatpush1.msra.mxu0 0.0
  %2103 = vmatprep.subr.mxu0 0.0
  %2104 = vmatpush1.msra.mxu0 0.0
  %2105 = vmatprep.subr.mxu0 0.0
  %2106 = vmatpush1.msra.mxu0 0.0
  %2107 = vmatprep.subr.mxu0 0.0
  %2108 = vmatpush1.msra.mxu0 0.0
  %2109 = vmatprep.subr.mxu0 0.0
  %2110 = vmatpush1.msra.mxu0 0.0
  %2111 = vmatprep.subr.mxu0 0.0
  %2112 = vmatpush1.msra.mxu0 0.0
  %2113 = vmatprep.subr.mxu0 0.0
  %2114 = vmatpush1.msra.mxu0 0.0
  %2115 = vmatprep.subr.mxu0 0.0
  %2116 = vmatpush1.msra.mxu0 0.0
  %2117 = vmatprep.subr.mxu0 0.0
  %2118 = vmatpush1.msra.mxu0 0.0
  %2119 = vmatprep.subr.mxu0 0.0
  %2120 = vmatpush1.msra.mxu0 0.0
  %2121 = vmatprep.subr.mxu0 0.0
  %2122 = vmatpush1.msra.mxu0 0.0
  %2123 = vmatprep.subr.mxu0 0.0
  %2124 = vmatpush1.msra.mxu0 0.0
  %2125 = vmatprep.subr.mxu0 0.0
  %2126 = vmatpush1.msra.mxu0 0.0
  %2127 = vmatprep.subr.mxu0 0.0
  %2128 = vmatpush1.msra.mxu0 0.0
  %2129 = vmatprep.subr.mxu0 0.0
  %2130 = vmatpush1.msra.mxu0 0.0
  %2131 = vmatprep.subr.mxu0 0.0
  %2132 = vmatpush1.msra.mxu0 0.0
  %2133 = vmatprep.subr.mxu0 0.0
  %2134 = vmatpush1.msra.mxu0 0.0
  %2135 = vmatprep.subr.mxu0 0.0
  %2136 = vmatpush1.msra.mxu0 0.0
  %2137 = vmatprep.subr.mxu0 0.0
  %2138 = vmatpush1.msra.mxu0 0.0
  %2139 = vmatprep.subr.mxu0 0.0
  %2140 = vmatpush1.msra.mxu0 0.0
  %2141 = vmatprep.subr.mxu0 0.0
  %2142 = vmatpush1.msra.mxu0 0.0
  %2143 = vmatprep.mubr.f32.mxu0 0.0
  %2144 = vmatmul.mubr.f32.gmra.mrb[0].mxu0 %v2077
  %v2145 = vpop.f32.mrb[0].mxu0
  %v2146 = vadd.f32 0.0, %v2145
  %v2147 = vpop.f32.mrb[0].mxu0
  %2148 = vdwg.mxu0
  %v2150 = vsel %vm337, %v2075, 0
  %2152 = vmatprep.subr.mxu0 0.0
  %2153 = vmatpush1.msra.mxu0 %v1897
  %2154 = vmatprep.subr.mxu0 0.0
  %2155 = vmatpush1.msra.mxu0 0.0
  %2156 = vmatprep.subr.mxu0 0.0
  %2157 = vmatpush1.msra.mxu0 0.0
  %2158 = vmatprep.subr.mxu0 0.0
  %2159 = vmatpush1.msra.mxu0 0.0
  %2160 = vmatprep.subr.mxu0 0.0
  %2161 = vmatpush1.msra.mxu0 0.0
  %2162 = vmatprep.subr.mxu0 0.0
  %2163 = vmatpush1.msra.mxu0 0.0
  %2164 = vmatprep.subr.mxu0 0.0
  %2165 = vmatpush1.msra.mxu0 0.0
  %2166 = vmatprep.subr.mxu0 0.0
  %2167 = vmatpush1.msra.mxu0 0.0
  %2168 = vmatprep.subr.mxu0 0.0
  %2169 = vmatpush1.msra.mxu0 0.0
  %2170 = vmatprep.subr.mxu0 0.0
  %2171 = vmatpush1.msra.mxu0 0.0
  %2172 = vmatprep.subr.mxu0 0.0
  %2173 = vmatpush1.msra.mxu0 0.0
  %2174 = vmatprep.subr.mxu0 0.0
  %2175 = vmatpush1.msra.mxu0 0.0
  %2176 = vmatprep.subr.mxu0 0.0
  %2177 = vmatpush1.msra.mxu0 0.0
  %2178 = vmatprep.subr.mxu0 0.0
  %2179 = vmatpush1.msra.mxu0 0.0
  %2180 = vmatprep.subr.mxu0 0.0
  %2181 = vmatpush1.msra.mxu0 0.0
  %2182 = vmatprep.subr.mxu0 0.0
  %2183 = vmatpush1.msra.mxu0 0.0
  %2184 = vmatprep.subr.mxu0 0.0
  %2185 = vmatpush1.msra.mxu0 0.0
  %2186 = vmatprep.subr.mxu0 0.0
  %2187 = vmatpush1.msra.mxu0 0.0
  %2188 = vmatprep.subr.mxu0 0.0
  %2189 = vmatpush1.msra.mxu0 0.0
  %2190 = vmatprep.subr.mxu0 0.0
  %2191 = vmatpush1.msra.mxu0 0.0
  %2192 = vmatprep.subr.mxu0 0.0
  %2193 = vmatpush1.msra.mxu0 0.0
  %2194 = vmatprep.subr.mxu0 0.0
  %2195 = vmatpush1.msra.mxu0 0.0
  %2196 = vmatprep.subr.mxu0 0.0
  %2197 = vmatpush1.msra.mxu0 0.0
  %2198 = vmatprep.subr.mxu0 0.0
  %2199 = vmatpush1.msra.mxu0 0.0
  %2200 = vmatprep.subr.mxu0 0.0
  %2201 = vmatpush1.msra.mxu0 0.0
  %2202 = vmatprep.subr.mxu0 0.0
  %2203 = vmatpush1.msra.mxu0 0.0
  %2204 = vmatprep.subr.mxu0 0.0
  %2205 = vmatpush1.msra.mxu0 0.0
  %2206 = vmatprep.subr.mxu0 0.0
  %2207 = vmatpush1.msra.mxu0 0.0
  %2208 = vmatprep.subr.mxu0 0.0
  %2209 = vmatpush1.msra.mxu0 0.0
  %2210 = vmatprep.subr.mxu0 0.0
  %2211 = vmatpush1.msra.mxu0 0.0
  %2212 = vmatprep.subr.mxu0 0.0
  %2213 = vmatpush1.msra.mxu0 0.0
  %2214 = vmatprep.subr.mxu0 0.0
  %2215 = vmatpush1.msra.mxu0 0.0
  %2216 = vmatprep.mubr.f32.mxu0 0.0
  %2217 = vmatmul.mubr.f32.gmra.mrb[0].mxu0 %v2150
  %v2218 = vpop.f32.mrb[0].mxu0
  %v2219 = vadd.f32 0.0, %v2218
  %v2220 = vpop.f32.mrb[0].mxu0
  %2221 = vdwg.mxu0
  %s2222 = scalar_lea.vmem %s6, 16
  %v2223 = vld [vmem:[%s2222] sm:$0xff]
  %s2224 = scalar_lea.vmem %s3, 48
  %v2225 = vld [vmem:[%s2224] sm:$0xff]
  %v2226 = vld [vmem:[%s2224 + $0x8] sm:$0xff]
  %2227 = vmatprep.subr.mxu0 0.0
  %2228 = vmatpush1.msra.mxu0 %v2225
  %2229 = vmatprep.subr.mxu0 0.0
  %2230 = vmatpush1.msra.mxu0 %v2226
  %2231 = vmatprep.subr.mxu0 0.0
  %2232 = vmatpush1.msra.mxu0 0.0
  %2233 = vmatprep.subr.mxu0 0.0
  %2234 = vmatpush1.msra.mxu0 0.0
  %2235 = vmatprep.subr.mxu0 0.0
  %2236 = vmatpush1.msra.mxu0 0.0
  %2237 = vmatprep.subr.mxu0 0.0
  %2238 = vmatpush1.msra.mxu0 0.0
  %2239 = vmatprep.subr.mxu0 0.0
  %2240 = vmatpush1.msra.mxu0 0.0
  %2241 = vmatprep.subr.mxu0 0.0
  %2242 = vmatpush1.msra.mxu0 0.0
  %2243 = vmatprep.subr.mxu0 0.0
  %2244 = vmatpush1.msra.mxu0 0.0
  %2245 = vmatprep.subr.mxu0 0.0
  %2246 = vmatpush1.msra.mxu0 0.0
  %2247 = vmatprep.subr.mxu0 0.0
  %2248 = vmatpush1.msra.mxu0 0.0
  %2249 = vmatprep.subr.mxu0 0.0
  %2250 = vmatpush1.msra.mxu0 0.0
  %2251 = vmatprep.subr.mxu0 0.0
  %2252 = vmatpush1.msra.mxu0 0.0
  %2253 = vmatprep.subr.mxu0 0.0
  %2254 = vmatpush1.msra.mxu0 0.0
  %2255 = vmatprep.subr.mxu0 0.0
  %2256 = vmatpush1.msra.mxu0 0.0
  %2257 = vmatprep.subr.mxu0 0.0
  %2258 = vmatpush1.msra.mxu0 0.0
  %2259 = vmatprep.subr.mxu0 0.0
  %2260 = vmatpush1.msra.mxu0 0.0
  %2261 = vmatprep.subr.mxu0 0.0
  %2262 = vmatpush1.msra.mxu0 0.0
  %2263 = vmatprep.subr.mxu0 0.0
  %2264 = vmatpush1.msra.mxu0 0.0
  %2265 = vmatprep.subr.mxu0 0.0
  %2266 = vmatpush1.msra.mxu0 0.0
  %2267 = vmatprep.subr.mxu0 0.0
  %2268 = vmatpush1.msra.mxu0 0.0
  %2269 = vmatprep.subr.mxu0 0.0
  %2270 = vmatpush1.msra.mxu0 0.0
  %2271 = vmatprep.subr.mxu0 0.0
  %2272 = vmatpush1.msra.mxu0 0.0
  %2273 = vmatprep.subr.mxu0 0.0
  %2274 = vmatpush1.msra.mxu0 0.0
  %2275 = vmatprep.subr.mxu0 0.0
  %2276 = vmatpush1.msra.mxu0 0.0
  %2277 = vmatprep.subr.mxu0 0.0
  %2278 = vmatpush1.msra.mxu0 0.0
  %2279 = vmatprep.subr.mxu0 0.0
  %2280 = vmatpush1.msra.mxu0 0.0
  %2281 = vmatprep.subr.mxu0 0.0
  %2282 = vmatpush1.msra.mxu0 0.0
  %2283 = vmatprep.subr.mxu0 0.0
  %2284 = vmatpush1.msra.mxu0 0.0
  %2285 = vmatprep.subr.mxu0 0.0
  %2286 = vmatpush1.msra.mxu0 0.0
  %2287 = vmatprep.subr.mxu0 0.0
  %2288 = vmatpush1.msra.mxu0 0.0
  %2289 = vmatprep.subr.mxu0 0.0
  %2290 = vmatpush1.msra.mxu0 0.0
  %2291 = vmatprep.mubr.f32.mxu0 0.0
  %2292 = vmatmul.mubr.f32.gmra.mrb[0].mxu0 %v1664
  %v2293 = vpop.f32.mrb[0].mxu0
  %v2294 = vadd.f32 0.0, %v2293
  %v2295 = vpop.f32.mrb[0].mxu0
  %2296 = vmatprep.mubr.f32.mxu0 0.0
  %2297 = vmatmul.mubr.f32.gmra.mrb[0].mxu0 %v1667
  %v2298 = vpop.f32.mrb[0].mxu0
  %v2299 = vadd.f32 0.0, %v2298
  %v2300 = vpop.f32.mrb[0].mxu0
  %2301 = vdwg.mxu0
  %s2302 = scalar_lea.vmem %s4, 48
  %v2303 = vld [vmem:[%s2302] sm:$0xff]
  %v2304 = vld [vmem:[%s2302 + $0x8] sm:$0xff]
  %2305 = vmatprep.subr.mxu0 0.0
  %2306 = vmatpush1.msra.mxu0 %v2303
  %2307 = vmatprep.subr.mxu0 0.0
  %2308 = vmatpush1.msra.mxu0 %v2304
  %2309 = vmatprep.subr.mxu0 0.0
  %2310 = vmatpush1.msra.mxu0 0.0
  %2311 = vmatprep.subr.mxu0 0.0
  %2312 = vmatpush1.msra.mxu0 0.0
  %2313 = vmatprep.subr.mxu0 0.0
  %2314 = vmatpush1.msra.mxu0 0.0
  %2315 = vmatprep.subr.mxu0 0.0
  %2316 = vmatpush1.msra.mxu0 0.0
  %2317 = vmatprep.subr.mxu0 0.0
  %2318 = vmatpush1.msra.mxu0 0.0
  %2319 = vmatprep.subr.mxu0 0.0
  %2320 = vmatpush1.msra.mxu0 0.0
  %2321 = vmatprep.subr.mxu0 0.0
  %2322 = vmatpush1.msra.mxu0 0.0
  %2323 = vmatprep.subr.mxu0 0.0
  %2324 = vmatpush1.msra.mxu0 0.0
  %2325 = vmatprep.subr.mxu0 0.0
  %2326 = vmatpush1.msra.mxu0 0.0
  %2327 = vmatprep.subr.mxu0 0.0
  %2328 = vmatpush1.msra.mxu0 0.0
  %2329 = vmatprep.subr.mxu0 0.0
  %2330 = vmatpush1.msra.mxu0 0.0
  %2331 = vmatprep.subr.mxu0 0.0
  %2332 = vmatpush1.msra.mxu0 0.0
  %2333 = vmatprep.subr.mxu0 0.0
  %2334 = vmatpush1.msra.mxu0 0.0
  %2335 = vmatprep.subr.mxu0 0.0
  %2336 = vmatpush1.msra.mxu0 0.0
  %2337 = vmatprep.subr.mxu0 0.0
  %2338 = vmatpush1.msra.mxu0 0.0
  %2339 = vmatprep.subr.mxu0 0.0
  %2340 = vmatpush1.msra.mxu0 0.0
  %2341 = vmatprep.subr.mxu0 0.0
  %2342 = vmatpush1.msra.mxu0 0.0
  %2343 = vmatprep.subr.mxu0 0.0
  %2344 = vmatpush1.msra.mxu0 0.0
  %2345 = vmatprep.subr.mxu0 0.0
  %2346 = vmatpush1.msra.mxu0 0.0
  %2347 = vmatprep.subr.mxu0 0.0
  %2348 = vmatpush1.msra.mxu0 0.0
  %2349 = vmatprep.subr.mxu0 0.0
  %2350 = vmatpush1.msra.mxu0 0.0
  %2351 = vmatprep.subr.mxu0 0.0
  %2352 = vmatpush1.msra.mxu0 0.0
  %2353 = vmatprep.subr.mxu0 0.0
  %2354 = vmatpush1.msra.mxu0 0.0
  %2355 = vmatprep.subr.mxu0 0.0
  %2356 = vmatpush1.msra.mxu0 0.0
  %2357 = vmatprep.subr.mxu0 0.0
  %2358 = vmatpush1.msra.mxu0 0.0
  %2359 = vmatprep.subr.mxu0 0.0
  %2360 = vmatpush1.msra.mxu0 0.0
  %2361 = vmatprep.subr.mxu0 0.0
  %2362 = vmatpush1.msra.mxu0 0.0
  %2363 = vmatprep.subr.mxu0 0.0
  %2364 = vmatpush1.msra.mxu0 0.0
  %2365 = vmatprep.subr.mxu0 0.0
  %2366 = vmatpush1.msra.mxu0 0.0
  %2367 = vmatprep.subr.mxu0 0.0
  %2368 = vmatpush1.msra.mxu0 0.0
  %2369 = vmatprep.mubr.f32.mxu0 0.0
  %2370 = vmatmul.mubr.f32.gmra.mrb[0].mxu0 %v1664
  %v2371 = vpop.f32.mrb[0].mxu0
  %v2372 = vadd.f32 0.0, %v2371
  %v2373 = vpop.f32.mrb[0].mxu0
  %2374 = vmatprep.mubr.f32.mxu0 0.0
  %2375 = vmatmul.mubr.f32.gmra.mrb[0].mxu0 %v1667
  %v2376 = vpop.f32.mrb[0].mxu0
  %v2377 = vadd.f32 0.0, %v2376
  %v2378 = vpop.f32.mrb[0].mxu0
  %2379 = vdwg.mxu0
  %s2380 = scalar_lea.vmem %s5, 48
  %v2381 = vld [vmem:[%s2380] sm:$0xff]
  %v2382 = vld [vmem:[%s2380 + $0x8] sm:$0xff]
  %2383 = vmatprep.subr.mxu0 0.0
  %2384 = vmatpush1.msra.mxu0 %v2381
  %2385 = vmatprep.subr.mxu0 0.0
  %2386 = vmatpush1.msra.mxu0 %v2382
  %2387 = vmatprep.subr.mxu0 0.0
  %2388 = vmatpush1.msra.mxu0 0.0
  %2389 = vmatprep.subr.mxu0 0.0
  %2390 = vmatpush1.msra.mxu0 0.0
  %2391 = vmatprep.subr.mxu0 0.0
  %2392 = vmatpush1.msra.mxu0 0.0
  %2393 = vmatprep.subr.mxu0 0.0
  %2394 = vmatpush1.msra.mxu0 0.0
  %2395 = vmatprep.subr.mxu0 0.0
  %2396 = vmatpush1.msra.mxu0 0.0
  %2397 = vmatprep.subr.mxu0 0.0
  %2398 = vmatpush1.msra.mxu0 0.0
  %2399 = vmatprep.subr.mxu0 0.0
  %2400 = vmatpush1.msra.mxu0 0.0
  %2401 = vmatprep.subr.mxu0 0.0
  %2402 = vmatpush1.msra.mxu0 0.0
  %2403 = vmatprep.subr.mxu0 0.0
  %2404 = vmatpush1.msra.mxu0 0.0
  %2405 = vmatprep.subr.mxu0 0.0
  %2406 = vmatpush1.msra.mxu0 0.0
  %2407 = vmatprep.subr.mxu0 0.0
  %2408 = vmatpush1.msra.mxu0 0.0
  %2409 = vmatprep.subr.mxu0 0.0
  %2410 = vmatpush1.msra.mxu0 0.0
  %2411 = vmatprep.subr.mxu0 0.0
  %2412 = vmatpush1.msra.mxu0 0.0
  %2413 = vmatprep.subr.mxu0 0.0
  %2414 = vmatpush1.msra.mxu0 0.0
  %2415 = vmatprep.subr.mxu0 0.0
  %2416 = vmatpush1.msra.mxu0 0.0
  %2417 = vmatprep.subr.mxu0 0.0
  %2418 = vmatpush1.msra.mxu0 0.0
  %2419 = vmatprep.subr.mxu0 0.0
  %2420 = vmatpush1.msra.mxu0 0.0
  %2421 = vmatprep.subr.mxu0 0.0
  %2422 = vmatpush1.msra.mxu0 0.0
  %2423 = vmatprep.subr.mxu0 0.0
  %2424 = vmatpush1.msra.mxu0 0.0
  %2425 = vmatprep.subr.mxu0 0.0
  %2426 = vmatpush1.msra.mxu0 0.0
  %2427 = vmatprep.subr.mxu0 0.0
  %2428 = vmatpush1.msra.mxu0 0.0
  %2429 = vmatprep.subr.mxu0 0.0
  %2430 = vmatpush1.msra.mxu0 0.0
  %2431 = vmatprep.subr.mxu0 0.0
  %2432 = vmatpush1.msra.mxu0 0.0
  %2433 = vmatprep.subr.mxu0 0.0
  %2434 = vmatpush1.msra.mxu0 0.0
  %2435 = vmatprep.subr.mxu0 0.0
  %2436 = vmatpush1.msra.mxu0 0.0
  %2437 = vmatprep.subr.mxu0 0.0
  %2438 = vmatpush1.msra.mxu0 0.0
  %2439 = vmatprep.subr.mxu0 0.0
  %2440 = vmatpush1.msra.mxu0 0.0
  %2441 = vmatprep.subr.mxu0 0.0
  %2442 = vmatpush1.msra.mxu0 0.0
  %2443 = vmatprep.subr.mxu0 0.0
  %2444 = vmatpush1.msra.mxu0 0.0
  %2445 = vmatprep.subr.mxu0 0.0
  %2446 = vmatpush1.msra.mxu0 0.0
  %2447 = vmatprep.mubr.f32.mxu0 0.0
  %2448 = vmatmul.mubr.f32.gmra.mrb[0].mxu0 %v1664
  %v2449 = vpop.f32.mrb[0].mxu0
  %v2450 = vadd.f32 0.0, %v2449
  %v2451 = vpop.f32.mrb[0].mxu0
  %2452 = vmatprep.mubr.f32.mxu0 0.0
  %2453 = vmatmul.mubr.f32.gmra.mrb[0].mxu0 %v1667
  %v2454 = vpop.f32.mrb[0].mxu0
  %v2455 = vadd.f32 0.0, %v2454
  %v2456 = vpop.f32.mrb[0].mxu0
  %2457 = vdwg.mxu0
  %v2459 = vsel %vm337, %v2294, 0
  %v2462 = vsel %vm337, %v2372, 0
  %2464 = vmatprep.subr.mxu0 0.0
  %2465 = vmatpush1.xpose.msra.mxu0 %v2462
  %2466 = vmatprep.subr.mxu0 0.0
  %2467 = vmatpush1.xpose.msra.mxu0 0.0
  %2468 = vmatprep.subr.mxu0 0.0
  %2469 = vmatpush1.xpose.msra.mxu0 0.0
  %2470 = vmatprep.subr.mxu0 0.0
  %2471 = vmatpush1.xpose.msra.mxu0 0.0
  %2472 = vmatprep.subr.mxu0 0.0
  %2473 = vmatpush1.xpose.msra.mxu0 0.0
  %2474 = vmatprep.subr.mxu0 0.0
  %2475 = vmatpush1.xpose.msra.mxu0 0.0
  %2476 = vmatprep.subr.mxu0 0.0
  %2477 = vmatpush1.xpose.msra.mxu0 0.0
  %2478 = vmatprep.subr.mxu0 0.0
  %2479 = vmatpush1.xpose.msra.mxu0 0.0
  %2480 = vmatprep.subr.mxu0 0.0
  %2481 = vmatpush1.xpose.msra.mxu0 0.0
  %2482 = vmatprep.subr.mxu0 0.0
  %2483 = vmatpush1.xpose.msra.mxu0 0.0
  %2484 = vmatprep.subr.mxu0 0.0
  %2485 = vmatpush1.xpose.msra.mxu0 0.0
  %2486 = vmatprep.subr.mxu0 0.0
  %2487 = vmatpush1.xpose.msra.mxu0 0.0
  %2488 = vmatprep.subr.mxu0 0.0
  %2489 = vmatpush1.xpose.msra.mxu0 0.0
  %2490 = vmatprep.subr.mxu0 0.0
  %2491 = vmatpush1.xpose.msra.mxu0 0.0
  %2492 = vmatprep.subr.mxu0 0.0
  %2493 = vmatpush1.xpose.msra.mxu0 0.0
  %2494 = vmatprep.subr.mxu0 0.0
  %2495 = vmatpush1.xpose.msra.mxu0 0.0
  %2496 = vmatprep.subr.mxu0 0.0
  %2497 = vmatpush1.xpose.msra.mxu0 0.0
  %2498 = vmatprep.subr.mxu0 0.0
  %2499 = vmatpush1.xpose.msra.mxu0 0.0
  %2500 = vmatprep.subr.mxu0 0.0
  %2501 = vmatpush1.xpose.msra.mxu0 0.0
  %2502 = vmatprep.subr.mxu0 0.0
  %2503 = vmatpush1.xpose.msra.mxu0 0.0
  %2504 = vmatprep.subr.mxu0 0.0
  %2505 = vmatpush1.xpose.msra.mxu0 0.0
  %2506 = vmatprep.subr.mxu0 0.0
  %2507 = vmatpush1.xpose.msra.mxu0 0.0
  %2508 = vmatprep.subr.mxu0 0.0
  %2509 = vmatpush1.xpose.msra.mxu0 0.0
  %2510 = vmatprep.subr.mxu0 0.0
  %2511 = vmatpush1.xpose.msra.mxu0 0.0
  %2512 = vmatprep.subr.mxu0 0.0
  %2513 = vmatpush1.xpose.msra.mxu0 0.0
  %2514 = vmatprep.subr.mxu0 0.0
  %2515 = vmatpush1.xpose.msra.mxu0 0.0
  %2516 = vmatprep.subr.mxu0 0.0
  %2517 = vmatpush1.xpose.msra.mxu0 0.0
  %2518 = vmatprep.subr.mxu0 0.0
  %2519 = vmatpush1.xpose.msra.mxu0 0.0
  %2520 = vmatprep.subr.mxu0 0.0
  %2521 = vmatpush1.xpose.msra.mxu0 0.0
  %2522 = vmatprep.subr.mxu0 0.0
  %2523 = vmatpush1.xpose.msra.mxu0 0.0
  %2524 = vmatprep.subr.mxu0 0.0
  %2525 = vmatpush1.xpose.msra.mxu0 0.0
  %2526 = vmatprep.subr.mxu0 0.0
  %2527 = vmatpush1.xpose.msra.mxu0 0.0
  %2528 = vmatprep.mubr.f32.mxu0 0.0
  %2529 = vmatmul.mubr.f32.gmra.mrb[0].mxu0 %v2459
  %v2530 = vpop.f32.mrb[0].mxu0
  %v2531 = vadd.f32 0.0, %v2530
  %v2532 = vpop.f32.mrb[0].mxu0
  %2533 = vdwg.mxu0
  %v2535 = vsel %vm337, %v2299, 0
  %v2538 = vsel %vm337, %v2377, 0
  %2540 = vmatprep.subr.mxu0 0.0
  %2541 = vmatpush1.xpose.msra.mxu0 %v2538
  %2542 = vmatprep.subr.mxu0 0.0
  %2543 = vmatpush1.xpose.msra.mxu0 0.0
  %2544 = vmatprep.subr.mxu0 0.0
  %2545 = vmatpush1.xpose.msra.mxu0 0.0
  %2546 = vmatprep.subr.mxu0 0.0
  %2547 = vmatpush1.xpose.msra.mxu0 0.0
  %2548 = vmatprep.subr.mxu0 0.0
  %2549 = vmatpush1.xpose.msra.mxu0 0.0
  %2550 = vmatprep.subr.mxu0 0.0
  %2551 = vmatpush1.xpose.msra.mxu0 0.0
  %2552 = vmatprep.subr.mxu0 0.0
  %2553 = vmatpush1.xpose.msra.mxu0 0.0
  %2554 = vmatprep.subr.mxu0 0.0
  %2555 = vmatpush1.xpose.msra.mxu0 0.0
  %2556 = vmatprep.subr.mxu0 0.0
  %2557 = vmatpush1.xpose.msra.mxu0 0.0
  %2558 = vmatprep.subr.mxu0 0.0
  %2559 = vmatpush1.xpose.msra.mxu0 0.0
  %2560 = vmatprep.subr.mxu0 0.0
  %2561 = vmatpush1.xpose.msra.mxu0 0.0
  %2562 = vmatprep.subr.mxu0 0.0
  %2563 = vmatpush1.xpose.msra.mxu0 0.0
  %2564 = vmatprep.subr.mxu0 0.0
  %2565 = vmatpush1.xpose.msra.mxu0 0.0
  %2566 = vmatprep.subr.mxu0 0.0
  %2567 = vmatpush1.xpose.msra.mxu0 0.0
  %2568 = vmatprep.subr.mxu0 0.0
  %2569 = vmatpush1.xpose.msra.mxu0 0.0
  %2570 = vmatprep.subr.mxu0 0.0
  %2571 = vmatpush1.xpose.msra.mxu0 0.0
  %2572 = vmatprep.subr.mxu0 0.0
  %2573 = vmatpush1.xpose.msra.mxu0 0.0
  %2574 = vmatprep.subr.mxu0 0.0
  %2575 = vmatpush1.xpose.msra.mxu0 0.0
  %2576 = vmatprep.subr.mxu0 0.0
  %2577 = vmatpush1.xpose.msra.mxu0 0.0
  %2578 = vmatprep.subr.mxu0 0.0
  %2579 = vmatpush1.xpose.msra.mxu0 0.0
  %2580 = vmatprep.subr.mxu0 0.0
  %2581 = vmatpush1.xpose.msra.mxu0 0.0
  %2582 = vmatprep.subr.mxu0 0.0
  %2583 = vmatpush1.xpose.msra.mxu0 0.0
  %2584 = vmatprep.subr.mxu0 0.0
  %2585 = vmatpush1.xpose.msra.mxu0 0.0
  %2586 = vmatprep.subr.mxu0 0.0
  %2587 = vmatpush1.xpose.msra.mxu0 0.0
  %2588 = vmatprep.subr.mxu0 0.0
  %2589 = vmatpush1.xpose.msra.mxu0 0.0
  %2590 = vmatprep.subr.mxu0 0.0
  %2591 = vmatpush1.xpose.msra.mxu0 0.0
  %2592 = vmatprep.subr.mxu0 0.0
  %2593 = vmatpush1.xpose.msra.mxu0 0.0
  %2594 = vmatprep.subr.mxu0 0.0
  %2595 = vmatpush1.xpose.msra.mxu0 0.0
  %2596 = vmatprep.subr.mxu0 0.0
  %2597 = vmatpush1.xpose.msra.mxu0 0.0
  %2598 = vmatprep.subr.mxu0 0.0
  %2599 = vmatpush1.xpose.msra.mxu0 0.0
  %2600 = vmatprep.subr.mxu0 0.0
  %2601 = vmatpush1.xpose.msra.mxu0 0.0
  %2602 = vmatprep.subr.mxu0 0.0
  %2603 = vmatpush1.xpose.msra.mxu0 0.0
  %2604 = vmatprep.mubr.f32.mxu0 0.0
  %2605 = vmatmul.mubr.f32.gmra.mrb[0].mxu0 %v2535
  %v2606 = vpop.f32.mrb[0].mxu0
  %v2607 = vadd.f32 0.0, %v2606
  %v2608 = vpop.f32.mrb[0].mxu0
  %2609 = vdwg.mxu0
  %v2610 = vmul.f32 %v2531, 0.35355338
  %v2611 = vmul.f32 %v2607, 0.35355338
  %v2612 = vsel %vm337, %v2610, -inf
  %2613 = vmax.xlane.f32.xlu0 %v2612
  %v2614 = vpop.xlane.xlu0 %2613
  %v2615 = vsel %vm337, %v2611, -inf
  %2616 = vmax.xlane.f32.xlu0 %v2615
  %v2617 = vpop.xlane.xlu0 %2616
  %v2618 = vsub.f32 %v2610, %v2614
  %v2619 = vsub.f32 %v2611, %v2617
  %v2620 = vmul.f32 %v2618, 1.442695
  %v2621 = vpow.pop %v2620
  %v2622 = vmul.f32 %v2619, 1.442695
  %v2623 = vpow.pop %v2622
  %v2624 = vsel %vm337, %v2621, 0.0
  %2625 = vadd.xlane.f32.xlu0 %v2624
  %v2626 = vpop.xlane.xlu0 %2625
  %v2627 = vsel %vm337, %v2623, 0.0
  %2628 = vadd.xlane.f32.xlu0 %v2627
  %v2629 = vpop.xlane.xlu0 %2628
  %v2630 = vrcp.pop %v2626
  %v2631 = vrcp.pop %v2629
  %v2632 = vmul.f32 %v2621, %v2630
  %v2633 = vmul.f32 %v2623, %v2631
  %v2635 = vsel %vm337, %v2632, 0
  %2637 = vmatprep.subr.mxu0 0.0
  %2638 = vmatpush1.msra.mxu0 %v2450
  %2639 = vmatprep.subr.mxu0 0.0
  %2640 = vmatpush1.msra.mxu0 0.0
  %2641 = vmatprep.subr.mxu0 0.0
  %2642 = vmatpush1.msra.mxu0 0.0
  %2643 = vmatprep.subr.mxu0 0.0
  %2644 = vmatpush1.msra.mxu0 0.0
  %2645 = vmatprep.subr.mxu0 0.0
  %2646 = vmatpush1.msra.mxu0 0.0
  %2647 = vmatprep.subr.mxu0 0.0
  %2648 = vmatpush1.msra.mxu0 0.0
  %2649 = vmatprep.subr.mxu0 0.0
  %2650 = vmatpush1.msra.mxu0 0.0
  %2651 = vmatprep.subr.mxu0 0.0
  %2652 = vmatpush1.msra.mxu0 0.0
  %2653 = vmatprep.subr.mxu0 0.0
  %2654 = vmatpush1.msra.mxu0 0.0
  %2655 = vmatprep.subr.mxu0 0.0
  %2656 = vmatpush1.msra.mxu0 0.0
  %2657 = vmatprep.subr.mxu0 0.0
  %2658 = vmatpush1.msra.mxu0 0.0
  %2659 = vmatprep.subr.mxu0 0.0
  %2660 = vmatpush1.msra.mxu0 0.0
  %2661 = vmatprep.subr.mxu0 0.0
  %2662 = vmatpush1.msra.mxu0 0.0
  %2663 = vmatprep.subr.mxu0 0.0
  %2664 = vmatpush1.msra.mxu0 0.0
  %2665 = vmatprep.subr.mxu0 0.0
  %2666 = vmatpush1.msra.mxu0 0.0
  %2667 = vmatprep.subr.mxu0 0.0
  %2668 = vmatpush1.msra.mxu0 0.0
  %2669 = vmatprep.subr.mxu0 0.0
  %2670 = vmatpush1.msra.mxu0 0.0
  %2671 = vmatprep.subr.mxu0 0.0
  %2672 = vmatpush1.msra.mxu0 0.0
  %2673 = vmatprep.subr.mxu0 0.0
  %2674 = vmatpush1.msra.mxu0 0.0
  %2675 = vmatprep.subr.mxu0 0.0
  %2676 = vmatpush1.msra.mxu0 0.0
  %2677 = vmatprep.subr.mxu0 0.0
  %2678 = vmatpush1.msra.mxu0 0.0
  %2679 = vmatprep.subr.mxu0 0.0
  %2680 = vmatpush1.msra.mxu0 0.0
  %2681 = vmatprep.subr.mxu0 0.0
  %2682 = vmatpush1.msra.mxu0 0.0
  %2683 = vmatprep.subr.mxu0 0.0
  %2684 = vmatpush1.msra.mxu0 0.0
  %2685 = vmatprep.subr.mxu0 0.0
  %2686 = vmatpush1.msra.mxu0 0.0
  %2687 = vmatprep.subr.mxu0 0.0
  %2688 = vmatpush1.msra.mxu0 0.0
  %2689 = vmatprep.subr.mxu0 0.0
  %2690 = vmatpush1.msra.mxu0 0.0
  %2691 = vmatprep.subr.mxu0 0.0
  %2692 = vmatpush1.msra.mxu0 0.0
  %2693 = vmatprep.subr.mxu0 0.0
  %2694 = vmatpush1.msra.mxu0 0.0
  %2695 = vmatprep.subr.mxu0 0.0
  %2696 = vmatpush1.msra.mxu0 0.0
  %2697 = vmatprep.subr.mxu0 0.0
  %2698 = vmatpush1.msra.mxu0 0.0
  %2699 = vmatprep.subr.mxu0 0.0
  %2700 = vmatpush1.msra.mxu0 0.0
  %2701 = vmatprep.mubr.f32.mxu0 0.0
  %2702 = vmatmul.mubr.f32.gmra.mrb[0].mxu0 %v2635
  %v2703 = vpop.f32.mrb[0].mxu0
  %v2704 = vadd.f32 0.0, %v2703
  %v2705 = vpop.f32.mrb[0].mxu0
  %2706 = vdwg.mxu0
  %v2708 = vsel %vm337, %v2633, 0
  %2710 = vmatprep.subr.mxu0 0.0
  %2711 = vmatpush1.msra.mxu0 %v2455
  %2712 = vmatprep.subr.mxu0 0.0
  %2713 = vmatpush1.msra.mxu0 0.0
  %2714 = vmatprep.subr.mxu0 0.0
  %2715 = vmatpush1.msra.mxu0 0.0
  %2716 = vmatprep.subr.mxu0 0.0
  %2717 = vmatpush1.msra.mxu0 0.0
  %2718 = vmatprep.subr.mxu0 0.0
  %2719 = vmatpush1.msra.mxu0 0.0
  %2720 = vmatprep.subr.mxu0 0.0
  %2721 = vmatpush1.msra.mxu0 0.0
  %2722 = vmatprep.subr.mxu0 0.0
  %2723 = vmatpush1.msra.mxu0 0.0
  %2724 = vmatprep.subr.mxu0 0.0
  %2725 = vmatpush1.msra.mxu0 0.0
  %2726 = vmatprep.subr.mxu0 0.0
  %2727 = vmatpush1.msra.mxu0 0.0
  %2728 = vmatprep.subr.mxu0 0.0
  %2729 = vmatpush1.msra.mxu0 0.0
  %2730 = vmatprep.subr.mxu0 0.0
  %2731 = vmatpush1.msra.mxu0 0.0
  %2732 = vmatprep.subr.mxu0 0.0
  %2733 = vmatpush1.msra.mxu0 0.0
  %2734 = vmatprep.subr.mxu0 0.0
  %2735 = vmatpush1.msra.mxu0 0.0
  %2736 = vmatprep.subr.mxu0 0.0
  %2737 = vmatpush1.msra.mxu0 0.0
  %2738 = vmatprep.subr.mxu0 0.0
  %2739 = vmatpush1.msra.mxu0 0.0
  %2740 = vmatprep.subr.mxu0 0.0
  %2741 = vmatpush1.msra.mxu0 0.0
  %2742 = vmatprep.subr.mxu0 0.0
  %2743 = vmatpush1.msra.mxu0 0.0
  %2744 = vmatprep.subr.mxu0 0.0
  %2745 = vmatpush1.msra.mxu0 0.0
  %2746 = vmatprep.subr.mxu0 0.0
  %2747 = vmatpush1.msra.mxu0 0.0
  %2748 = vmatprep.subr.mxu0 0.0
  %2749 = vmatpush1.msra.mxu0 0.0
  %2750 = vmatprep.subr.mxu0 0.0
  %2751 = vmatpush1.msra.mxu0 0.0
  %2752 = vmatprep.subr.mxu0 0.0
  %2753 = vmatpush1.msra.mxu0 0.0
  %2754 = vmatprep.subr.mxu0 0.0
  %2755 = vmatpush1.msra.mxu0 0.0
  %2756 = vmatprep.subr.mxu0 0.0
  %2757 = vmatpush1.msra.mxu0 0.0
  %2758 = vmatprep.subr.mxu0 0.0
  %2759 = vmatpush1.msra.mxu0 0.0
  %2760 = vmatprep.subr.mxu0 0.0
  %2761 = vmatpush1.msra.mxu0 0.0
  %2762 = vmatprep.subr.mxu0 0.0
  %2763 = vmatpush1.msra.mxu0 0.0
  %2764 = vmatprep.subr.mxu0 0.0
  %2765 = vmatpush1.msra.mxu0 0.0
  %2766 = vmatprep.subr.mxu0 0.0
  %2767 = vmatpush1.msra.mxu0 0.0
  %2768 = vmatprep.subr.mxu0 0.0
  %2769 = vmatpush1.msra.mxu0 0.0
  %2770 = vmatprep.subr.mxu0 0.0
  %2771 = vmatpush1.msra.mxu0 0.0
  %2772 = vmatprep.subr.mxu0 0.0
  %2773 = vmatpush1.msra.mxu0 0.0
  %2774 = vmatprep.mubr.f32.mxu0 0.0
  %2775 = vmatmul.mubr.f32.gmra.mrb[0].mxu0 %v2708
  %v2776 = vpop.f32.mrb[0].mxu0
  %v2777 = vadd.f32 0.0, %v2776
  %v2778 = vpop.f32.mrb[0].mxu0
  %2779 = vdwg.mxu0
  %s2780 = scalar_lea.vmem %s6, 24
  %v2781 = vld [vmem:[%s2780] sm:$0xff]
  %v2783 = vsel %vm337, %v2704, 0
  %v2786 = vsel %vm337, %v2777, 0
  %2788 = vmatprep.subr.mxu0 0.0
  %2789 = vmatpush1.msra.mxu0 %v2781
  %2790 = vmatprep.subr.mxu0 0.0
  %2791 = vmatpush1.msra.mxu0 0.0
  %2792 = vmatprep.subr.mxu0 0.0
  %2793 = vmatpush1.msra.mxu0 0.0
  %2794 = vmatprep.subr.mxu0 0.0
  %2795 = vmatpush1.msra.mxu0 0.0
  %2796 = vmatprep.subr.mxu0 0.0
  %2797 = vmatpush1.msra.mxu0 0.0
  %2798 = vmatprep.subr.mxu0 0.0
  %2799 = vmatpush1.msra.mxu0 0.0
  %2800 = vmatprep.subr.mxu0 0.0
  %2801 = vmatpush1.msra.mxu0 0.0
  %2802 = vmatprep.subr.mxu0 0.0
  %2803 = vmatpush1.msra.mxu0 0.0
  %2804 = vmatprep.subr.mxu0 0.0
  %2805 = vmatpush1.msra.mxu0 0.0
  %2806 = vmatprep.subr.mxu0 0.0
  %2807 = vmatpush1.msra.mxu0 0.0
  %2808 = vmatprep.subr.mxu0 0.0
  %2809 = vmatpush1.msra.mxu0 0.0
  %2810 = vmatprep.subr.mxu0 0.0
  %2811 = vmatpush1.msra.mxu0 0.0
  %2812 = vmatprep.subr.mxu0 0.0
  %2813 = vmatpush1.msra.mxu0 0.0
  %2814 = vmatprep.subr.mxu0 0.0
  %2815 = vmatpush1.msra.mxu0 0.0
  %2816 = vmatprep.subr.mxu0 0.0
  %2817 = vmatpush1.msra.mxu0 0.0
  %2818 = vmatprep.subr.mxu0 0.0
  %2819 = vmatpush1.msra.mxu0 0.0
  %2820 = vmatprep.subr.mxu0 0.0
  %2821 = vmatpush1.msra.mxu0 0.0
  %2822 = vmatprep.subr.mxu0 0.0
  %2823 = vmatpush1.msra.mxu0 0.0
  %2824 = vmatprep.subr.mxu0 0.0
  %2825 = vmatpush1.msra.mxu0 0.0
  %2826 = vmatprep.subr.mxu0 0.0
  %2827 = vmatpush1.msra.mxu0 0.0
  %2828 = vmatprep.subr.mxu0 0.0
  %2829 = vmatpush1.msra.mxu0 0.0
  %2830 = vmatprep.subr.mxu0 0.0
  %2831 = vmatpush1.msra.mxu0 0.0
  %2832 = vmatprep.subr.mxu0 0.0
  %2833 = vmatpush1.msra.mxu0 0.0
  %2834 = vmatprep.subr.mxu0 0.0
  %2835 = vmatpush1.msra.mxu0 0.0
  %2836 = vmatprep.subr.mxu0 0.0
  %2837 = vmatpush1.msra.mxu0 0.0
  %2838 = vmatprep.subr.mxu0 0.0
  %2839 = vmatpush1.msra.mxu0 0.0
  %2840 = vmatprep.subr.mxu0 0.0
  %2841 = vmatpush1.msra.mxu0 0.0
  %2842 = vmatprep.subr.mxu0 0.0
  %2843 = vmatpush1.msra.mxu0 0.0
  %2844 = vmatprep.subr.mxu0 0.0
  %2845 = vmatpush1.msra.mxu0 0.0
  %2846 = vmatprep.subr.mxu0 0.0
  %2847 = vmatpush1.msra.mxu0 0.0
  %2848 = vmatprep.subr.mxu0 0.0
  %2849 = vmatpush1.msra.mxu0 0.0
  %2850 = vmatprep.subr.mxu0 0.0
  %2851 = vmatpush1.msra.mxu0 0.0
  %2852 = vmatprep.mubr.f32.mxu0 0.0
  %2853 = vmatmul.mubr.f32.gmra.mrb[0].mxu0 %v2783
  %v2854 = vpop.f32.mrb[0].mxu0
  %v2855 = vadd.f32 0.0, %v2854
  %v2856 = vpop.f32.mrb[0].mxu0
  %2857 = vmatprep.mubr.f32.mxu0 0.0
  %2858 = vmatmul.mubr.f32.gmra.mrb[0].mxu0 %v2786
  %v2859 = vpop.f32.mrb[0].mxu0
  %v2860 = vadd.f32 0.0, %v2859
  %v2861 = vpop.f32.mrb[0].mxu0
  %2862 = vdwg.mxu0
  %v2864 = vsel %vm337, %v2146, 0
  %v2867 = vsel %vm337, %v2219, 0
  %2869 = vmatprep.subr.mxu0 0.0
  %2870 = vmatpush1.msra.mxu0 %v2223
  %2871 = vmatprep.subr.mxu0 0.0
  %2872 = vmatpush1.msra.mxu0 0.0
  %2873 = vmatprep.subr.mxu0 0.0
  %2874 = vmatpush1.msra.mxu0 0.0
  %2875 = vmatprep.subr.mxu0 0.0
  %2876 = vmatpush1.msra.mxu0 0.0
  %2877 = vmatprep.subr.mxu0 0.0
  %2878 = vmatpush1.msra.mxu0 0.0
  %2879 = vmatprep.subr.mxu0 0.0
  %2880 = vmatpush1.msra.mxu0 0.0
  %2881 = vmatprep.subr.mxu0 0.0
  %2882 = vmatpush1.msra.mxu0 0.0
  %2883 = vmatprep.subr.mxu0 0.0
  %2884 = vmatpush1.msra.mxu0 0.0
  %2885 = vmatprep.subr.mxu0 0.0
  %2886 = vmatpush1.msra.mxu0 0.0
  %2887 = vmatprep.subr.mxu0 0.0
  %2888 = vmatpush1.msra.mxu0 0.0
  %2889 = vmatprep.subr.mxu0 0.0
  %2890 = vmatpush1.msra.mxu0 0.0
  %2891 = vmatprep.subr.mxu0 0.0
  %2892 = vmatpush1.msra.mxu0 0.0
  %2893 = vmatprep.subr.mxu0 0.0
  %2894 = vmatpush1.msra.mxu0 0.0
  %2895 = vmatprep.subr.mxu0 0.0
  %2896 = vmatpush1.msra.mxu0 0.0
  %2897 = vmatprep.subr.mxu0 0.0
  %2898 = vmatpush1.msra.mxu0 0.0
  %2899 = vmatprep.subr.mxu0 0.0
  %2900 = vmatpush1.msra.mxu0 0.0
  %2901 = vmatprep.subr.mxu0 0.0
  %2902 = vmatpush1.msra.mxu0 0.0
  %2903 = vmatprep.subr.mxu0 0.0
  %2904 = vmatpush1.msra.mxu0 0.0
  %2905 = vmatprep.subr.mxu0 0.0
  %2906 = vmatpush1.msra.mxu0 0.0
  %2907 = vmatprep.subr.mxu0 0.0
  %2908 = vmatpush1.msra.mxu0 0.0
  %2909 = vmatprep.subr.mxu0 0.0
  %2910 = vmatpush1.msra.mxu0 0.0
  %2911 = vmatprep.subr.mxu0 0.0
  %2912 = vmatpush1.msra.mxu0 0.0
  %2913 = vmatprep.subr.mxu0 0.0
  %2914 = vmatpush1.msra.mxu0 0.0
  %2915 = vmatprep.subr.mxu0 0.0
  %2916 = vmatpush1.msra.mxu0 0.0
  %2917 = vmatprep.subr.mxu0 0.0
  %2918 = vmatpush1.msra.mxu0 0.0
  %2919 = vmatprep.subr.mxu0 0.0
  %2920 = vmatpush1.msra.mxu0 0.0
  %2921 = vmatprep.subr.mxu0 0.0
  %2922 = vmatpush1.msra.mxu0 0.0
  %2923 = vmatprep.subr.mxu0 0.0
  %2924 = vmatpush1.msra.mxu0 0.0
  %2925 = vmatprep.subr.mxu0 0.0
  %2926 = vmatpush1.msra.mxu0 0.0
  %2927 = vmatprep.subr.mxu0 0.0
  %2928 = vmatpush1.msra.mxu0 0.0
  %2929 = vmatprep.subr.mxu0 0.0
  %2930 = vmatpush1.msra.mxu0 0.0
  %2931 = vmatprep.subr.mxu0 0.0
  %2932 = vmatpush1.msra.mxu0 0.0
  %2933 = vmatprep.mubr.f32.mxu0 0.0
  %2934 = vmatmul.mubr.f32.gmra.mrb[0].mxu0 %v2864
  %v2935 = vpop.f32.mrb[0].mxu0
  %v2936 = vadd.f32 %v2855, %v2935
  %v2937 = vpop.f32.mrb[0].mxu0
  %2938 = vmatprep.mubr.f32.mxu0 0.0
  %2939 = vmatmul.mubr.f32.gmra.mrb[0].mxu0 %v2867
  %v2940 = vpop.f32.mrb[0].mxu0
  %v2941 = vadd.f32 %v2860, %v2940
  %v2942 = vpop.f32.mrb[0].mxu0
  %2943 = vdwg.mxu0
  %v2944 = vadd.f32 %v1658, %v2936
  %v2945 = vadd.f32 %v1659, %v2941
  %s2946 = scalar_lea.vmem %s7, 1
  %v2947 = vld [vmem:[%s2946] sm:$0x1]
  %s2948 = scalar_lea.vmem %s8, 1
  %v2949 = vld [vmem:[%s2948] sm:$0x1]
  %v2950 = vsel %vm56, %v2944, 0.0
  %2951 = vadd.xlane.f32.xlu0 %v2950
  %v2952 = vpop.xlane.xlu0 %2951
  %v2953 = vsel %vm56, %v2945, 0.0
  %2954 = vadd.xlane.f32.xlu0 %v2953
  %v2955 = vpop.xlane.xlu0 %2954
  %v2956 = vmul.f32 %v2952, %v63
  %v2957 = vmul.f32 %v2955, %v63
  %v2958 = vsub.f32 %v2944, %v2956
  %v2959 = vsub.f32 %v2945, %v2957
  %v2960 = vmul.f32 %v2958, %v2958
  %v2961 = vmul.f32 %v2959, %v2959
  %v2962 = vsel %vm56, %v2960, 0.0
  %2963 = vadd.xlane.f32.xlu0 %v2962
  %v2964 = vpop.xlane.xlu0 %2963
  %v2965 = vsel %vm56, %v2961, 0.0
  %2966 = vadd.xlane.f32.xlu0 %v2965
  %v2967 = vpop.xlane.xlu0 %2966
  %v2968 = vmul.f32 %v2964, %v63
  %v2969 = vmul.f32 %v2967, %v63
  %v2970 = vadd.f32 %v2968, 1e-05
  %v2971 = vadd.f32 %v2969, 1e-05
  %v2972 = vrsqrt.pop %v2970
  %v2973 = vrsqrt.pop %v2971
  %v2974 = vmul.f32 %v2958, %v2972
  %v2975 = vmul.f32 %v2959, %v2973
  %v2977 = vlaneseq
  %v2978 = vshrl.u32 %v2977, 7
  %v2979 = vsub.s32 0, %v2978
  %v2980 = vrot.slane %v2947, %v2979
  %v2982 = vmul.f32 %v2974, %v2980
  %v2983 = vmul.f32 %v2975, %v2980
  %v2985 = vlaneseq
  %v2986 = vshrl.u32 %v2985, 7
  %v2987 = vsub.s32 0, %v2986
  %v2988 = vrot.slane %v2949, %v2987
  %v2990 = vadd.f32 %v2982, %v2988
  %v2991 = vadd.f32 %v2983, %v2988
  %s2992 = scalar_lea.vmem %s9, 16
  %v2993 = vld [vmem:[%s2992] sm:$0xff]
  %v2994 = vld [vmem:[%s2992 + $0x8] sm:$0xff]
  %s2995 = scalar_lea.vmem %s10, 1
  %v2996 = vld [vmem:[%s2995] sm:$0x1]
  %v2998 = vlaneseq
  %v2999 = vshrl.u32 %v2998, 7
  %v3000 = vsub.s32 0, %v2999
  %v3001 = vrot.slane %v2996, %v3000
  %v3004 = vsel %vm56, %v2990, 0
  %v3007 = vsel %vm56, %v2991, 0
  %3009 = vmatprep.subr.mxu0 0.0
  %3010 = vmatpush1.msra.mxu0 %v2993
  %3011 = vmatprep.subr.mxu0 0.0
  %3012 = vmatpush1.msra.mxu0 %v2994
  %3013 = vmatprep.subr.mxu0 0.0
  %3014 = vmatpush1.msra.mxu0 0.0
  %3015 = vmatprep.subr.mxu0 0.0
  %3016 = vmatpush1.msra.mxu0 0.0
  %3017 = vmatprep.subr.mxu0 0.0
  %3018 = vmatpush1.msra.mxu0 0.0
  %3019 = vmatprep.subr.mxu0 0.0
  %3020 = vmatpush1.msra.mxu0 0.0
  %3021 = vmatprep.subr.mxu0 0.0
  %3022 = vmatpush1.msra.mxu0 0.0
  %3023 = vmatprep.subr.mxu0 0.0
  %3024 = vmatpush1.msra.mxu0 0.0
  %3025 = vmatprep.subr.mxu0 0.0
  %3026 = vmatpush1.msra.mxu0 0.0
  %3027 = vmatprep.subr.mxu0 0.0
  %3028 = vmatpush1.msra.mxu0 0.0
  %3029 = vmatprep.subr.mxu0 0.0
  %3030 = vmatpush1.msra.mxu0 0.0
  %3031 = vmatprep.subr.mxu0 0.0
  %3032 = vmatpush1.msra.mxu0 0.0
  %3033 = vmatprep.subr.mxu0 0.0
  %3034 = vmatpush1.msra.mxu0 0.0
  %3035 = vmatprep.subr.mxu0 0.0
  %3036 = vmatpush1.msra.mxu0 0.0
  %3037 = vmatprep.subr.mxu0 0.0
  %3038 = vmatpush1.msra.mxu0 0.0
  %3039 = vmatprep.subr.mxu0 0.0
  %3040 = vmatpush1.msra.mxu0 0.0
  %3041 = vmatprep.subr.mxu0 0.0
  %3042 = vmatpush1.msra.mxu0 0.0
  %3043 = vmatprep.subr.mxu0 0.0
  %3044 = vmatpush1.msra.mxu0 0.0
  %3045 = vmatprep.subr.mxu0 0.0
  %3046 = vmatpush1.msra.mxu0 0.0
  %3047 = vmatprep.subr.mxu0 0.0
  %3048 = vmatpush1.msra.mxu0 0.0
  %3049 = vmatprep.subr.mxu0 0.0
  %3050 = vmatpush1.msra.mxu0 0.0
  %3051 = vmatprep.subr.mxu0 0.0
  %3052 = vmatpush1.msra.mxu0 0.0
  %3053 = vmatprep.subr.mxu0 0.0
  %3054 = vmatpush1.msra.mxu0 0.0
  %3055 = vmatprep.subr.mxu0 0.0
  %3056 = vmatpush1.msra.mxu0 0.0
  %3057 = vmatprep.subr.mxu0 0.0
  %3058 = vmatpush1.msra.mxu0 0.0
  %3059 = vmatprep.subr.mxu0 0.0
  %3060 = vmatpush1.msra.mxu0 0.0
  %3061 = vmatprep.subr.mxu0 0.0
  %3062 = vmatpush1.msra.mxu0 0.0
  %3063 = vmatprep.subr.mxu0 0.0
  %3064 = vmatpush1.msra.mxu0 0.0
  %3065 = vmatprep.subr.mxu0 0.0
  %3066 = vmatpush1.msra.mxu0 0.0
  %3067 = vmatprep.subr.mxu0 0.0
  %3068 = vmatpush1.msra.mxu0 0.0
  %3069 = vmatprep.subr.mxu0 0.0
  %3070 = vmatpush1.msra.mxu0 0.0
  %3071 = vmatprep.subr.mxu0 0.0
  %3072 = vmatpush1.msra.mxu0 0.0
  %3073 = vmatprep.mubr.f32.mxu0 0.0
  %3074 = vmatmul.mubr.f32.gmra.mrb[0].mxu0 %v3004
  %v3075 = vpop.f32.mrb[0].mxu0
  %v3076 = vadd.f32 %v3001, %v3075
  %v3077 = vpop.f32.mrb[0].mxu0
  %3078 = vmatprep.mubr.f32.mxu0 0.0
  %3079 = vmatmul.mubr.f32.gmra.mrb[0].mxu0 %v3007
  %v3080 = vpop.f32.mrb[0].mxu0
  %v3081 = vadd.f32 %v3001, %v3080
  %v3082 = vpop.f32.mrb[0].mxu0
  %3083 = vdwg.mxu0
  %v3084 = vmax.f32 %v3076, 0.0
  %v3085 = vmax.f32 %v3081, 0.0
  %s3086 = scalar_lea.vmem %s11, 32
  %v3087 = vld [vmem:[%s3086] sm:$0xff]
  %v3088 = vld [vmem:[%s3086 + $0x8] sm:$0xff]
  %v3089 = vld [vmem:[%s3086 + $0x10] sm:$0xff]
  %v3090 = vld [vmem:[%s3086 + $0x18] sm:$0xff]
  %s3091 = scalar_lea.vmem %s12, 1
  %v3092 = vld [vmem:[%s3091] sm:$0x1]
  %v3094 = vlaneseq
  %v3095 = vshrl.u32 %v3094, 7
  %v3096 = vsub.s32 0, %v3095
  %v3097 = vrot.slane %v3092, %v3096
  %v3100 = vsel %vm1530, %v3084, 0
  %v3103 = vsel %vm1530, %v3085, 0
  %3105 = vmatprep.subr.mxu0 0.0
  %3106 = vmatpush1.msra.mxu0 %v3087
  %3107 = vmatprep.subr.mxu0 0.0
  %3108 = vmatpush1.msra.mxu0 %v3088
  %3109 = vmatprep.subr.mxu0 0.0
  %3110 = vmatpush1.msra.mxu0 %v3089
  %3111 = vmatprep.subr.mxu0 0.0
  %3112 = vmatpush1.msra.mxu0 %v3090
  %3113 = vmatprep.subr.mxu0 0.0
  %3114 = vmatpush1.msra.mxu0 0.0
  %3115 = vmatprep.subr.mxu0 0.0
  %3116 = vmatpush1.msra.mxu0 0.0
  %3117 = vmatprep.subr.mxu0 0.0
  %3118 = vmatpush1.msra.mxu0 0.0
  %3119 = vmatprep.subr.mxu0 0.0
  %3120 = vmatpush1.msra.mxu0 0.0
  %3121 = vmatprep.subr.mxu0 0.0
  %3122 = vmatpush1.msra.mxu0 0.0
  %3123 = vmatprep.subr.mxu0 0.0
  %3124 = vmatpush1.msra.mxu0 0.0
  %3125 = vmatprep.subr.mxu0 0.0
  %3126 = vmatpush1.msra.mxu0 0.0
  %3127 = vmatprep.subr.mxu0 0.0
  %3128 = vmatpush1.msra.mxu0 0.0
  %3129 = vmatprep.subr.mxu0 0.0
  %3130 = vmatpush1.msra.mxu0 0.0
  %3131 = vmatprep.subr.mxu0 0.0
  %3132 = vmatpush1.msra.mxu0 0.0
  %3133 = vmatprep.subr.mxu0 0.0
  %3134 = vmatpush1.msra.mxu0 0.0
  %3135 = vmatprep.subr.mxu0 0.0
  %3136 = vmatpush1.msra.mxu0 0.0
  %3137 = vmatprep.subr.mxu0 0.0
  %3138 = vmatpush1.msra.mxu0 0.0
  %3139 = vmatprep.subr.mxu0 0.0
  %3140 = vmatpush1.msra.mxu0 0.0
  %3141 = vmatprep.subr.mxu0 0.0
  %3142 = vmatpush1.msra.mxu0 0.0
  %3143 = vmatprep.subr.mxu0 0.0
  %3144 = vmatpush1.msra.mxu0 0.0
  %3145 = vmatprep.subr.mxu0 0.0
  %3146 = vmatpush1.msra.mxu0 0.0
  %3147 = vmatprep.subr.mxu0 0.0
  %3148 = vmatpush1.msra.mxu0 0.0
  %3149 = vmatprep.subr.mxu0 0.0
  %3150 = vmatpush1.msra.mxu0 0.0
  %3151 = vmatprep.subr.mxu0 0.0
  %3152 = vmatpush1.msra.mxu0 0.0
  %3153 = vmatprep.subr.mxu0 0.0
  %3154 = vmatpush1.msra.mxu0 0.0
  %3155 = vmatprep.subr.mxu0 0.0
  %3156 = vmatpush1.msra.mxu0 0.0
  %3157 = vmatprep.subr.mxu0 0.0
  %3158 = vmatpush1.msra.mxu0 0.0
  %3159 = vmatprep.subr.mxu0 0.0
  %3160 = vmatpush1.msra.mxu0 0.0
  %3161 = vmatprep.subr.mxu0 0.0
  %3162 = vmatpush1.msra.mxu0 0.0
  %3163 = vmatprep.subr.mxu0 0.0
  %3164 = vmatpush1.msra.mxu0 0.0
  %3165 = vmatprep.subr.mxu0 0.0
  %3166 = vmatpush1.msra.mxu0 0.0
  %3167 = vmatprep.subr.mxu0 0.0
  %3168 = vmatpush1.msra.mxu0 0.0
  %3169 = vmatprep.mubr.f32.mxu0 0.0
  %3170 = vmatmul.mubr.f32.gmra.mrb[0].mxu0 %v3100
  %v3171 = vpop.f32.mrb[0].mxu0
  %v3172 = vadd.f32 %v3097, %v3171
  %v3173 = vpop.f32.mrb[0].mxu0
  %3174 = vmatprep.mubr.f32.mxu0 0.0
  %3175 = vmatmul.mubr.f32.gmra.mrb[0].mxu0 %v3103
  %v3176 = vpop.f32.mrb[0].mxu0
  %v3177 = vadd.f32 %v3097, %v3176
  %v3178 = vpop.f32.mrb[0].mxu0
  %3179 = vdwg.mxu0
  %v3180 = vadd.f32 %v2990, %v3172
  %v3181 = vadd.f32 %v2991, %v3177
  %v3182 = vsel %vm56, %v3180, -inf
  %v3183 = vrot.slane %v3182, 4
  %v3184 = vmax.f32 %v3182, %v3183
  %v3185 = vrot.slane %v3184, 2
  %v3186 = vmax.f32 %v3184, %v3185
  %v3187 = vrot.slane %v3186, 1
  %v3188 = vmax.f32 %v3186, %v3187
  %v3189 = vsel %vm56, %v3181, -inf
  %v3190 = vrot.slane %v3189, 4
  %v3191 = vmax.f32 %v3189, %v3190
  %v3192 = vrot.slane %v3191, 2
  %v3193 = vmax.f32 %v3191, %v3192
  %v3194 = vrot.slane %v3193, 1
  %v3195 = vmax.f32 %v3193, %v3194
  %v3196 = vld [vmem:[%s13] sm:$0xff]
  %v3197 = vld [vmem:[%s13 + $0x8] sm:$0xff]
  %v3198 = vld [vmem:[#allocation2] sm:$0x1]
  %v3200 = vlaneseq
  %v3201 = vshrl.u32 %v3200, 7
  %v3202 = vsub.s32 0, %v3201
  %v3203 = vrot.slane %v3198, %v3202
  %vm3207 = vcmask 1041409
  %v3208 = vsel %vm3207, %v3195, %v3188
  %v3209 = vsel %vm56, %v3208, 0
  %3211 = vmatprep.subr.mxu0 0.0
  %3212 = vmatpush1.msra.mxu0 %v3196
  %3213 = vmatprep.subr.mxu0 0.0
  %3214 = vmatpush1.msra.mxu0 %v3197
  %3215 = vmatprep.subr.mxu0 0.0
  %3216 = vmatpush1.msra.mxu0 0.0
  %3217 = vmatprep.subr.mxu0 0.0
  %3218 = vmatpush1.msra.mxu0 0.0
  %3219 = vmatprep.subr.mxu0 0.0
  %3220 = vmatpush1.msra.mxu0 0.0
  %3221 = vmatprep.subr.mxu0 0.0
  %3222 = vmatpush1.msra.mxu0 0.0
  %3223 = vmatprep.subr.mxu0 0.0
  %3224 = vmatpush1.msra.mxu0 0.0
  %3225 = vmatprep.subr.mxu0 0.0
  %3226 = vmatpush1.msra.mxu0 0.0
  %3227 = vmatprep.subr.mxu0 0.0
  %3228 = vmatpush1.msra.mxu0 0.0
  %3229 = vmatprep.subr.mxu0 0.0
  %3230 = vmatpush1.msra.mxu0 0.0
  %3231 = vmatprep.subr.mxu0 0.0
  %3232 = vmatpush1.msra.mxu0 0.0
  %3233 = vmatprep.subr.mxu0 0.0
  %3234 = vmatpush1.msra.mxu0 0.0
  %3235 = vmatprep.subr.mxu0 0.0
  %3236 = vmatpush1.msra.mxu0 0.0
  %3237 = vmatprep.subr.mxu0 0.0
  %3238 = vmatpush1.msra.mxu0 0.0
  %3239 = vmatprep.subr.mxu0 0.0
  %3240 = vmatpush1.msra.mxu0 0.0
  %3241 = vmatprep.subr.mxu0 0.0
  %3242 = vmatpush1.msra.mxu0 0.0
  %3243 = vmatprep.subr.mxu0 0.0
  %3244 = vmatpush1.msra.mxu0 0.0
  %3245 = vmatprep.subr.mxu0 0.0
  %3246 = vmatpush1.msra.mxu0 0.0
  %3247 = vmatprep.subr.mxu0 0.0
  %3248 = vmatpush1.msra.mxu0 0.0
  %3249 = vmatprep.subr.mxu0 0.0
  %3250 = vmatpush1.msra.mxu0 0.0
  %3251 = vmatprep.subr.mxu0 0.0
  %3252 = vmatpush1.msra.mxu0 0.0
  %3253 = vmatprep.subr.mxu0 0.0
  %3254 = vmatpush1.msra.mxu0 0.0
  %3255 = vmatprep.subr.mxu0 0.0
  %3256 = vmatpush1.msra.mxu0 0.0
  %3257 = vmatprep.subr.mxu0 0.0
  %3258 = vmatpush1.msra.mxu0 0.0
  %3259 = vmatprep.subr.mxu0 0.0
  %3260 = vmatpush1.msra.mxu0 0.0
  %3261 = vmatprep.subr.mxu0 0.0
  %3262 = vmatpush1.msra.mxu0 0.0
  %3263 = vmatprep.subr.mxu0 0.0
  %3264 = vmatpush1.msra.mxu0 0.0
  %3265 = vmatprep.subr.mxu0 0.0
  %3266 = vmatpush1.msra.mxu0 0.0
  %3267 = vmatprep.subr.mxu0 0.0
  %3268 = vmatpush1.msra.mxu0 0.0
  %3269 = vmatprep.subr.mxu0 0.0
  %3270 = vmatpush1.msra.mxu0 0.0
  %3271 = vmatprep.subr.mxu0 0.0
  %3272 = vmatpush1.msra.mxu0 0.0
  %3273 = vmatprep.subr.mxu0 0.0
  %3274 = vmatpush1.msra.mxu0 0.0
  %3275 = vmatprep.mubr.f32.mxu0 0.0
  %3276 = vmatmul.mubr.f32.gmra.mrb[0].mxu0 %v3209
  %v3277 = vpop.f32.mrb[0].mxu0
  %v3278 = vadd.f32 %v3203, %v3277
  %v3279 = vpop.f32.mrb[0].mxu0
  %3280 = vdwg.mxu0
  %vm3281 = vcmask 1024
  %3282 = vst.msk [vmem:[%s15] sm:$0x3] %vm3281, %v3278
  // Predicated region
  $region62: #{self_attention_model.1} parent=0 // pred_check
    _
  $region63: #{self_attention_model.1} parent=0 // pred_check_branch
    %3284 = sbr.rel (0) target = $region65
  $region64: #{self_attention_model.1} parent=0 // pred_region
    _
  $region65: #{self_attention_model.1} parent=0 // pred_fallthru
    _
  // Predicated region
  $region66: #{self_attention_model.1} parent=0 // pred_check
    _
  $region67: #{self_attention_model.1} parent=0 // pred_check_branch
    %3286 = sbr.rel (0) target = $region69
  $region68: #{self_attention_model.1} parent=0 // pred_region
    _
  $region69: #{self_attention_model.1} parent=0 // pred_fallthru
    _

</llo_original>
